<compile_context>
chip_gen: v7x
topology: tpu7x:2x2x1
jax: 0.10.0
libtpu: 0.0.40
codegen_flags: <defaults>
</compile_context>

<pallas_src>
import functools

import jax
import jax.numpy as jnp
from jax.experimental import pallas as pl
from jax.experimental.pallas import tpu as pltpu


def _round_up(a, m):
    return (a + m - 1) // m * m


@functools.lru_cache(maxsize=None)
def _vmem_limit_bytes():
    """Generation-aware scoped-VMEM budget (~half of physical VMEM).

    v5e/v6e: 128 MiB physical -> 64 MiB budget; v7x: 64 MiB -> 32 MiB budget
    (also the conservative fallback if the query is unavailable).
    """
    try:
        cap = getattr(pltpu.get_tpu_info(), "vmem_capacity_bytes", None)
    except Exception:
        cap = None
    if not cap:
        return 32 * 1024 * 1024
    return int(min(96 * 1024 * 1024, max(32 * 1024 * 1024, cap // 2)))


def _compiler_params(dimension_semantics):
    return pltpu.CompilerParams(
        dimension_semantics=dimension_semantics,
        vmem_limit_bytes=_vmem_limit_bytes(),
    )


def _resident_spec(block_shape, index_map):
    """BlockSpec for a block whose index map is constant over the grid:
    keep it single-buffered (double-buffering a never-changing block only
    wastes VMEM).  Falls back to a default BlockSpec on older jax."""
    if hasattr(pl, "Buffered"):
        try:
            return pl.BlockSpec(block_shape, index_map,
                                pipeline_mode=pl.Buffered(1))
        except TypeError:
            pass
    return pl.BlockSpec(block_shape, index_map)


# ----------------------------------------------------------------------------
# Fused conv3x3 (pad=1) + bias + ReLU: in-kernel tap gather, no im2col in HBM
# ----------------------------------------------------------------------------
def _conv3x3_relu_kernel(x_ref, w_ref, b_ref, o_ref, *, stride):
    """One batch element per grid step.

    stride == 2: x_ref is the phase-decomposed padded input
        (1, Hp//2, 2, Wp//2, 2*Cin)  -- a free view of the padded NHWC buffer,
        so every stride-2 tap is a contiguous static slice.
    stride == 1: x_ref is the padded input (1, Hp, Wp, Cin).
    """
    _, Ho, Wo, Cout = o_ref.shape
    Cin = w_ref.shape[2]

    acc = jnp.zeros((Ho * Wo, Cout), jnp.float32)
    for dy in range(3):
        for dx in range(3):
            if stride == 2:
                oh, ph = dy // 2, dy % 2
                ow, pw = dx // 2, dx % 2
                tap = x_ref[0:1, oh:oh + Ho, ph:ph + 1, ow:ow + Wo,
                            pw * Cin:(pw + 1) * Cin]
            else:
                tap = x_ref[0:1, dy:dy + Ho, dx:dx + Wo, :]
            acc = acc + jnp.dot(tap.reshape(Ho * Wo, Cin), w_ref[dy, dx],
                                preferred_element_type=jnp.float32)

    acc = jnp.maximum(acc + b_ref[...], 0.0)          # f32 bias + ReLU
    o_ref[...] = acc.reshape(1, Ho, Wo, Cout).astype(o_ref.dtype)


def conv3x3_relu(x_nhwc, w_hwio, b, stride):
    """Conv2d(k=3, padding=1, stride) + bias + ReLU as one fused pallas_call."""
    N, H, W, Cin = x_nhwc.shape
    kh, kw, wc_in, Cout = w_hwio.shape
    assert (kh, kw, wc_in) == (3, 3, Cin)
    Ho = (H + 2 - 3) // stride + 1
    Wo = (W + 2 - 3) // stride + 1

    x_nhwc = x_nhwc.astype(jnp.bfloat16)
    w = w_hwio.astype(jnp.bfloat16)
    b2 = b.reshape(1, Cout).astype(jnp.float32)

    # Spatial zero-pad: 1x traffic on a small activation (unlike im2col's 9x).
    xp = jnp.pad(x_nhwc, ((0, 0), (1, 1), (1, 1), (0, 0)))
    if stride == 2:
        assert H % 2 == 0 and W % 2 == 0, "stride-2 stage needs even H, W"
        # Free view (identity on memory): even/odd phase split of rows & cols.
        xin = xp.reshape(N, (H + 2) // 2, 2, (W + 2) // 2, 2 * Cin)
        in_spec = pl.BlockSpec((1,) + xin.shape[1:],
                               lambda n: (n, 0, 0, 0, 0))
    else:
        xin = xp
        in_spec = pl.BlockSpec((1,) + xin.shape[1:], lambda n: (n, 0, 0, 0))

    cost = pl.CostEstimate(
        flops=2 * N * Ho * Wo * 9 * Cin * Cout,
        transcendentals=0,
        bytes_accessed=(xin.size + w.size + N * Ho * Wo * Cout) * 2 + Cout * 4,
    )

    return pl.pallas_call(
        functools.partial(_conv3x3_relu_kernel, stride=stride),
        out_shape=jax.ShapeDtypeStruct((N, Ho, Wo, Cout), jnp.bfloat16),
        grid=(N,),   # batch-parallel: batch >= 2 keeps both v7x cores busy
        in_specs=[
            in_spec,
            _resident_spec((3, 3, Cin, Cout), lambda n: (0, 0, 0, 0)),
            _resident_spec((1, Cout), lambda n: (0, 0)),
        ],
        out_specs=pl.BlockSpec((1, Ho, Wo, Cout), lambda n: (n, 0, 0, 0)),
        compiler_params=_compiler_params(("parallel",)),
        cost_estimate=cost,
    )(xin, w, b2)


# ----------------------------------------------------------------------------
# Linear: out = relu?(x @ w + b) with M ("parallel") x K ("arbitrary") tiling
# ----------------------------------------------------------------------------
def _linear_kernel(x_ref, w_ref, b_ref, o_ref, acc_ref, *, apply_relu):
    k = pl.program_id(1)

    @pl.when(k == 0)
    def _():
        acc_ref[...] = jnp.zeros_like(acc_ref)

    acc_ref[...] += jnp.dot(x_ref[...], w_ref[...],
                            preferred_element_type=jnp.float32)

    @pl.when(k == pl.num_programs(1) - 1)
    def _():
        out = acc_ref[...] + b_ref[...]
        if apply_relu:
            out = jnp.maximum(out, 0.0)
        o_ref[...] = out.astype(o_ref.dtype)


def _pick_divisor_tile(total, target, quantum):
    """Largest multiple of `quantum` that divides `total` and is <= target
    (falls back to the full dim, i.e. a single tile)."""
    if total <= target or total % quantum != 0:
        return total
    t = (min(target, total) // quantum) * quantum
    while t >= quantum:
        if total % t == 0:
            return t
        t -= quantum
    return total


def linear(x, w, b, *, apply_relu=False, out_dtype=jnp.float32):
    M, K = x.shape
    K2, Nout = w.shape
    assert K == K2
    x = x.astype(jnp.bfloat16)
    w = w.astype(jnp.bfloat16)
    b2 = b.reshape(1, Nout).astype(jnp.float32)

    # K tile: exact divisor (no reduction masking), weight tile ~<= 2 MiB so a
    # realistic (final_conv_size x feature_dim) w_lin is streamed, not resident.
    tk = _pick_divisor_tile(
        K, target=max(128, (2 << 20) // max(1, 2 * Nout)), quantum=128)
    grid_k = K // tk

    # M tile: ~2 MiB of bf16 activation per step, split in two when M allows
    # so both v7x TensorCores get work.  Ragged final tile handled by Pallas.
    if M <= 8:
        tm = M
    else:
        tm_target = max(8, min(4096, (2 << 20) // max(1, 2 * tk)))
        tm = _round_up(min(tm_target, pl.cdiv(M, 2)), 8)
        tm = min(tm, _round_up(M, 8))
    grid_m = pl.cdiv(M, tm)

    cost = pl.CostEstimate(
        flops=2 * M * K * Nout,
        transcendentals=0,
        bytes_accessed=(M * K + K * Nout) * 2 + Nout * 4
        + M * Nout * jnp.dtype(out_dtype).itemsize,
    )

    if grid_k == 1:
        w_spec = _resident_spec((tk, Nout), lambda i, k: (k, 0))
    else:
        w_spec = pl.BlockSpec((tk, Nout), lambda i, k: (k, 0))

    return pl.pallas_call(
        functools.partial(_linear_kernel, apply_relu=apply_relu),
        out_shape=jax.ShapeDtypeStruct((M, Nout), out_dtype),
        grid=(grid_m, grid_k),
        in_specs=[
            pl.BlockSpec((tm, tk), lambda i, k: (i, k)),
            w_spec,
            _resident_spec((1, Nout), lambda i, k: (0, 0)),
        ],
        out_specs=pl.BlockSpec((tm, Nout), lambda i, k: (i, 0)),
        scratch_shapes=[pltpu.VMEM((tm, Nout), jnp.float32)],
        compiler_params=_compiler_params(("parallel", "arbitrary")),
        cost_estimate=cost,
    )(x, w, b2)


# ----------------------------------------------------------------------------
# Parameters (PyTorch-faithful shapes/init) + one-time kernel-layout prep
# ----------------------------------------------------------------------------
def init_params(key, in_ch, H, W, feature_dim):
    # Like the reference module (final_conv_size = 128*(W//8)*(H//8)), we
    # require H % 8 == 0 and W % 8 == 0.
    assert H % 8 == 0 and W % 8 == 0, "ST_DIM_CNN assumes H, W divisible by 8"
    ortho = jax.nn.initializers.orthogonal(scale=0.5)
    ks = jax.random.split(key, 5)
    final_conv_size = 128 * (W // 8) * (H // 8)
    return {
        "w1": ortho(ks[0], (3, 3, in_ch, 32), jnp.float32),
        "b1": jnp.zeros((32,), jnp.float32),
        "w2": ortho(ks[1], (3, 3, 32, 64), jnp.float32),
        "b2": jnp.zeros((64,), jnp.float32),
        "w3": ortho(ks[2], (3, 3, 64, 64), jnp.float32),
        "b3": jnp.zeros((64,), jnp.float32),
        "w4": ortho(ks[3], (3, 3, 64, 128), jnp.float32),
        "b4": jnp.zeros((128,), jnp.float32),
        # rows ordered like PyTorch's nn.Flatten of an NCHW tensor: (c, h, w)
        "w_lin": ortho(ks[4], (final_conv_size, feature_dim), jnp.float32),
        "b_lin": jnp.zeros((feature_dim,), jnp.float32),
    }


def prepare_params(params, H, W, feature_dim):
    """One-time transform into the kernel layout: bf16 MXU operands; w_lin
    rows permuted from NCHW-flatten to NHWC-flatten order so no runtime
    transpose is needed before the Linear."""
    Hf, Wf, C4 = H // 8, W // 8, 128
    w_lin = params["w_lin"].reshape(C4, Hf, Wf, feature_dim)
    w_lin = jnp.transpose(w_lin, (1, 2, 0, 3)).reshape(Hf * Wf * C4, feature_dim)
    cast = lambda a: a.astype(jnp.bfloat16)
    return {
        "w1": cast(params["w1"]), "b1": params["b1"],
        "w2": cast(params["w2"]), "b2": params["b2"],
        "w3": cast(params["w3"]), "b3": params["b3"],
        "w4": cast(params["w4"]), "b4": params["b4"],
        "w_lin": cast(w_lin), "b_lin": params["b_lin"],
    }


# ----------------------------------------------------------------------------
# Forward pass (matches ST_DIM_CNN.forward)
# ----------------------------------------------------------------------------
def st_dim_cnn_forward(params, x_nchw, fmaps=False):
    x = jnp.transpose(x_nchw, (0, 2, 3, 1)).astype(jnp.bfloat16)   # NCHW->NHWC
    x = conv3x3_relu(x, params["w1"], params["b1"], stride=2)      # main[0:2]
    x = conv3x3_relu(x, params["w2"], params["b2"], stride=2)      # main[2:4]
    f5 = conv3x3_relu(x, params["w3"], params["b3"], stride=2)     # main[4:6]
    x = conv3x3_relu(f5, params["w4"], params["b4"], stride=1)     # main[6:8]
    feat = x.reshape(x.shape[0], -1)      # NHWC flatten (w_lin rows permuted)
    out = linear(feat, params["w_lin"], params["b_lin"])           # main[8:10]
    if fmaps:
        # f5 is already NHWC, i.e. the PyTorch f5.permute(0, 2, 3, 1)
        return {"f5": f5, "out": out}
    return out


def st_dim_cnn_reference(params, x_nchw):
    """Plain-XLA reference with the same numerics class (bf16 operands, f32
    accumulation) used for a tolerance check of the Pallas path."""
    def conv(x, w, b, s):
        y = jax.lax.conv_general_dilated(
            x, w.astype(jnp.bfloat16), window_strides=(s, s),
            padding=((1, 1), (1, 1)),
            dimension_numbers=("NHWC", "HWIO", "NHWC"),
            preferred_element_type=jnp.float32)
        return jnp.maximum(y + b, 0.0).astype(jnp.bfloat16)

    x = jnp.transpose(x_nchw, (0, 2, 3, 1)).astype(jnp.bfloat16)
    x = conv(x, params["w1"], params["b1"], 2)
    x = conv(x, params["w2"], params["b2"], 2)
    x = conv(x, params["w3"], params["b3"], 2)
    x = conv(x, params["w4"], params["b4"], 1)
    feat = x.reshape(x.shape[0], -1)
    return jnp.dot(feat, params["w_lin"].astype(jnp.bfloat16),
                   preferred_element_type=jnp.float32) + params["b_lin"]


if __name__ == "__main__":
    batch, in_ch, H, W = 2, 4, 16, 16
    feature_dim = 32

    key = jax.random.PRNGKey(0)
    k_params, k_x = jax.random.split(key)
    params = init_params(k_params, in_ch, H, W, feature_dim)
    run_params = prepare_params(params, H, W, feature_dim)
    x = jax.random.normal(k_x, (batch, in_ch, H, W), dtype=jnp.float32)

    fwd = jax.jit(st_dim_cnn_forward)
    out = jax.block_until_ready(fwd(run_params, x))
    assert out.shape == (batch, feature_dim), out.shape

    # Tolerance check vs. an XLA reference with matching bf16/f32 numerics
    # (bf16 activations imply ~1e-2-level agreement with a pure-f32 PyTorch
    # reference; against this matched-precision reference the gap is tiny).
    ref = jax.block_until_ready(jax.jit(st_dim_cnn_reference)(run_params, x))
    err = float(jnp.max(jnp.abs(out - ref)))
    tol = 1e-2 * (1.0 + float(jnp.max(jnp.abs(ref))))
    assert err <= tol, (err, tol)

    print("KERNEL_OK")
</pallas_src>

<mosaic_0001>
module attributes {stable_mosaic.version = 11 : i64} {
  func.func @_conv3x3_relu_kernel(%arg0: i32, %arg1: memref<1x9x2x9x8xbf16, #tpu.memory_space<vmem>>, %arg2: memref<3x3x4x32xbf16, #tpu.memory_space<vmem>>, %arg3: memref<1x32xf32, #tpu.memory_space<vmem>>, %arg4: memref<1x8x8x32xbf16, #tpu.memory_space<vmem>>) attributes {dimension_semantics = [#tpu.dimension_semantics<parallel>], iteration_bounds = array<i64: 2>, scalar_prefetch = 0 : i64, scratch_operands = 0 : i64, tpu.core_type = #tpu.core_type<tc>, window_params = [{transform_indices = @transform_0, window_bounds = array<i64: 1, 9, 2, 9, 8>}, {pipeline_mode = #tpu.pipeline_mode<synchronous>, transform_indices = @transform_1, window_bounds = array<i64: 3, 3, 4, 32>}, {pipeline_mode = #tpu.pipeline_mode<synchronous>, transform_indices = @transform_2, window_bounds = array<i64: 1, 32>}, {transform_indices = @transform_3, window_bounds = array<i64: 1, 8, 8, 32>}]} {
    %cst = arith.constant 0.000000e+00 : f32
    %0 = vector.broadcast %cst : f32 to vector<64x32xf32>
    %c0 = arith.constant 0 : index
    %c0_0 = arith.constant 0 : index
    %c0_1 = arith.constant 0 : index
    %c0_2 = arith.constant 0 : index
    %c0_3 = arith.constant 0 : index
    %1 = vector.load %arg1[%c0, %c0_0, %c0_1, %c0_2, %c0_3] : memref<1x9x2x9x8xbf16, #tpu.memory_space<vmem>>, vector<1x8x1x8x4xbf16>
    %2 = vector.shape_cast %1 : vector<1x8x1x8x4xbf16> to vector<64x4xbf16>
    %c0_4 = arith.constant 0 : index
    %c0_5 = arith.constant 0 : index
    %c0_6 = arith.constant 0 : index
    %c0_7 = arith.constant 0 : index
    %3 = vector.load %arg2[%c0_4, %c0_5, %c0_6, %c0_7] : memref<3x3x4x32xbf16, #tpu.memory_space<vmem>>, vector<1x1x4x32xbf16>
    %4 = vector.shape_cast %3 : vector<1x1x4x32xbf16> to vector<4x32xbf16>
    %cst_8 = arith.constant dense<0.000000e+00> : vector<64x32xf32>
    %5 = tpu.matmul %2, %4, %cst_8 {dimension_numbers = #tpu.dot_dimension_numbers<[1], [0], [0], [1], [0, 0, 1, 1], [], []>} : vector<64x4xbf16>, vector<4x32xbf16>, vector<64x32xf32> -> vector<64x32xf32>
    %6 = arith.addf %0, %5 : vector<64x32xf32>
    %c0_9 = arith.constant 0 : index
    %c0_10 = arith.constant 0 : index
    %c0_11 = arith.constant 0 : index
    %c0_12 = arith.constant 0 : index
    %c4 = arith.constant 4 : index
    %7 = vector.load %arg1[%c0_9, %c0_10, %c0_11, %c0_12, %c4] : memref<1x9x2x9x8xbf16, #tpu.memory_space<vmem>>, vector<1x8x1x8x4xbf16>
    %8 = vector.shape_cast %7 : vector<1x8x1x8x4xbf16> to vector<64x4xbf16>
    %c0_13 = arith.constant 0 : index
    %c1 = arith.constant 1 : index
    %c0_14 = arith.constant 0 : index
    %c0_15 = arith.constant 0 : index
    %9 = vector.load %arg2[%c0_13, %c1, %c0_14, %c0_15] : memref<3x3x4x32xbf16, #tpu.memory_space<vmem>>, vector<1x1x4x32xbf16>
    %10 = vector.shape_cast %9 : vector<1x1x4x32xbf16> to vector<4x32xbf16>
    %cst_16 = arith.constant dense<0.000000e+00> : vector<64x32xf32>
    %11 = tpu.matmul %8, %10, %cst_16 {dimension_numbers = #tpu.dot_dimension_numbers<[1], [0], [0], [1], [0, 0, 1, 1], [], []>} : vector<64x4xbf16>, vector<4x32xbf16>, vector<64x32xf32> -> vector<64x32xf32>
    %12 = arith.addf %6, %11 : vector<64x32xf32>
    %c0_17 = arith.constant 0 : index
    %c0_18 = arith.constant 0 : index
    %c0_19 = arith.constant 0 : index
    %c1_20 = arith.constant 1 : index
    %c0_21 = arith.constant 0 : index
    %13 = vector.load %arg1[%c0_17, %c0_18, %c0_19, %c1_20, %c0_21] : memref<1x9x2x9x8xbf16, #tpu.memory_space<vmem>>, vector<1x8x1x8x4xbf16>
    %14 = vector.shape_cast %13 : vector<1x8x1x8x4xbf16> to vector<64x4xbf16>
    %c0_22 = arith.constant 0 : index
    %c2 = arith.constant 2 : index
    %c0_23 = arith.constant 0 : index
    %c0_24 = arith.constant 0 : index
    %15 = vector.load %arg2[%c0_22, %c2, %c0_23, %c0_24] : memref<3x3x4x32xbf16, #tpu.memory_space<vmem>>, vector<1x1x4x32xbf16>
    %16 = vector.shape_cast %15 : vector<1x1x4x32xbf16> to vector<4x32xbf16>
    %cst_25 = arith.constant dense<0.000000e+00> : vector<64x32xf32>
    %17 = tpu.matmul %14, %16, %cst_25 {dimension_numbers = #tpu.dot_dimension_numbers<[1], [0], [0], [1], [0, 0, 1, 1], [], []>} : vector<64x4xbf16>, vector<4x32xbf16>, vector<64x32xf32> -> vector<64x32xf32>
    %18 = arith.addf %12, %17 : vector<64x32xf32>
    %c0_26 = arith.constant 0 : index
    %c0_27 = arith.constant 0 : index
    %c1_28 = arith.constant 1 : index
    %c0_29 = arith.constant 0 : index
    %c0_30 = arith.constant 0 : index
    %19 = vector.load %arg1[%c0_26, %c0_27, %c1_28, %c0_29, %c0_30] : memref<1x9x2x9x8xbf16, #tpu.memory_space<vmem>>, vector<1x8x1x8x4xbf16>
    %20 = vector.shape_cast %19 : vector<1x8x1x8x4xbf16> to vector<64x4xbf16>
    %c1_31 = arith.constant 1 : index
    %c0_32 = arith.constant 0 : index
    %c0_33 = arith.constant 0 : index
    %c0_34 = arith.constant 0 : index
    %21 = vector.load %arg2[%c1_31, %c0_32, %c0_33, %c0_34] : memref<3x3x4x32xbf16, #tpu.memory_space<vmem>>, vector<1x1x4x32xbf16>
    %22 = vector.shape_cast %21 : vector<1x1x4x32xbf16> to vector<4x32xbf16>
    %cst_35 = arith.constant dense<0.000000e+00> : vector<64x32xf32>
    %23 = tpu.matmul %20, %22, %cst_35 {dimension_numbers = #tpu.dot_dimension_numbers<[1], [0], [0], [1], [0, 0, 1, 1], [], []>} : vector<64x4xbf16>, vector<4x32xbf16>, vector<64x32xf32> -> vector<64x32xf32>
    %24 = arith.addf %18, %23 : vector<64x32xf32>
    %c0_36 = arith.constant 0 : index
    %c0_37 = arith.constant 0 : index
    %c1_38 = arith.constant 1 : index
    %c0_39 = arith.constant 0 : index
    %c4_40 = arith.constant 4 : index
    %25 = vector.load %arg1[%c0_36, %c0_37, %c1_38, %c0_39, %c4_40] : memref<1x9x2x9x8xbf16, #tpu.memory_space<vmem>>, vector<1x8x1x8x4xbf16>
    %26 = vector.shape_cast %25 : vector<1x8x1x8x4xbf16> to vector<64x4xbf16>
    %c1_41 = arith.constant 1 : index
    %c1_42 = arith.constant 1 : index
    %c0_43 = arith.constant 0 : index
    %c0_44 = arith.constant 0 : index
    %27 = vector.load %arg2[%c1_41, %c1_42, %c0_43, %c0_44] : memref<3x3x4x32xbf16, #tpu.memory_space<vmem>>, vector<1x1x4x32xbf16>
    %28 = vector.shape_cast %27 : vector<1x1x4x32xbf16> to vector<4x32xbf16>
    %cst_45 = arith.constant dense<0.000000e+00> : vector<64x32xf32>
    %29 = tpu.matmul %26, %28, %cst_45 {dimension_numbers = #tpu.dot_dimension_numbers<[1], [0], [0], [1], [0, 0, 1, 1], [], []>} : vector<64x4xbf16>, vector<4x32xbf16>, vector<64x32xf32> -> vector<64x32xf32>
    %30 = arith.addf %24, %29 : vector<64x32xf32>
    %c0_46 = arith.constant 0 : index
    %c0_47 = arith.constant 0 : index
    %c1_48 = arith.constant 1 : index
    %c1_49 = arith.constant 1 : index
    %c0_50 = arith.constant 0 : index
    %31 = vector.load %arg1[%c0_46, %c0_47, %c1_48, %c1_49, %c0_50] : memref<1x9x2x9x8xbf16, #tpu.memory_space<vmem>>, vector<1x8x1x8x4xbf16>
    %32 = vector.shape_cast %31 : vector<1x8x1x8x4xbf16> to vector<64x4xbf16>
    %c1_51 = arith.constant 1 : index
    %c2_52 = arith.constant 2 : index
    %c0_53 = arith.constant 0 : index
    %c0_54 = arith.constant 0 : index
    %33 = vector.load %arg2[%c1_51, %c2_52, %c0_53, %c0_54] : memref<3x3x4x32xbf16, #tpu.memory_space<vmem>>, vector<1x1x4x32xbf16>
    %34 = vector.shape_cast %33 : vector<1x1x4x32xbf16> to vector<4x32xbf16>
    %cst_55 = arith.constant dense<0.000000e+00> : vector<64x32xf32>
    %35 = tpu.matmul %32, %34, %cst_55 {dimension_numbers = #tpu.dot_dimension_numbers<[1], [0], [0], [1], [0, 0, 1, 1], [], []>} : vector<64x4xbf16>, vector<4x32xbf16>, vector<64x32xf32> -> vector<64x32xf32>
    %36 = arith.addf %30, %35 : vector<64x32xf32>
    %c0_56 = arith.constant 0 : index
    %c1_57 = arith.constant 1 : index
    %c0_58 = arith.constant 0 : index
    %c0_59 = arith.constant 0 : index
    %c0_60 = arith.constant 0 : index
    %37 = vector.load %arg1[%c0_56, %c1_57, %c0_58, %c0_59, %c0_60] : memref<1x9x2x9x8xbf16, #tpu.memory_space<vmem>>, vector<1x8x1x8x4xbf16>
    %38 = vector.shape_cast %37 : vector<1x8x1x8x4xbf16> to vector<64x4xbf16>
    %c2_61 = arith.constant 2 : index
    %c0_62 = arith.constant 0 : index
    %c0_63 = arith.constant 0 : index
    %c0_64 = arith.constant 0 : index
    %39 = vector.load %arg2[%c2_61, %c0_62, %c0_63, %c0_64] : memref<3x3x4x32xbf16, #tpu.memory_space<vmem>>, vector<1x1x4x32xbf16>
    %40 = vector.shape_cast %39 : vector<1x1x4x32xbf16> to vector<4x32xbf16>
    %cst_65 = arith.constant dense<0.000000e+00> : vector<64x32xf32>
    %41 = tpu.matmul %38, %40, %cst_65 {dimension_numbers = #tpu.dot_dimension_numbers<[1], [0], [0], [1], [0, 0, 1, 1], [], []>} : vector<64x4xbf16>, vector<4x32xbf16>, vector<64x32xf32> -> vector<64x32xf32>
    %42 = arith.addf %36, %41 : vector<64x32xf32>
    %c0_66 = arith.constant 0 : index
    %c1_67 = arith.constant 1 : index
    %c0_68 = arith.constant 0 : index
    %c0_69 = arith.constant 0 : index
    %c4_70 = arith.constant 4 : index
    %43 = vector.load %arg1[%c0_66, %c1_67, %c0_68, %c0_69, %c4_70] : memref<1x9x2x9x8xbf16, #tpu.memory_space<vmem>>, vector<1x8x1x8x4xbf16>
    %44 = vector.shape_cast %43 : vector<1x8x1x8x4xbf16> to vector<64x4xbf16>
    %c2_71 = arith.constant 2 : index
    %c1_72 = arith.constant 1 : index
    %c0_73 = arith.constant 0 : index
    %c0_74 = arith.constant 0 : index
    %45 = vector.load %arg2[%c2_71, %c1_72, %c0_73, %c0_74] : memref<3x3x4x32xbf16, #tpu.memory_space<vmem>>, vector<1x1x4x32xbf16>
    %46 = vector.shape_cast %45 : vector<1x1x4x32xbf16> to vector<4x32xbf16>
    %cst_75 = arith.constant dense<0.000000e+00> : vector<64x32xf32>
    %47 = tpu.matmul %44, %46, %cst_75 {dimension_numbers = #tpu.dot_dimension_numbers<[1], [0], [0], [1], [0, 0, 1, 1], [], []>} : vector<64x4xbf16>, vector<4x32xbf16>, vector<64x32xf32> -> vector<64x32xf32>
    %48 = arith.addf %42, %47 : vector<64x32xf32>
    %c0_76 = arith.constant 0 : index
    %c1_77 = arith.constant 1 : index
    %c0_78 = arith.constant 0 : index
    %c1_79 = arith.constant 1 : index
    %c0_80 = arith.constant 0 : index
    %49 = vector.load %arg1[%c0_76, %c1_77, %c0_78, %c1_79, %c0_80] : memref<1x9x2x9x8xbf16, #tpu.memory_space<vmem>>, vector<1x8x1x8x4xbf16>
    %50 = vector.shape_cast %49 : vector<1x8x1x8x4xbf16> to vector<64x4xbf16>
    %c2_81 = arith.constant 2 : index
    %c2_82 = arith.constant 2 : index
    %c0_83 = arith.constant 0 : index
    %c0_84 = arith.constant 0 : index
    %51 = vector.load %arg2[%c2_81, %c2_82, %c0_83, %c0_84] : memref<3x3x4x32xbf16, #tpu.memory_space<vmem>>, vector<1x1x4x32xbf16>
    %52 = vector.shape_cast %51 : vector<1x1x4x32xbf16> to vector<4x32xbf16>
    %cst_85 = arith.constant dense<0.000000e+00> : vector<64x32xf32>
    %53 = tpu.matmul %50, %52, %cst_85 {dimension_numbers = #tpu.dot_dimension_numbers<[1], [0], [0], [1], [0, 0, 1, 1], [], []>} : vector<64x4xbf16>, vector<4x32xbf16>, vector<64x32xf32> -> vector<64x32xf32>
    %54 = arith.addf %48, %53 : vector<64x32xf32>
    %c0_86 = arith.constant 0 : index
    %c0_87 = arith.constant 0 : index
    %55 = vector.load %arg3[%c0_86, %c0_87] : memref<1x32xf32, #tpu.memory_space<vmem>>, vector<1x32xf32>
    %56 = vector.broadcast %55 : vector<1x32xf32> to vector<64x32xf32>
    %57 = arith.addf %54, %56 : vector<64x32xf32>
    %cst_88 = arith.constant 0.000000e+00 : f32
    %58 = vector.broadcast %cst_88 : f32 to vector<64x32xf32>
    %59 = arith.maximumf %57, %58 : vector<64x32xf32>
    %60 = vector.shape_cast %59 : vector<64x32xf32> to vector<1x8x8x32xf32>
    %61 = arith.truncf %60 : vector<1x8x8x32xf32> to vector<1x8x8x32xbf16>
    %c0_89 = arith.constant 0 : index
    %c0_90 = arith.constant 0 : index
    %c0_91 = arith.constant 0 : index
    %c0_92 = arith.constant 0 : index
    %62 = vector.load %arg4[%c0_89, %c0_90, %c0_91, %c0_92] : memref<1x8x8x32xbf16, #tpu.memory_space<vmem>>, vector<1x8x8x32xbf16>
    tpu.vector_store %arg4[%c0_89, %c0_90, %c0_91, %c0_92], %61 {strides = array<i32>} : memref<1x8x8x32xbf16, #tpu.memory_space<vmem>>, vector<1x8x8x32xbf16>,
    return
  }
  func.func @transform_0(%arg0: i32) -> (i32, i32, i32, i32, i32) {
    %c0_i32 = arith.constant 0 : i32
    %c0_i32_0 = arith.constant 0 : i32
    %c0_i32_1 = arith.constant 0 : i32
    %c0_i32_2 = arith.constant 0 : i32
    %c0_i32_3 = arith.constant 0 : i32
    return %arg0, %c0_i32, %c0_i32_0, %c0_i32_1, %c0_i32_2 : i32, i32, i32, i32, i32
  }
  func.func @transform_1(%arg0: i32) -> (i32, i32, i32, i32) {
    %c0_i32 = arith.constant 0 : i32
    %c0_i32_0 = arith.constant 0 : i32
    %c0_i32_1 = arith.constant 0 : i32
    %c0_i32_2 = arith.constant 0 : i32
    %c0_i32_3 = arith.constant 0 : i32
    return %c0_i32, %c0_i32_0, %c0_i32_1, %c0_i32_2 : i32, i32, i32, i32
  }
  func.func @transform_2(%arg0: i32) -> (i32, i32) {
    %c0_i32 = arith.constant 0 : i32
    %c0_i32_0 = arith.constant 0 : i32
    %c0_i32_1 = arith.constant 0 : i32
    return %c0_i32, %c0_i32_0 : i32, i32
  }
  func.func @transform_3(%arg0: i32) -> (i32, i32, i32, i32) {
    %c0_i32 = arith.constant 0 : i32
    %c0_i32_0 = arith.constant 0 : i32
    %c0_i32_1 = arith.constant 0 : i32
    %c0_i32_2 = arith.constant 0 : i32
    return %arg0, %c0_i32, %c0_i32_0, %c0_i32_1 : i32, i32, i32, i32
  }
}

module attributes {stable_mosaic.version = 11 : i64} {
  func.func @_conv3x3_relu_kernel(%arg0: i32, %arg1: memref<1x5x2x5x64xbf16, #tpu.memory_space<vmem>>, %arg2: memref<3x3x32x64xbf16, #tpu.memory_space<vmem>>, %arg3: memref<1x64xf32, #tpu.memory_space<vmem>>, %arg4: memref<1x4x4x64xbf16, #tpu.memory_space<vmem>>) attributes {dimension_semantics = [#tpu.dimension_semantics<parallel>], iteration_bounds = array<i64: 2>, scalar_prefetch = 0 : i64, scratch_operands = 0 : i64, tpu.core_type = #tpu.core_type<tc>, window_params = [{transform_indices = @transform_0, window_bounds = array<i64: 1, 5, 2, 5, 64>}, {pipeline_mode = #tpu.pipeline_mode<synchronous>, transform_indices = @transform_1, window_bounds = array<i64: 3, 3, 32, 64>}, {pipeline_mode = #tpu.pipeline_mode<synchronous>, transform_indices = @transform_2, window_bounds = array<i64: 1, 64>}, {transform_indices = @transform_3, window_bounds = array<i64: 1, 4, 4, 64>}]} {
    %cst = arith.constant 0.000000e+00 : f32
    %0 = vector.broadcast %cst : f32 to vector<16x64xf32>
    %c0 = arith.constant 0 : index
    %c0_0 = arith.constant 0 : index
    %c0_1 = arith.constant 0 : index
    %c0_2 = arith.constant 0 : index
    %c0_3 = arith.constant 0 : index
    %1 = vector.load %arg1[%c0, %c0_0, %c0_1, %c0_2, %c0_3] : memref<1x5x2x5x64xbf16, #tpu.memory_space<vmem>>, vector<1x4x1x4x32xbf16>
    %2 = vector.shape_cast %1 : vector<1x4x1x4x32xbf16> to vector<16x32xbf16>
    %c0_4 = arith.constant 0 : index
    %c0_5 = arith.constant 0 : index
    %c0_6 = arith.constant 0 : index
    %c0_7 = arith.constant 0 : index
    %3 = vector.load %arg2[%c0_4, %c0_5, %c0_6, %c0_7] : memref<3x3x32x64xbf16, #tpu.memory_space<vmem>>, vector<1x1x32x64xbf16>
    %4 = vector.shape_cast %3 : vector<1x1x32x64xbf16> to vector<32x64xbf16>
    %cst_8 = arith.constant dense<0.000000e+00> : vector<16x64xf32>
    %5 = tpu.matmul %2, %4, %cst_8 {dimension_numbers = #tpu.dot_dimension_numbers<[1], [0], [0], [1], [0, 0, 1, 1], [], []>} : vector<16x32xbf16>, vector<32x64xbf16>, vector<16x64xf32> -> vector<16x64xf32>
    %6 = arith.addf %0, %5 : vector<16x64xf32>
    %c0_9 = arith.constant 0 : index
    %c0_10 = arith.constant 0 : index
    %c0_11 = arith.constant 0 : index
    %c0_12 = arith.constant 0 : index
    %c32 = arith.constant 32 : index
    %7 = vector.load %arg1[%c0_9, %c0_10, %c0_11, %c0_12, %c32] : memref<1x5x2x5x64xbf16, #tpu.memory_space<vmem>>, vector<1x4x1x4x32xbf16>
    %8 = vector.shape_cast %7 : vector<1x4x1x4x32xbf16> to vector<16x32xbf16>
    %c0_13 = arith.constant 0 : index
    %c1 = arith.constant 1 : index
    %c0_14 = arith.constant 0 : index
    %c0_15 = arith.constant 0 : index
    %9 = vector.load %arg2[%c0_13, %c1, %c0_14, %c0_15] : memref<3x3x32x64xbf16, #tpu.memory_space<vmem>>, vector<1x1x32x64xbf16>
    %10 = vector.shape_cast %9 : vector<1x1x32x64xbf16> to vector<32x64xbf16>
    %cst_16 = arith.constant dense<0.000000e+00> : vector<16x64xf32>
    %11 = tpu.matmul %8, %10, %cst_16 {dimension_numbers = #tpu.dot_dimension_numbers<[1], [0], [0], [1], [0, 0, 1, 1], [], []>} : vector<16x32xbf16>, vector<32x64xbf16>, vector<16x64xf32> -> vector<16x64xf32>
    %12 = arith.addf %6, %11 : vector<16x64xf32>
    %c0_17 = arith.constant 0 : index
    %c0_18 = arith.constant 0 : index
    %c0_19 = arith.constant 0 : index
    %c1_20 = arith.constant 1 : index
    %c0_21 = arith.constant 0 : index
    %13 = vector.load %arg1[%c0_17, %c0_18, %c0_19, %c1_20, %c0_21] : memref<1x5x2x5x64xbf16, #tpu.memory_space<vmem>>, vector<1x4x1x4x32xbf16>
    %14 = vector.shape_cast %13 : vector<1x4x1x4x32xbf16> to vector<16x32xbf16>
    %c0_22 = arith.constant 0 : index
    %c2 = arith.constant 2 : index
    %c0_23 = arith.constant 0 : index
    %c0_24 = arith.constant 0 : index
    %15 = vector.load %arg2[%c0_22, %c2, %c0_23, %c0_24] : memref<3x3x32x64xbf16, #tpu.memory_space<vmem>>, vector<1x1x32x64xbf16>
    %16 = vector.shape_cast %15 : vector<1x1x32x64xbf16> to vector<32x64xbf16>
    %cst_25 = arith.constant dense<0.000000e+00> : vector<16x64xf32>
    %17 = tpu.matmul %14, %16, %cst_25 {dimension_numbers = #tpu.dot_dimension_numbers<[1], [0], [0], [1], [0, 0, 1, 1], [], []>} : vector<16x32xbf16>, vector<32x64xbf16>, vector<16x64xf32> -> vector<16x64xf32>
    %18 = arith.addf %12, %17 : vector<16x64xf32>
    %c0_26 = arith.constant 0 : index
    %c0_27 = arith.constant 0 : index
    %c1_28 = arith.constant 1 : index
    %c0_29 = arith.constant 0 : index
    %c0_30 = arith.constant 0 : index
    %19 = vector.load %arg1[%c0_26, %c0_27, %c1_28, %c0_29, %c0_30] : memref<1x5x2x5x64xbf16, #tpu.memory_space<vmem>>, vector<1x4x1x4x32xbf16>
    %20 = vector.shape_cast %19 : vector<1x4x1x4x32xbf16> to vector<16x32xbf16>
    %c1_31 = arith.constant 1 : index
    %c0_32 = arith.constant 0 : index
    %c0_33 = arith.constant 0 : index
    %c0_34 = arith.constant 0 : index
    %21 = vector.load %arg2[%c1_31, %c0_32, %c0_33, %c0_34] : memref<3x3x32x64xbf16, #tpu.memory_space<vmem>>, vector<1x1x32x64xbf16>
    %22 = vector.shape_cast %21 : vector<1x1x32x64xbf16> to vector<32x64xbf16>
    %cst_35 = arith.constant dense<0.000000e+00> : vector<16x64xf32>
    %23 = tpu.matmul %20, %22, %cst_35 {dimension_numbers = #tpu.dot_dimension_numbers<[1], [0], [0], [1], [0, 0, 1, 1], [], []>} : vector<16x32xbf16>, vector<32x64xbf16>, vector<16x64xf32> -> vector<16x64xf32>
    %24 = arith.addf %18, %23 : vector<16x64xf32>
    %c0_36 = arith.constant 0 : index
    %c0_37 = arith.constant 0 : index
    %c1_38 = arith.constant 1 : index
    %c0_39 = arith.constant 0 : index
    %c32_40 = arith.constant 32 : index
    %25 = vector.load %arg1[%c0_36, %c0_37, %c1_38, %c0_39, %c32_40] : memref<1x5x2x5x64xbf16, #tpu.memory_space<vmem>>, vector<1x4x1x4x32xbf16>
    %26 = vector.shape_cast %25 : vector<1x4x1x4x32xbf16> to vector<16x32xbf16>
    %c1_41 = arith.constant 1 : index
    %c1_42 = arith.constant 1 : index
    %c0_43 = arith.constant 0 : index
    %c0_44 = arith.constant 0 : index
    %27 = vector.load %arg2[%c1_41, %c1_42, %c0_43, %c0_44] : memref<3x3x32x64xbf16, #tpu.memory_space<vmem>>, vector<1x1x32x64xbf16>
    %28 = vector.shape_cast %27 : vector<1x1x32x64xbf16> to vector<32x64xbf16>
    %cst_45 = arith.constant dense<0.000000e+00> : vector<16x64xf32>
    %29 = tpu.matmul %26, %28, %cst_45 {dimension_numbers = #tpu.dot_dimension_numbers<[1], [0], [0], [1], [0, 0, 1, 1], [], []>} : vector<16x32xbf16>, vector<32x64xbf16>, vector<16x64xf32> -> vector<16x64xf32>
    %30 = arith.addf %24, %29 : vector<16x64xf32>
    %c0_46 = arith.constant 0 : index
    %c0_47 = arith.constant 0 : index
    %c1_48 = arith.constant 1 : index
    %c1_49 = arith.constant 1 : index
    %c0_50 = arith.constant 0 : index
    %31 = vector.load %arg1[%c0_46, %c0_47, %c1_48, %c1_49, %c0_50] : memref<1x5x2x5x64xbf16, #tpu.memory_space<vmem>>, vector<1x4x1x4x32xbf16>
    %32 = vector.shape_cast %31 : vector<1x4x1x4x32xbf16> to vector<16x32xbf16>
    %c1_51 = arith.constant 1 : index
    %c2_52 = arith.constant 2 : index
    %c0_53 = arith.constant 0 : index
    %c0_54 = arith.constant 0 : index
    %33 = vector.load %arg2[%c1_51, %c2_52, %c0_53, %c0_54] : memref<3x3x32x64xbf16, #tpu.memory_space<vmem>>, vector<1x1x32x64xbf16>
    %34 = vector.shape_cast %33 : vector<1x1x32x64xbf16> to vector<32x64xbf16>
    %cst_55 = arith.constant dense<0.000000e+00> : vector<16x64xf32>
    %35 = tpu.matmul %32, %34, %cst_55 {dimension_numbers = #tpu.dot_dimension_numbers<[1], [0], [0], [1], [0, 0, 1, 1], [], []>} : vector<16x32xbf16>, vector<32x64xbf16>, vector<16x64xf32> -> vector<16x64xf32>
    %36 = arith.addf %30, %35 : vector<16x64xf32>
    %c0_56 = arith.constant 0 : index
    %c1_57 = arith.constant 1 : index
    %c0_58 = arith.constant 0 : index
    %c0_59 = arith.constant 0 : index
    %c0_60 = arith.constant 0 : index
    %37 = vector.load %arg1[%c0_56, %c1_57, %c0_58, %c0_59, %c0_60] : memref<1x5x2x5x64xbf16, #tpu.memory_space<vmem>>, vector<1x4x1x4x32xbf16>
    %38 = vector.shape_cast %37 : vector<1x4x1x4x32xbf16> to vector<16x32xbf16>
    %c2_61 = arith.constant 2 : index
    %c0_62 = arith.constant 0 : index
    %c0_63 = arith.constant 0 : index
    %c0_64 = arith.constant 0 : index
    %39 = vector.load %arg2[%c2_61, %c0_62, %c0_63, %c0_64] : memref<3x3x32x64xbf16, #tpu.memory_space<vmem>>, vector<1x1x32x64xbf16>
    %40 = vector.shape_cast %39 : vector<1x1x32x64xbf16> to vector<32x64xbf16>
    %cst_65 = arith.constant dense<0.000000e+00> : vector<16x64xf32>
    %41 = tpu.matmul %38, %40, %cst_65 {dimension_numbers = #tpu.dot_dimension_numbers<[1], [0], [0], [1], [0, 0, 1, 1], [], []>} : vector<16x32xbf16>, vector<32x64xbf16>, vector<16x64xf32> -> vector<16x64xf32>
    %42 = arith.addf %36, %41 : vector<16x64xf32>
    %c0_66 = arith.constant 0 : index
    %c1_67 = arith.constant 1 : index
    %c0_68 = arith.constant 0 : index
    %c0_69 = arith.constant 0 : index
    %c32_70 = arith.constant 32 : index
    %43 = vector.load %arg1[%c0_66, %c1_67, %c0_68, %c0_69, %c32_70] : memref<1x5x2x5x64xbf16, #tpu.memory_space<vmem>>, vector<1x4x1x4x32xbf16>
    %44 = vector.shape_cast %43 : vector<1x4x1x4x32xbf16> to vector<16x32xbf16>
    %c2_71 = arith.constant 2 : index
    %c1_72 = arith.constant 1 : index
    %c0_73 = arith.constant 0 : index
    %c0_74 = arith.constant 0 : index
    %45 = vector.load %arg2[%c2_71, %c1_72, %c0_73, %c0_74] : memref<3x3x32x64xbf16, #tpu.memory_space<vmem>>, vector<1x1x32x64xbf16>
    %46 = vector.shape_cast %45 : vector<1x1x32x64xbf16> to vector<32x64xbf16>
    %cst_75 = arith.constant dense<0.000000e+00> : vector<16x64xf32>
    %47 = tpu.matmul %44, %46, %cst_75 {dimension_numbers = #tpu.dot_dimension_numbers<[1], [0], [0], [1], [0, 0, 1, 1], [], []>} : vector<16x32xbf16>, vector<32x64xbf16>, vector<16x64xf32> -> vector<16x64xf32>
    %48 = arith.addf %42, %47 : vector<16x64xf32>
    %c0_76 = arith.constant 0 : index
    %c1_77 = arith.constant 1 : index
    %c0_78 = arith.constant 0 : index
    %c1_79 = arith.constant 1 : index
    %c0_80 = arith.constant 0 : index
    %49 = vector.load %arg1[%c0_76, %c1_77, %c0_78, %c1_79, %c0_80] : memref<1x5x2x5x64xbf16, #tpu.memory_space<vmem>>, vector<1x4x1x4x32xbf16>
    %50 = vector.shape_cast %49 : vector<1x4x1x4x32xbf16> to vector<16x32xbf16>
    %c2_81 = arith.constant 2 : index
    %c2_82 = arith.constant 2 : index
    %c0_83 = arith.constant 0 : index
    %c0_84 = arith.constant 0 : index
    %51 = vector.load %arg2[%c2_81, %c2_82, %c0_83, %c0_84] : memref<3x3x32x64xbf16, #tpu.memory_space<vmem>>, vector<1x1x32x64xbf16>
    %52 = vector.shape_cast %51 : vector<1x1x32x64xbf16> to vector<32x64xbf16>
    %cst_85 = arith.constant dense<0.000000e+00> : vector<16x64xf32>
    %53 = tpu.matmul %50, %52, %cst_85 {dimension_numbers = #tpu.dot_dimension_numbers<[1], [0], [0], [1], [0, 0, 1, 1], [], []>} : vector<16x32xbf16>, vector<32x64xbf16>, vector<16x64xf32> -> vector<16x64xf32>
    %54 = arith.addf %48, %53 : vector<16x64xf32>
    %c0_86 = arith.constant 0 : index
    %c0_87 = arith.constant 0 : index
    %55 = vector.load %arg3[%c0_86, %c0_87] : memref<1x64xf32, #tpu.memory_space<vmem>>, vector<1x64xf32>
    %56 = vector.broadcast %55 : vector<1x64xf32> to vector<16x64xf32>
    %57 = arith.addf %54, %56 : vector<16x64xf32>
    %cst_88 = arith.constant 0.000000e+00 : f32
    %58 = vector.broadcast %cst_88 : f32 to vector<16x64xf32>
    %59 = arith.maximumf %57, %58 : vector<16x64xf32>
    %60 = vector.shape_cast %59 : vector<16x64xf32> to vector<1x4x4x64xf32>
    %61 = arith.truncf %60 : vector<1x4x4x64xf32> to vector<1x4x4x64xbf16>
    %c0_89 = arith.constant 0 : index
    %c0_90 = arith.constant 0 : index
    %c0_91 = arith.constant 0 : index
    %c0_92 = arith.constant 0 : index
    %62 = vector.load %arg4[%c0_89, %c0_90, %c0_91, %c0_92] : memref<1x4x4x64xbf16, #tpu.memory_space<vmem>>, vector<1x4x4x64xbf16>
    tpu.vector_store %arg4[%c0_89, %c0_90, %c0_91, %c0_92], %61 {strides = array<i32>} : memref<1x4x4x64xbf16, #tpu.memory_space<vmem>>, vector<1x4x4x64xbf16>,
    return
  }
  func.func @transform_0(%arg0: i32) -> (i32, i32, i32, i32, i32) {
    %c0_i32 = arith.constant 0 : i32
    %c0_i32_0 = arith.constant 0 : i32
    %c0_i32_1 = arith.constant 0 : i32
    %c0_i32_2 = arith.constant 0 : i32
    %c0_i32_3 = arith.constant 0 : i32
    return %arg0, %c0_i32, %c0_i32_0, %c0_i32_1, %c0_i32_2 : i32, i32, i32, i32, i32
  }
  func.func @transform_1(%arg0: i32) -> (i32, i32, i32, i32) {
    %c0_i32 = arith.constant 0 : i32
    %c0_i32_0 = arith.constant 0 : i32
    %c0_i32_1 = arith.constant 0 : i32
    %c0_i32_2 = arith.constant 0 : i32
    %c0_i32_3 = arith.constant 0 : i32
    return %c0_i32, %c0_i32_0, %c0_i32_1, %c0_i32_2 : i32, i32, i32, i32
  }
  func.func @transform_2(%arg0: i32) -> (i32, i32) {
    %c0_i32 = arith.constant 0 : i32
    %c0_i32_0 = arith.constant 0 : i32
    %c0_i32_1 = arith.constant 0 : i32
    return %c0_i32, %c0_i32_0 : i32, i32
  }
  func.func @transform_3(%arg0: i32) -> (i32, i32, i32, i32) {
    %c0_i32 = arith.constant 0 : i32
    %c0_i32_0 = arith.constant 0 : i32
    %c0_i32_1 = arith.constant 0 : i32
    %c0_i32_2 = arith.constant 0 : i32
    return %arg0, %c0_i32, %c0_i32_0, %c0_i32_1 : i32, i32, i32, i32
  }
}

module attributes {stable_mosaic.version = 11 : i64} {
  func.func @_conv3x3_relu_kernel(%arg0: i32, %arg1: memref<1x3x2x3x128xbf16, #tpu.memory_space<vmem>>, %arg2: memref<3x3x64x64xbf16, #tpu.memory_space<vmem>>, %arg3: memref<1x64xf32, #tpu.memory_space<vmem>>, %arg4: memref<1x2x2x64xbf16, #tpu.memory_space<vmem>>) attributes {dimension_semantics = [#tpu.dimension_semantics<parallel>], iteration_bounds = array<i64: 2>, scalar_prefetch = 0 : i64, scratch_operands = 0 : i64, tpu.core_type = #tpu.core_type<tc>, window_params = [{transform_indices = @transform_0, window_bounds = array<i64: 1, 3, 2, 3, 128>}, {pipeline_mode = #tpu.pipeline_mode<synchronous>, transform_indices = @transform_1, window_bounds = array<i64: 3, 3, 64, 64>}, {pipeline_mode = #tpu.pipeline_mode<synchronous>, transform_indices = @transform_2, window_bounds = array<i64: 1, 64>}, {transform_indices = @transform_3, window_bounds = array<i64: 1, 2, 2, 64>}]} {
    %cst = arith.constant 0.000000e+00 : f32
    %0 = vector.broadcast %cst : f32 to vector<4x64xf32>
    %c0 = arith.constant 0 : index
    %c0_0 = arith.constant 0 : index
    %c0_1 = arith.constant 0 : index
    %c0_2 = arith.constant 0 : index
    %c0_3 = arith.constant 0 : index
    %1 = vector.load %arg1[%c0, %c0_0, %c0_1, %c0_2, %c0_3] : memref<1x3x2x3x128xbf16, #tpu.memory_space<vmem>>, vector<1x2x1x2x64xbf16>
    %2 = vector.shape_cast %1 : vector<1x2x1x2x64xbf16> to vector<4x64xbf16>
    %c0_4 = arith.constant 0 : index
    %c0_5 = arith.constant 0 : index
    %c0_6 = arith.constant 0 : index
    %c0_7 = arith.constant 0 : index
    %3 = vector.load %arg2[%c0_4, %c0_5, %c0_6, %c0_7] : memref<3x3x64x64xbf16, #tpu.memory_space<vmem>>, vector<1x1x64x64xbf16>
    %4 = vector.shape_cast %3 : vector<1x1x64x64xbf16> to vector<64x64xbf16>
    %cst_8 = arith.constant dense<0.000000e+00> : vector<4x64xf32>
    %5 = tpu.matmul %2, %4, %cst_8 {dimension_numbers = #tpu.dot_dimension_numbers<[1], [0], [0], [1], [0, 0, 1, 1], [], []>} : vector<4x64xbf16>, vector<64x64xbf16>, vector<4x64xf32> -> vector<4x64xf32>
    %6 = arith.addf %0, %5 : vector<4x64xf32>
    %c0_9 = arith.constant 0 : index
    %c0_10 = arith.constant 0 : index
    %c0_11 = arith.constant 0 : index
    %c0_12 = arith.constant 0 : index
    %c64 = arith.constant 64 : index
    %7 = vector.load %arg1[%c0_9, %c0_10, %c0_11, %c0_12, %c64] : memref<1x3x2x3x128xbf16, #tpu.memory_space<vmem>>, vector<1x2x1x2x64xbf16>
    %8 = vector.shape_cast %7 : vector<1x2x1x2x64xbf16> to vector<4x64xbf16>
    %c0_13 = arith.constant 0 : index
    %c1 = arith.constant 1 : index
    %c0_14 = arith.constant 0 : index
    %c0_15 = arith.constant 0 : index
    %9 = vector.load %arg2[%c0_13, %c1, %c0_14, %c0_15] : memref<3x3x64x64xbf16, #tpu.memory_space<vmem>>, vector<1x1x64x64xbf16>
    %10 = vector.shape_cast %9 : vector<1x1x64x64xbf16> to vector<64x64xbf16>
    %cst_16 = arith.constant dense<0.000000e+00> : vector<4x64xf32>
    %11 = tpu.matmul %8, %10, %cst_16 {dimension_numbers = #tpu.dot_dimension_numbers<[1], [0], [0], [1], [0, 0, 1, 1], [], []>} : vector<4x64xbf16>, vector<64x64xbf16>, vector<4x64xf32> -> vector<4x64xf32>
    %12 = arith.addf %6, %11 : vector<4x64xf32>
    %c0_17 = arith.constant 0 : index
    %c0_18 = arith.constant 0 : index
    %c0_19 = arith.constant 0 : index
    %c1_20 = arith.constant 1 : index
    %c0_21 = arith.constant 0 : index
    %13 = vector.load %arg1[%c0_17, %c0_18, %c0_19, %c1_20, %c0_21] : memref<1x3x2x3x128xbf16, #tpu.memory_space<vmem>>, vector<1x2x1x2x64xbf16>
    %14 = vector.shape_cast %13 : vector<1x2x1x2x64xbf16> to vector<4x64xbf16>
    %c0_22 = arith.constant 0 : index
    %c2 = arith.constant 2 : index
    %c0_23 = arith.constant 0 : index
    %c0_24 = arith.constant 0 : index
    %15 = vector.load %arg2[%c0_22, %c2, %c0_23, %c0_24] : memref<3x3x64x64xbf16, #tpu.memory_space<vmem>>, vector<1x1x64x64xbf16>
    %16 = vector.shape_cast %15 : vector<1x1x64x64xbf16> to vector<64x64xbf16>
    %cst_25 = arith.constant dense<0.000000e+00> : vector<4x64xf32>
    %17 = tpu.matmul %14, %16, %cst_25 {dimension_numbers = #tpu.dot_dimension_numbers<[1], [0], [0], [1], [0, 0, 1, 1], [], []>} : vector<4x64xbf16>, vector<64x64xbf16>, vector<4x64xf32> -> vector<4x64xf32>
    %18 = arith.addf %12, %17 : vector<4x64xf32>
    %c0_26 = arith.constant 0 : index
    %c0_27 = arith.constant 0 : index
    %c1_28 = arith.constant 1 : index
    %c0_29 = arith.constant 0 : index
    %c0_30 = arith.constant 0 : index
    %19 = vector.load %arg1[%c0_26, %c0_27, %c1_28, %c0_29, %c0_30] : memref<1x3x2x3x128xbf16, #tpu.memory_space<vmem>>, vector<1x2x1x2x64xbf16>
    %20 = vector.shape_cast %19 : vector<1x2x1x2x64xbf16> to vector<4x64xbf16>
    %c1_31 = arith.constant 1 : index
    %c0_32 = arith.constant 0 : index
    %c0_33 = arith.constant 0 : index
    %c0_34 = arith.constant 0 : index
    %21 = vector.load %arg2[%c1_31, %c0_32, %c0_33, %c0_34] : memref<3x3x64x64xbf16, #tpu.memory_space<vmem>>, vector<1x1x64x64xbf16>
    %22 = vector.shape_cast %21 : vector<1x1x64x64xbf16> to vector<64x64xbf16>
    %cst_35 = arith.constant dense<0.000000e+00> : vector<4x64xf32>
    %23 = tpu.matmul %20, %22, %cst_35 {dimension_numbers = #tpu.dot_dimension_numbers<[1], [0], [0], [1], [0, 0, 1, 1], [], []>} : vector<4x64xbf16>, vector<64x64xbf16>, vector<4x64xf32> -> vector<4x64xf32>
    %24 = arith.addf %18, %23 : vector<4x64xf32>
    %c0_36 = arith.constant 0 : index
    %c0_37 = arith.constant 0 : index
    %c1_38 = arith.constant 1 : index
    %c0_39 = arith.constant 0 : index
    %c64_40 = arith.constant 64 : index
    %25 = vector.load %arg1[%c0_36, %c0_37, %c1_38, %c0_39, %c64_40] : memref<1x3x2x3x128xbf16, #tpu.memory_space<vmem>>, vector<1x2x1x2x64xbf16>
    %26 = vector.shape_cast %25 : vector<1x2x1x2x64xbf16> to vector<4x64xbf16>
    %c1_41 = arith.constant 1 : index
    %c1_42 = arith.constant 1 : index
    %c0_43 = arith.constant 0 : index
    %c0_44 = arith.constant 0 : index
    %27 = vector.load %arg2[%c1_41, %c1_42, %c0_43, %c0_44] : memref<3x3x64x64xbf16, #tpu.memory_space<vmem>>, vector<1x1x64x64xbf16>
    %28 = vector.shape_cast %27 : vector<1x1x64x64xbf16> to vector<64x64xbf16>
    %cst_45 = arith.constant dense<0.000000e+00> : vector<4x64xf32>
    %29 = tpu.matmul %26, %28, %cst_45 {dimension_numbers = #tpu.dot_dimension_numbers<[1], [0], [0], [1], [0, 0, 1, 1], [], []>} : vector<4x64xbf16>, vector<64x64xbf16>, vector<4x64xf32> -> vector<4x64xf32>
    %30 = arith.addf %24, %29 : vector<4x64xf32>
    %c0_46 = arith.constant 0 : index
    %c0_47 = arith.constant 0 : index
    %c1_48 = arith.constant 1 : index
    %c1_49 = arith.constant 1 : index
    %c0_50 = arith.constant 0 : index
    %31 = vector.load %arg1[%c0_46, %c0_47, %c1_48, %c1_49, %c0_50] : memref<1x3x2x3x128xbf16, #tpu.memory_space<vmem>>, vector<1x2x1x2x64xbf16>
    %32 = vector.shape_cast %31 : vector<1x2x1x2x64xbf16> to vector<4x64xbf16>
    %c1_51 = arith.constant 1 : index
    %c2_52 = arith.constant 2 : index
    %c0_53 = arith.constant 0 : index
    %c0_54 = arith.constant 0 : index
    %33 = vector.load %arg2[%c1_51, %c2_52, %c0_53, %c0_54] : memref<3x3x64x64xbf16, #tpu.memory_space<vmem>>, vector<1x1x64x64xbf16>
    %34 = vector.shape_cast %33 : vector<1x1x64x64xbf16> to vector<64x64xbf16>
    %cst_55 = arith.constant dense<0.000000e+00> : vector<4x64xf32>
    %35 = tpu.matmul %32, %34, %cst_55 {dimension_numbers = #tpu.dot_dimension_numbers<[1], [0], [0], [1], [0, 0, 1, 1], [], []>} : vector<4x64xbf16>, vector<64x64xbf16>, vector<4x64xf32> -> vector<4x64xf32>
    %36 = arith.addf %30, %35 : vector<4x64xf32>
    %c0_56 = arith.constant 0 : index
    %c1_57 = arith.constant 1 : index
    %c0_58 = arith.constant 0 : index
    %c0_59 = arith.constant 0 : index
    %c0_60 = arith.constant 0 : index
    %37 = vector.load %arg1[%c0_56, %c1_57, %c0_58, %c0_59, %c0_60] : memref<1x3x2x3x128xbf16, #tpu.memory_space<vmem>>, vector<1x2x1x2x64xbf16>
    %38 = vector.shape_cast %37 : vector<1x2x1x2x64xbf16> to vector<4x64xbf16>
    %c2_61 = arith.constant 2 : index
    %c0_62 = arith.constant 0 : index
    %c0_63 = arith.constant 0 : index
    %c0_64 = arith.constant 0 : index
    %39 = vector.load %arg2[%c2_61, %c0_62, %c0_63, %c0_64] : memref<3x3x64x64xbf16, #tpu.memory_space<vmem>>, vector<1x1x64x64xbf16>
    %40 = vector.shape_cast %39 : vector<1x1x64x64xbf16> to vector<64x64xbf16>
    %cst_65 = arith.constant dense<0.000000e+00> : vector<4x64xf32>
    %41 = tpu.matmul %38, %40, %cst_65 {dimension_numbers = #tpu.dot_dimension_numbers<[1], [0], [0], [1], [0, 0, 1, 1], [], []>} : vector<4x64xbf16>, vector<64x64xbf16>, vector<4x64xf32> -> vector<4x64xf32>
    %42 = arith.addf %36, %41 : vector<4x64xf32>
    %c0_66 = arith.constant 0 : index
    %c1_67 = arith.constant 1 : index
    %c0_68 = arith.constant 0 : index
    %c0_69 = arith.constant 0 : index
    %c64_70 = arith.constant 64 : index
    %43 = vector.load %arg1[%c0_66, %c1_67, %c0_68, %c0_69, %c64_70] : memref<1x3x2x3x128xbf16, #tpu.memory_space<vmem>>, vector<1x2x1x2x64xbf16>
    %44 = vector.shape_cast %43 : vector<1x2x1x2x64xbf16> to vector<4x64xbf16>
    %c2_71 = arith.constant 2 : index
    %c1_72 = arith.constant 1 : index
    %c0_73 = arith.constant 0 : index
    %c0_74 = arith.constant 0 : index
    %45 = vector.load %arg2[%c2_71, %c1_72, %c0_73, %c0_74] : memref<3x3x64x64xbf16, #tpu.memory_space<vmem>>, vector<1x1x64x64xbf16>
    %46 = vector.shape_cast %45 : vector<1x1x64x64xbf16> to vector<64x64xbf16>
    %cst_75 = arith.constant dense<0.000000e+00> : vector<4x64xf32>
    %47 = tpu.matmul %44, %46, %cst_75 {dimension_numbers = #tpu.dot_dimension_numbers<[1], [0], [0], [1], [0, 0, 1, 1], [], []>} : vector<4x64xbf16>, vector<64x64xbf16>, vector<4x64xf32> -> vector<4x64xf32>
    %48 = arith.addf %42, %47 : vector<4x64xf32>
    %c0_76 = arith.constant 0 : index
    %c1_77 = arith.constant 1 : index
    %c0_78 = arith.constant 0 : index
    %c1_79 = arith.constant 1 : index
    %c0_80 = arith.constant 0 : index
    %49 = vector.load %arg1[%c0_76, %c1_77, %c0_78, %c1_79, %c0_80] : memref<1x3x2x3x128xbf16, #tpu.memory_space<vmem>>, vector<1x2x1x2x64xbf16>
    %50 = vector.shape_cast %49 : vector<1x2x1x2x64xbf16> to vector<4x64xbf16>
    %c2_81 = arith.constant 2 : index
    %c2_82 = arith.constant 2 : index
    %c0_83 = arith.constant 0 : index
    %c0_84 = arith.constant 0 : index
    %51 = vector.load %arg2[%c2_81, %c2_82, %c0_83, %c0_84] : memref<3x3x64x64xbf16, #tpu.memory_space<vmem>>, vector<1x1x64x64xbf16>
    %52 = vector.shape_cast %51 : vector<1x1x64x64xbf16> to vector<64x64xbf16>
    %cst_85 = arith.constant dense<0.000000e+00> : vector<4x64xf32>
    %53 = tpu.matmul %50, %52, %cst_85 {dimension_numbers = #tpu.dot_dimension_numbers<[1], [0], [0], [1], [0, 0, 1, 1], [], []>} : vector<4x64xbf16>, vector<64x64xbf16>, vector<4x64xf32> -> vector<4x64xf32>
    %54 = arith.addf %48, %53 : vector<4x64xf32>
    %c0_86 = arith.constant 0 : index
    %c0_87 = arith.constant 0 : index
    %55 = vector.load %arg3[%c0_86, %c0_87] : memref<1x64xf32, #tpu.memory_space<vmem>>, vector<1x64xf32>
    %56 = vector.broadcast %55 : vector<1x64xf32> to vector<4x64xf32>
    %57 = arith.addf %54, %56 : vector<4x64xf32>
    %cst_88 = arith.constant 0.000000e+00 : f32
    %58 = vector.broadcast %cst_88 : f32 to vector<4x64xf32>
    %59 = arith.maximumf %57, %58 : vector<4x64xf32>
    %60 = vector.shape_cast %59 : vector<4x64xf32> to vector<1x2x2x64xf32>
    %61 = arith.truncf %60 : vector<1x2x2x64xf32> to vector<1x2x2x64xbf16>
    %c0_89 = arith.constant 0 : index
    %c0_90 = arith.constant 0 : index
    %c0_91 = arith.constant 0 : index
    %c0_92 = arith.constant 0 : index
    %62 = vector.load %arg4[%c0_89, %c0_90, %c0_91, %c0_92] : memref<1x2x2x64xbf16, #tpu.memory_space<vmem>>, vector<1x2x2x64xbf16>
    tpu.vector_store %arg4[%c0_89, %c0_90, %c0_91, %c0_92], %61 {strides = array<i32>} : memref<1x2x2x64xbf16, #tpu.memory_space<vmem>>, vector<1x2x2x64xbf16>,
    return
  }
  func.func @transform_0(%arg0: i32) -> (i32, i32, i32, i32, i32) {
    %c0_i32 = arith.constant 0 : i32
    %c0_i32_0 = arith.constant 0 : i32
    %c0_i32_1 = arith.constant 0 : i32
    %c0_i32_2 = arith.constant 0 : i32
    %c0_i32_3 = arith.constant 0 : i32
    return %arg0, %c0_i32, %c0_i32_0, %c0_i32_1, %c0_i32_2 : i32, i32, i32, i32, i32
  }
  func.func @transform_1(%arg0: i32) -> (i32, i32, i32, i32) {
    %c0_i32 = arith.constant 0 : i32
    %c0_i32_0 = arith.constant 0 : i32
    %c0_i32_1 = arith.constant 0 : i32
    %c0_i32_2 = arith.constant 0 : i32
    %c0_i32_3 = arith.constant 0 : i32
    return %c0_i32, %c0_i32_0, %c0_i32_1, %c0_i32_2 : i32, i32, i32, i32
  }
  func.func @transform_2(%arg0: i32) -> (i32, i32) {
    %c0_i32 = arith.constant 0 : i32
    %c0_i32_0 = arith.constant 0 : i32
    %c0_i32_1 = arith.constant 0 : i32
    return %c0_i32, %c0_i32_0 : i32, i32
  }
  func.func @transform_3(%arg0: i32) -> (i32, i32, i32, i32) {
    %c0_i32 = arith.constant 0 : i32
    %c0_i32_0 = arith.constant 0 : i32
    %c0_i32_1 = arith.constant 0 : i32
    %c0_i32_2 = arith.constant 0 : i32
    return %arg0, %c0_i32, %c0_i32_0, %c0_i32_1 : i32, i32, i32, i32
  }
}

module attributes {stable_mosaic.version = 11 : i64} {
  func.func @_conv3x3_relu_kernel(%arg0: i32, %arg1: memref<1x4x4x64xbf16, #tpu.memory_space<vmem>>, %arg2: memref<3x3x64x128xbf16, #tpu.memory_space<vmem>>, %arg3: memref<1x128xf32, #tpu.memory_space<vmem>>, %arg4: memref<1x2x2x128xbf16, #tpu.memory_space<vmem>>) attributes {dimension_semantics = [#tpu.dimension_semantics<parallel>], iteration_bounds = array<i64: 2>, scalar_prefetch = 0 : i64, scratch_operands = 0 : i64, tpu.core_type = #tpu.core_type<tc>, window_params = [{transform_indices = @transform_0, window_bounds = array<i64: 1, 4, 4, 64>}, {pipeline_mode = #tpu.pipeline_mode<synchronous>, transform_indices = @transform_1, window_bounds = array<i64: 3, 3, 64, 128>}, {pipeline_mode = #tpu.pipeline_mode<synchronous>, transform_indices = @transform_2, window_bounds = array<i64: 1, 128>}, {transform_indices = @transform_3, window_bounds = array<i64: 1, 2, 2, 128>}]} {
    %cst = arith.constant 0.000000e+00 : f32
    %0 = vector.broadcast %cst : f32 to vector<4x128xf32>
    %c0 = arith.constant 0 : index
    %c0_0 = arith.constant 0 : index
    %c0_1 = arith.constant 0 : index
    %c0_2 = arith.constant 0 : index
    %1 = vector.load %arg1[%c0, %c0_0, %c0_1, %c0_2] : memref<1x4x4x64xbf16, #tpu.memory_space<vmem>>, vector<1x2x2x64xbf16>
    %2 = vector.shape_cast %1 : vector<1x2x2x64xbf16> to vector<4x64xbf16>
    %c0_3 = arith.constant 0 : index
    %c0_4 = arith.constant 0 : index
    %c0_5 = arith.constant 0 : index
    %c0_6 = arith.constant 0 : index
    %3 = vector.load %arg2[%c0_3, %c0_4, %c0_5, %c0_6] : memref<3x3x64x128xbf16, #tpu.memory_space<vmem>>, vector<1x1x64x128xbf16>
    %4 = vector.shape_cast %3 : vector<1x1x64x128xbf16> to vector<64x128xbf16>
    %cst_7 = arith.constant dense<0.000000e+00> : vector<4x128xf32>
    %5 = tpu.matmul %2, %4, %cst_7 {dimension_numbers = #tpu.dot_dimension_numbers<[1], [0], [0], [1], [0, 0, 1, 1], [], []>} : vector<4x64xbf16>, vector<64x128xbf16>, vector<4x128xf32> -> vector<4x128xf32>
    %6 = arith.addf %0, %5 : vector<4x128xf32>
    %c0_8 = arith.constant 0 : index
    %c0_9 = arith.constant 0 : index
    %c1 = arith.constant 1 : index
    %c0_10 = arith.constant 0 : index
    %7 = vector.load %arg1[%c0_8, %c0_9, %c1, %c0_10] : memref<1x4x4x64xbf16, #tpu.memory_space<vmem>>, vector<1x2x2x64xbf16>
    %8 = vector.shape_cast %7 : vector<1x2x2x64xbf16> to vector<4x64xbf16>
    %c0_11 = arith.constant 0 : index
    %c1_12 = arith.constant 1 : index
    %c0_13 = arith.constant 0 : index
    %c0_14 = arith.constant 0 : index
    %9 = vector.load %arg2[%c0_11, %c1_12, %c0_13, %c0_14] : memref<3x3x64x128xbf16, #tpu.memory_space<vmem>>, vector<1x1x64x128xbf16>
    %10 = vector.shape_cast %9 : vector<1x1x64x128xbf16> to vector<64x128xbf16>
    %cst_15 = arith.constant dense<0.000000e+00> : vector<4x128xf32>
    %11 = tpu.matmul %8, %10, %cst_15 {dimension_numbers = #tpu.dot_dimension_numbers<[1], [0], [0], [1], [0, 0, 1, 1], [], []>} : vector<4x64xbf16>, vector<64x128xbf16>, vector<4x128xf32> -> vector<4x128xf32>
    %12 = arith.addf %6, %11 : vector<4x128xf32>
    %c0_16 = arith.constant 0 : index
    %c0_17 = arith.constant 0 : index
    %c2 = arith.constant 2 : index
    %c0_18 = arith.constant 0 : index
    %13 = vector.load %arg1[%c0_16, %c0_17, %c2, %c0_18] : memref<1x4x4x64xbf16, #tpu.memory_space<vmem>>, vector<1x2x2x64xbf16>
    %14 = vector.shape_cast %13 : vector<1x2x2x64xbf16> to vector<4x64xbf16>
    %c0_19 = arith.constant 0 : index
    %c2_20 = arith.constant 2 : index
    %c0_21 = arith.constant 0 : index
    %c0_22 = arith.constant 0 : index
    %15 = vector.load %arg2[%c0_19, %c2_20, %c0_21, %c0_22] : memref<3x3x64x128xbf16, #tpu.memory_space<vmem>>, vector<1x1x64x128xbf16>
    %16 = vector.shape_cast %15 : vector<1x1x64x128xbf16> to vector<64x128xbf16>
    %cst_23 = arith.constant dense<0.000000e+00> : vector<4x128xf32>
    %17 = tpu.matmul %14, %16, %cst_23 {dimension_numbers = #tpu.dot_dimension_numbers<[1], [0], [0], [1], [0, 0, 1, 1], [], []>} : vector<4x64xbf16>, vector<64x128xbf16>, vector<4x128xf32> -> vector<4x128xf32>
    %18 = arith.addf %12, %17 : vector<4x128xf32>
    %c0_24 = arith.constant 0 : index
    %c1_25 = arith.constant 1 : index
    %c0_26 = arith.constant 0 : index
    %c0_27 = arith.constant 0 : index
    %19 = vector.load %arg1[%c0_24, %c1_25, %c0_26, %c0_27] : memref<1x4x4x64xbf16, #tpu.memory_space<vmem>>, vector<1x2x2x64xbf16>
    %20 = vector.shape_cast %19 : vector<1x2x2x64xbf16> to vector<4x64xbf16>
    %c1_28 = arith.constant 1 : index
    %c0_29 = arith.constant 0 : index
    %c0_30 = arith.constant 0 : index
    %c0_31 = arith.constant 0 : index
    %21 = vector.load %arg2[%c1_28, %c0_29, %c0_30, %c0_31] : memref<3x3x64x128xbf16, #tpu.memory_space<vmem>>, vector<1x1x64x128xbf16>
    %22 = vector.shape_cast %21 : vector<1x1x64x128xbf16> to vector<64x128xbf16>
    %cst_32 = arith.constant dense<0.000000e+00> : vector<4x128xf32>
    %23 = tpu.matmul %20, %22, %cst_32 {dimension_numbers = #tpu.dot_dimension_numbers<[1], [0], [0], [1], [0, 0, 1, 1], [], []>} : vector<4x64xbf16>, vector<64x128xbf16>, vector<4x128xf32> -> vector<4x128xf32>
    %24 = arith.addf %18, %23 : vector<4x128xf32>
    %c0_33 = arith.constant 0 : index
    %c1_34 = arith.constant 1 : index
    %c1_35 = arith.constant 1 : index
    %c0_36 = arith.constant 0 : index
    %25 = vector.load %arg1[%c0_33, %c1_34, %c1_35, %c0_36] : memref<1x4x4x64xbf16, #tpu.memory_space<vmem>>, vector<1x2x2x64xbf16>
    %26 = vector.shape_cast %25 : vector<1x2x2x64xbf16> to vector<4x64xbf16>
    %c1_37 = arith.constant 1 : index
    %c1_38 = arith.constant 1 : index
    %c0_39 = arith.constant 0 : index
    %c0_40 = arith.constant 0 : index
    %27 = vector.load %arg2[%c1_37, %c1_38, %c0_39, %c0_40] : memref<3x3x64x128xbf16, #tpu.memory_space<vmem>>, vector<1x1x64x128xbf16>
    %28 = vector.shape_cast %27 : vector<1x1x64x128xbf16> to vector<64x128xbf16>
    %cst_41 = arith.constant dense<0.000000e+00> : vector<4x128xf32>
    %29 = tpu.matmul %26, %28, %cst_41 {dimension_numbers = #tpu.dot_dimension_numbers<[1], [0], [0], [1], [0, 0, 1, 1], [], []>} : vector<4x64xbf16>, vector<64x128xbf16>, vector<4x128xf32> -> vector<4x128xf32>
    %30 = arith.addf %24, %29 : vector<4x128xf32>
    %c0_42 = arith.constant 0 : index
    %c1_43 = arith.constant 1 : index
    %c2_44 = arith.constant 2 : index
    %c0_45 = arith.constant 0 : index
    %31 = vector.load %arg1[%c0_42, %c1_43, %c2_44, %c0_45] : memref<1x4x4x64xbf16, #tpu.memory_space<vmem>>, vector<1x2x2x64xbf16>
    %32 = vector.shape_cast %31 : vector<1x2x2x64xbf16> to vector<4x64xbf16>
    %c1_46 = arith.constant 1 : index
    %c2_47 = arith.constant 2 : index
    %c0_48 = arith.constant 0 : index
    %c0_49 = arith.constant 0 : index
    %33 = vector.load %arg2[%c1_46, %c2_47, %c0_48, %c0_49] : memref<3x3x64x128xbf16, #tpu.memory_space<vmem>>, vector<1x1x64x128xbf16>
    %34 = vector.shape_cast %33 : vector<1x1x64x128xbf16> to vector<64x128xbf16>
    %cst_50 = arith.constant dense<0.000000e+00> : vector<4x128xf32>
    %35 = tpu.matmul %32, %34, %cst_50 {dimension_numbers = #tpu.dot_dimension_numbers<[1], [0], [0], [1], [0, 0, 1, 1], [], []>} : vector<4x64xbf16>, vector<64x128xbf16>, vector<4x128xf32> -> vector<4x128xf32>
    %36 = arith.addf %30, %35 : vector<4x128xf32>
    %c0_51 = arith.constant 0 : index
    %c2_52 = arith.constant 2 : index
    %c0_53 = arith.constant 0 : index
    %c0_54 = arith.constant 0 : index
    %37 = vector.load %arg1[%c0_51, %c2_52, %c0_53, %c0_54] : memref<1x4x4x64xbf16, #tpu.memory_space<vmem>>, vector<1x2x2x64xbf16>
    %38 = vector.shape_cast %37 : vector<1x2x2x64xbf16> to vector<4x64xbf16>
    %c2_55 = arith.constant 2 : index
    %c0_56 = arith.constant 0 : index
    %c0_57 = arith.constant 0 : index
    %c0_58 = arith.constant 0 : index
    %39 = vector.load %arg2[%c2_55, %c0_56, %c0_57, %c0_58] : memref<3x3x64x128xbf16, #tpu.memory_space<vmem>>, vector<1x1x64x128xbf16>
    %40 = vector.shape_cast %39 : vector<1x1x64x128xbf16> to vector<64x128xbf16>
    %cst_59 = arith.constant dense<0.000000e+00> : vector<4x128xf32>
    %41 = tpu.matmul %38, %40, %cst_59 {dimension_numbers = #tpu.dot_dimension_numbers<[1], [0], [0], [1], [0, 0, 1, 1], [], []>} : vector<4x64xbf16>, vector<64x128xbf16>, vector<4x128xf32> -> vector<4x128xf32>
    %42 = arith.addf %36, %41 : vector<4x128xf32>
    %c0_60 = arith.constant 0 : index
    %c2_61 = arith.constant 2 : index
    %c1_62 = arith.constant 1 : index
    %c0_63 = arith.constant 0 : index
    %43 = vector.load %arg1[%c0_60, %c2_61, %c1_62, %c0_63] : memref<1x4x4x64xbf16, #tpu.memory_space<vmem>>, vector<1x2x2x64xbf16>
    %44 = vector.shape_cast %43 : vector<1x2x2x64xbf16> to vector<4x64xbf16>
    %c2_64 = arith.constant 2 : index
    %c1_65 = arith.constant 1 : index
    %c0_66 = arith.constant 0 : index
    %c0_67 = arith.constant 0 : index
    %45 = vector.load %arg2[%c2_64, %c1_65, %c0_66, %c0_67] : memref<3x3x64x128xbf16, #tpu.memory_space<vmem>>, vector<1x1x64x128xbf16>
    %46 = vector.shape_cast %45 : vector<1x1x64x128xbf16> to vector<64x128xbf16>
    %cst_68 = arith.constant dense<0.000000e+00> : vector<4x128xf32>
    %47 = tpu.matmul %44, %46, %cst_68 {dimension_numbers = #tpu.dot_dimension_numbers<[1], [0], [0], [1], [0, 0, 1, 1], [], []>} : vector<4x64xbf16>, vector<64x128xbf16>, vector<4x128xf32> -> vector<4x128xf32>
    %48 = arith.addf %42, %47 : vector<4x128xf32>
    %c0_69 = arith.constant 0 : index
    %c2_70 = arith.constant 2 : index
    %c2_71 = arith.constant 2 : index
    %c0_72 = arith.constant 0 : index
    %49 = vector.load %arg1[%c0_69, %c2_70, %c2_71, %c0_72] : memref<1x4x4x64xbf16, #tpu.memory_space<vmem>>, vector<1x2x2x64xbf16>
    %50 = vector.shape_cast %49 : vector<1x2x2x64xbf16> to vector<4x64xbf16>
    %c2_73 = arith.constant 2 : index
    %c2_74 = arith.constant 2 : index
    %c0_75 = arith.constant 0 : index
    %c0_76 = arith.constant 0 : index
    %51 = vector.load %arg2[%c2_73, %c2_74, %c0_75, %c0_76] : memref<3x3x64x128xbf16, #tpu.memory_space<vmem>>, vector<1x1x64x128xbf16>
    %52 = vector.shape_cast %51 : vector<1x1x64x128xbf16> to vector<64x128xbf16>
    %cst_77 = arith.constant dense<0.000000e+00> : vector<4x128xf32>
    %53 = tpu.matmul %50, %52, %cst_77 {dimension_numbers = #tpu.dot_dimension_numbers<[1], [0], [0], [1], [0, 0, 1, 1], [], []>} : vector<4x64xbf16>, vector<64x128xbf16>, vector<4x128xf32> -> vector<4x128xf32>
    %54 = arith.addf %48, %53 : vector<4x128xf32>
    %c0_78 = arith.constant 0 : index
    %c0_79 = arith.constant 0 : index
    %55 = vector.load %arg3[%c0_78, %c0_79] : memref<1x128xf32, #tpu.memory_space<vmem>>, vector<1x128xf32>
    %56 = vector.broadcast %55 : vector<1x128xf32> to vector<4x128xf32>
    %57 = arith.addf %54, %56 : vector<4x128xf32>
    %cst_80 = arith.constant 0.000000e+00 : f32
    %58 = vector.broadcast %cst_80 : f32 to vector<4x128xf32>
    %59 = arith.maximumf %57, %58 : vector<4x128xf32>
    %60 = vector.shape_cast %59 : vector<4x128xf32> to vector<1x2x2x128xf32>
    %61 = arith.truncf %60 : vector<1x2x2x128xf32> to vector<1x2x2x128xbf16>
    %c0_81 = arith.constant 0 : index
    %c0_82 = arith.constant 0 : index
    %c0_83 = arith.constant 0 : index
    %c0_84 = arith.constant 0 : index
    %62 = vector.load %arg4[%c0_81, %c0_82, %c0_83, %c0_84] : memref<1x2x2x128xbf16, #tpu.memory_space<vmem>>, vector<1x2x2x128xbf16>
    tpu.vector_store %arg4[%c0_81, %c0_82, %c0_83, %c0_84], %61 {strides = array<i32>} : memref<1x2x2x128xbf16, #tpu.memory_space<vmem>>, vector<1x2x2x128xbf16>,
    return
  }
  func.func @transform_0(%arg0: i32) -> (i32, i32, i32, i32) {
    %c0_i32 = arith.constant 0 : i32
    %c0_i32_0 = arith.constant 0 : i32
    %c0_i32_1 = arith.constant 0 : i32
    %c0_i32_2 = arith.constant 0 : i32
    return %arg0, %c0_i32, %c0_i32_0, %c0_i32_1 : i32, i32, i32, i32
  }
  func.func @transform_1(%arg0: i32) -> (i32, i32, i32, i32) {
    %c0_i32 = arith.constant 0 : i32
    %c0_i32_0 = arith.constant 0 : i32
    %c0_i32_1 = arith.constant 0 : i32
    %c0_i32_2 = arith.constant 0 : i32
    %c0_i32_3 = arith.constant 0 : i32
    return %c0_i32, %c0_i32_0, %c0_i32_1, %c0_i32_2 : i32, i32, i32, i32
  }
  func.func @transform_2(%arg0: i32) -> (i32, i32) {
    %c0_i32 = arith.constant 0 : i32
    %c0_i32_0 = arith.constant 0 : i32
    %c0_i32_1 = arith.constant 0 : i32
    return %c0_i32, %c0_i32_0 : i32, i32
  }
  func.func @transform_3(%arg0: i32) -> (i32, i32, i32, i32) {
    %c0_i32 = arith.constant 0 : i32
    %c0_i32_0 = arith.constant 0 : i32
    %c0_i32_1 = arith.constant 0 : i32
    %c0_i32_2 = arith.constant 0 : i32
    return %arg0, %c0_i32, %c0_i32_0, %c0_i32_1 : i32, i32, i32, i32
  }
}

module attributes {stable_mosaic.version = 11 : i64} {
  func.func @_linear_kernel(%arg0: i32, %arg1: i32, %arg2: memref<2x512xbf16, #tpu.memory_space<vmem>>, %arg3: memref<512x32xbf16, #tpu.memory_space<vmem>>, %arg4: memref<1x32xf32, #tpu.memory_space<vmem>>, %arg5: memref<2x32xf32, #tpu.memory_space<vmem>>, %arg6: memref<2x32xf32, #tpu.memory_space<vmem>>) attributes {dimension_semantics = [#tpu.dimension_semantics<parallel>, #tpu.dimension_semantics<arbitrary>], iteration_bounds = array<i64: 1, 1>, scalar_prefetch = 0 : i64, scratch_operands = 1 : i64, tpu.core_type = #tpu.core_type<tc>, window_params = [{transform_indices = @transform_0, window_bounds = array<i64: 2, 512>}, {pipeline_mode = #tpu.pipeline_mode<synchronous>, transform_indices = @transform_1, window_bounds = array<i64: 512, 32>}, {pipeline_mode = #tpu.pipeline_mode<synchronous>, transform_indices = @transform_2, window_bounds = array<i64: 1, 32>}, {transform_indices = @transform_3, window_bounds = array<i64: 2, 32>}]} {
    %c0_i32 = arith.constant 0 : i32
    %0 = arith.cmpi eq, %arg1, %c0_i32 : i32
    %1 = arith.extui %0 : i1 to i32
    %c0_i32_0 = arith.constant 0 : i32
    %2 = arith.cmpi ne, %1, %c0_i32_0 : i32
    scf.if %2 {
      %cst_10 = arith.constant 0.000000e+00 : f32
      %12 = vector.broadcast %cst_10 : f32 to vector<2x32xf32>
      %c0_11 = arith.constant 0 : index
      %c0_12 = arith.constant 0 : index
      %13 = vector.load %arg6[%c0_11, %c0_12] : memref<2x32xf32, #tpu.memory_space<vmem>>, vector<2x32xf32>
      tpu.vector_store %arg6[%c0_11, %c0_12], %12 {strides = array<i32>} : memref<2x32xf32, #tpu.memory_space<vmem>>, vector<2x32xf32>,
    } else {
    }
    %c0 = arith.constant 0 : index
    %c0_1 = arith.constant 0 : index
    %3 = vector.load %arg6[%c0, %c0_1] : memref<2x32xf32, #tpu.memory_space<vmem>>, vector<2x32xf32>
    %c0_2 = arith.constant 0 : index
    %c0_3 = arith.constant 0 : index
    %4 = vector.load %arg2[%c0_2, %c0_3] : memref<2x512xbf16, #tpu.memory_space<vmem>>, vector<2x512xbf16>
    %c0_4 = arith.constant 0 : index
    %c0_5 = arith.constant 0 : index
    %5 = vector.load %arg3[%c0_4, %c0_5] : memref<512x32xbf16, #tpu.memory_space<vmem>>, vector<512x32xbf16>
    %cst = arith.constant dense<0.000000e+00> : vector<2x32xf32>
    %6 = tpu.matmul %4, %5, %cst {dimension_numbers = #tpu.dot_dimension_numbers<[1], [0], [0], [1], [0, 0, 1, 1], [], []>} : vector<2x512xbf16>, vector<512x32xbf16>, vector<2x32xf32> -> vector<2x32xf32>
    %7 = arith.addf %3, %6 : vector<2x32xf32>
    %c0_6 = arith.constant 0 : index
    %c0_7 = arith.constant 0 : index
    %8 = vector.load %arg6[%c0_6, %c0_7] : memref<2x32xf32, #tpu.memory_space<vmem>>, vector<2x32xf32>
    tpu.vector_store %arg6[%c0_6, %c0_7], %7 {strides = array<i32>} : memref<2x32xf32, #tpu.memory_space<vmem>>, vector<2x32xf32>,
    %c0_i32_8 = arith.constant 0 : i32
    %9 = arith.cmpi eq, %arg1, %c0_i32_8 : i32
    %10 = arith.extui %9 : i1 to i32
    %c0_i32_9 = arith.constant 0 : i32
    %11 = arith.cmpi ne, %10, %c0_i32_9 : i32
    scf.if %11 {
      %c0_10 = arith.constant 0 : index
      %c0_11 = arith.constant 0 : index
      %12 = vector.load %arg6[%c0_10, %c0_11] : memref<2x32xf32, #tpu.memory_space<vmem>>, vector<2x32xf32>
      %c0_12 = arith.constant 0 : index
      %c0_13 = arith.constant 0 : index
      %13 = vector.load %arg4[%c0_12, %c0_13] : memref<1x32xf32, #tpu.memory_space<vmem>>, vector<1x32xf32>
      %14 = vector.broadcast %13 : vector<1x32xf32> to vector<2x32xf32>
      %15 = arith.addf %12, %14 : vector<2x32xf32>
      %c0_14 = arith.constant 0 : index
      %c0_15 = arith.constant 0 : index
      %16 = vector.load %arg5[%c0_14, %c0_15] : memref<2x32xf32, #tpu.memory_space<vmem>>, vector<2x32xf32>
      tpu.vector_store %arg5[%c0_14, %c0_15], %15 {strides = array<i32>} : memref<2x32xf32, #tpu.memory_space<vmem>>, vector<2x32xf32>,
    } else {
    }
    return
  }
  func.func @transform_0(%arg0: i32, %arg1: i32) -> (i32, i32) {
    %c0_i32 = arith.constant 0 : i32
    return %arg0, %arg1 : i32, i32
  }
  func.func @transform_1(%arg0: i32, %arg1: i32) -> (i32, i32) {
    %c0_i32 = arith.constant 0 : i32
    %c0_i32_0 = arith.constant 0 : i32
    return %arg1, %c0_i32 : i32, i32
  }
  func.func @transform_2(%arg0: i32, %arg1: i32) -> (i32, i32) {
    %c0_i32 = arith.constant 0 : i32
    %c0_i32_0 = arith.constant 0 : i32
    %c0_i32_1 = arith.constant 0 : i32
    return %c0_i32, %c0_i32_0 : i32, i32
  }
  func.func @transform_3(%arg0: i32, %arg1: i32) -> (i32, i32) {
    %c0_i32 = arith.constant 0 : i32
    %c0_i32_0 = arith.constant 0 : i32
    return %arg0, %c0_i32 : i32, i32
  }
}

</mosaic_0001>

<llo_original>
// kernel: st_dim_cnn_forward.6
$region0: #{st_dim_cnn_forward.6}
  #allocation0 [shape = 'u32[]', space=smem, size = 0x4, offset = 0x4, fixed_abs, tag = 'smem constant byte address 0x4 - core index']
  #allocation1 [shape = 'u32[144,128]{1,0:T(1,128)}', space=vmem, size = 0x12000, scoped, tag = 'internal scratch']
  %s0 = inlined_call_operand.vmem [shape: bf16[2,5,2,5,64], index: 0, kind: input, shape index: {}]
  %s1 = inlined_call_operand.vmem [shape: bf16[3,3,32,64], index: 1, kind: input, shape index: {}]
  %s2 = inlined_call_operand.vmem [shape: f32[1,64], index: 2, kind: input, shape index: {}]
  %s3 = inlined_call_operand.vmem [shape: bf16[2,4,4,64], index: 3, kind: output, shape index: {}]
  %s4 = sld [smem:[#allocation0]]
  $region45: #{st_dim_cnn_forward.6} parent=0
    _
  %s6 = ssub.s32 1, %s4
  %s7 = scalar_select 0, %s6, %s4
  loop: start=0, step=1, limit=4
  $region2: #{st_dim_cnn_forward.6} parent=0 // loop_pre_header
    _
  $region3: #{st_dim_cnn_forward.6} parent=0 // loop_header
    %s9 = sphi 0, %s13
    %p10 = scmp.ge.s32.totalorder %s9, 4
    %s19 = sphi 0, %s21
    %s22 = sphi 0, %s19
    %s23 = sphi 0, %s22
    %s39 = sphi 0, %s23
    %s43 = sphi 0, %s43
    %s45 = sphi 0, %s43
    %s46 = sphi 0, %s45
    %s60 = sphi 0, %s46
    %s64 = sphi 0, %s64
    %s66 = sphi 0, %s64
    %s67 = sphi 0, %s66
    %s81 = sphi 0, %s67
    %s87 = sphi 0, %s89
    %s90 = sphi 0, %s87
    %s91 = sphi 0, %s90
    %s107 = sphi 0, %s91
  $region4: #{st_dim_cnn_forward.6} parent=0 // loop_header_branch
    %12 = sbr.rel (%p10) target = $region8
  $region5: #{st_dim_cnn_forward.6} parent=0 // loop_body
    %s14 = ssub.s32 %s9, 1
    %s15 = ssub.s32 %s9, 2
    %s16 = sadd.s32 %s9, 1
    %s17 = ssub.s32 %s9, %s16
    %p18 = scmp.eq.s32.totalorder %s17, 0
    %s20 = sadd.s32 %s19, 1
    %s21 = scalar_select %p18, %s19, %s20
    %p24 = pneg %p18
    %p25 = scmp.eq.s32.totalorder %s9, 1
    %p26 = por %p24, %p25
    %p27 = scmp.ne.s32.totalorder %s19, %s22
    %p28 = scmp.eq.s32.totalorder %s9, 0
    %p29 = por %p27, %p28
    %p30 = scmp.ne.s32.totalorder %s19, %s22
    %p31 = scmp.eq.s32.totalorder %s14, 1
    %p32 = por %p30, %p31
    %p33 = scmp.ne.s32.totalorder %s22, %s23
    %p34 = scmp.eq.s32.totalorder %s14, 0
    %p35 = por %p33, %p34
    %p36 = scmp.ne.s32.totalorder %s22, %s23
    %p37 = scmp.eq.s32.totalorder %s15, 1
    %p38 = por %p36, %p37
    %p40 = scmp.ne.s32.totalorder %s23, %s39
    %p41 = scmp.eq.s32.totalorder %s15, 0
    %p42 = por %p40, %p41
    %s44 = sadd.s32 %s43, 1
    %p47 = scmp.eq.s32.totalorder %s9, 1
    %p48 = scmp.ne.s32.totalorder %s43, %s45
    %p49 = scmp.eq.s32.totalorder %s9, 0
    %p50 = por %p48, %p49
    %p51 = scmp.ne.s32.totalorder %s43, %s45
    %p52 = scmp.eq.s32.totalorder %s14, 1
    %p53 = por %p51, %p52
    %p54 = scmp.ne.s32.totalorder %s45, %s46
    %p55 = scmp.eq.s32.totalorder %s14, 0
    %p56 = por %p54, %p55
    %p57 = scmp.ne.s32.totalorder %s45, %s46
    %p58 = scmp.eq.s32.totalorder %s15, 1
    %p59 = por %p57, %p58
    %p61 = scmp.ne.s32.totalorder %s46, %s60
    %p62 = scmp.eq.s32.totalorder %s15, 0
    %p63 = por %p61, %p62
    %s65 = sadd.s32 %s64, 1
    %p68 = scmp.eq.s32.totalorder %s9, 1
    %p69 = scmp.ne.s32.totalorder %s64, %s66
    %p70 = scmp.eq.s32.totalorder %s9, 0
    %p71 = por %p69, %p70
    %p72 = scmp.ne.s32.totalorder %s64, %s66
    %p73 = scmp.eq.s32.totalorder %s14, 1
    %p74 = por %p72, %p73
    %p75 = scmp.ne.s32.totalorder %s66, %s67
    %p76 = scmp.eq.s32.totalorder %s14, 0
    %p77 = por %p75, %p76
    %p78 = scmp.ne.s32.totalorder %s66, %s67
    %p79 = scmp.eq.s32.totalorder %s15, 1
    %p80 = por %p78, %p79
    %p82 = scmp.ne.s32.totalorder %s67, %s81
    %p83 = scmp.eq.s32.totalorder %s15, 0
    %p84 = por %p82, %p83
    %s85 = ssub.s32 %s9, %s16
    %p86 = scmp.eq.s32.totalorder %s85, 0
    %s88 = sadd.s32 %s87, 1
    %s89 = scalar_select %p86, %s87, %s88
    %p92 = pneg %p86
    %p93 = scmp.eq.s32.totalorder %s9, 1
    %p94 = por %p92, %p93
    %p95 = scmp.ne.s32.totalorder %s87, %s90
    %p96 = scmp.eq.s32.totalorder %s9, 0
    %p97 = por %p95, %p96
    %p98 = scmp.ne.s32.totalorder %s87, %s90
    %p99 = scmp.eq.s32.totalorder %s14, 1
    %p100 = por %p98, %p99
    %p101 = scmp.ne.s32.totalorder %s90, %s91
    %p102 = scmp.eq.s32.totalorder %s14, 0
    %p103 = por %p101, %p102
    %p104 = scmp.ne.s32.totalorder %s90, %s91
    %p105 = scmp.eq.s32.totalorder %s15, 1
    %p106 = por %p104, %p105
    %p108 = scmp.ne.s32.totalorder %s91, %s107
    %p109 = scmp.eq.s32.totalorder %s15, 0
    %p110 = por %p108, %p109
    %p111 = scmp.le.s32.totalorder 1, %s9
    %p112 = scmp.lt.s32.totalorder %s9, 3
    %p113 = pnand %p111, %p112
    %p114 = pneg %p113
    // Predicated region
    $region9: #{st_dim_cnn_forward.6} parent=5 // pred_check
      _
    $region10: #{st_dim_cnn_forward.6} parent=5 // pred_check_branch
      %116 = sbr.rel (%p113) target = $region12
    $region11: #{st_dim_cnn_forward.6} parent=5 // pred_region
      %s117 = ssub.s32 %s9, 1
      // Predicated region
      $region13: #{st_dim_cnn_forward.6} parent=11 // pred_check
        %p118 = pneg %p56
      $region14: #{st_dim_cnn_forward.6} parent=11 // pred_check_branch
        %120 = sbr.rel (%p118) target = $region16
      $region15: #{st_dim_cnn_forward.6} parent=11 // pred_region
        _
      $region16: #{st_dim_cnn_forward.6} parent=11 // pred_fallthru
        _
      // Predicated region
      $region17: #{st_dim_cnn_forward.6} parent=11 // pred_check
        %p121 = pneg %p77
      $region18: #{st_dim_cnn_forward.6} parent=11 // pred_check_branch
        %123 = sbr.rel (%p121) target = $region20
      $region19: #{st_dim_cnn_forward.6} parent=11 // pred_region
        _
      $region20: #{st_dim_cnn_forward.6} parent=11 // pred_fallthru
        _
    $region12: #{st_dim_cnn_forward.6} parent=5 // pred_fallthru
      _
    %p124 = scmp.lt.s32.totalorder %s9, 2
    // Predicated region
    $region21: #{st_dim_cnn_forward.6} parent=5 // pred_check
      %p125 = pneg %p124
    $region22: #{st_dim_cnn_forward.6} parent=5 // pred_check_branch
      %127 = sbr.rel (%p125) target = $region24
    $region23: #{st_dim_cnn_forward.6} parent=5 // pred_region
      // Predicated region
      $region25: #{st_dim_cnn_forward.6} parent=23 // pred_check
        %p128 = pneg %p29
      $region26: #{st_dim_cnn_forward.6} parent=23 // pred_check_branch
        %130 = sbr.rel (%p128) target = $region28
      $region27: #{st_dim_cnn_forward.6} parent=23 // pred_region
        %p131 = scmp.lt.s32.totalorder %s9, 1
        %s132 = scalar_select %p131, %s9, 1
        %s133 = smul.addr %s132, 10
        %s134 = smul.addr %s133, 4
        %s135 = scalar_lea.vmem %s0, %s134
      $region28: #{st_dim_cnn_forward.6} parent=23 // pred_fallthru
        _
    $region24: #{st_dim_cnn_forward.6} parent=5 // pred_fallthru
      _
    %p136 = scmp.le.s32.totalorder 1, %s9
    %p137 = scmp.lt.s32.totalorder %s9, 3
    %p138 = pnand %p136, %p137
    %p139 = pneg %p138
    // Predicated region
    $region29: #{st_dim_cnn_forward.6} parent=5 // pred_check
      _
    $region30: #{st_dim_cnn_forward.6} parent=5 // pred_check_branch
      %141 = sbr.rel (%p138) target = $region32
    $region31: #{st_dim_cnn_forward.6} parent=5 // pred_region
      %s142 = ssub.s32 %s9, 1
      %p143 = scmp.lt.s32.totalorder %s14, 1
      %s144 = scalar_select %p143, %s14, 1
      %s145 = smul.addr %s144, 10
      %s146 = smul.addr %s145, 4
      %s147 = scalar_lea.vmem %s0, %s146
      %p148 = pneg %p35
      %p149 = pneg %p32
      %p150 = pneg %p56
      %p151 = pneg %p53
      %p152 = pneg %p77
      %p153 = pneg %p74
      %p154 = pneg %p103
      %p155 = pneg %p100
      %p156 = scmp.lt.s32.totalorder %s14, 1
      %s157 = scalar_select %p156, %s14, 1
      %s158 = smul.addr %s157, 4
      %s159 = smul.addr %s158, 2
      %s160 = scalar_lea.vmem %s3, %s159
      %p161 = scmp.lt.s32.totalorder %s14, 1
      %s162 = scalar_select %p161, %s14, 1
      %s163 = smul.addr %s162, 10
      %s164 = smul.addr %s163, 4
      %s165 = scalar_lea.vmem %s0, %s164
      %p166 = scmp.lt.s32.totalorder %s14, 1
      %s167 = scalar_select %p166, %s14, 1
      %s168 = smul.addr %s167, 4
      %s169 = smul.addr %s168, 2
      %s170 = scalar_lea.vmem %s3, %s169
      %v172 = vld [vmem:[%s165] sm:$0x3]
      %v173 = vld [vmem:[%s165 + $0x8] sm:$0x3]
      %v174 = vld [vmem:[%s165 + $0x10] sm:$0x3]
      %v175 = vld [vmem:[%s165 + $0x18] sm:$0x3]
      %v176 = vld [vmem:[%s1] sm:$0xf]
      %v177 = vld [vmem:[%s1 + $0x4] sm:$0xf]
      %v178 = vld [vmem:[%s1 + $0x8] sm:$0xf]
      %v179 = vld [vmem:[%s1 + $0xc] sm:$0xf]
      %s180 = scalar_lea.vmem %s1, 16
      %v181 = vld [vmem:[%s180] sm:$0xf]
      %v182 = vld [vmem:[%s180 + $0x4] sm:$0xf]
      %v183 = vld [vmem:[%s180 + $0x8] sm:$0xf]
      %v184 = vld [vmem:[%s180 + $0xc] sm:$0xf]
      %v189 = vcombine.low %v172, %v173
      %v190 = vcombine.low %v174, %v175
      %v192 = vunpack.c.l.s4 1983009808
      %v193 = vunpack.c.0.s8 %v192
      %v194 = vlaneseq
      %v195 = vshrl.u32 %v194, 7
      %v196 = vsub.s32 %v193, %v195
      %v197 = vrot.slane %v189, %v196
      %v199 = vunpack.c.l.s4 1983009808
      %v200 = vunpack.c.0.s8 %v199
      %v201 = vlaneseq
      %v202 = vshrl.u32 %v201, 7
      %v203 = vsub.s32 %v200, %v202
      %v204 = vrot.slane %v190, %v203
      %v205 = vcombine.low %v197, %v204
      %206 = vrot.lane.b32.xlu0 %v205, 96
      %v207 = vpop.permute.xlu0 %206
      %v212 = vunpack.c.l.b16 %v181
      %v213 = vunpack.c.l.b16 %v182
      %v214 = vunpack.c.l.b16 %v183
      %v215 = vunpack.c.l.b16 %v184
      %v216 = vpack.c.b16 %v213, %v212
      %v217 = vpack.c.b16 %v215, %v214
      %vm220 = vcmask 261120
      %v222 = vsel %vm220, %v207, 0
      %224 = vmatprep.subr.bf16.mxu0 0
      %225 = vmatpush1.bf16.msra.mxu0 %v216
      %226 = vmatprep.subr.bf16.mxu0 0
      %227 = vmatpush1.bf16.msra.mxu0 %v217
      %228 = vmatprep.subr.bf16.mxu0 0
      %229 = vmatpush1.bf16.msra.mxu0 0
      %230 = vmatprep.subr.bf16.mxu0 0
      %231 = vmatpush1.bf16.msra.mxu0 0
      %232 = vmatprep.subr.bf16.mxu0 0
      %233 = vmatpush1.bf16.msra.mxu0 0
      %234 = vmatprep.subr.bf16.mxu0 0
      %235 = vmatpush1.bf16.msra.mxu0 0
      %236 = vmatprep.subr.bf16.mxu0 0
      %237 = vmatpush1.bf16.msra.mxu0 0
      %238 = vmatprep.subr.bf16.mxu0 0
      %239 = vmatpush1.bf16.msra.mxu0 0
      %240 = vmatprep.subr.bf16.mxu0 0
      %241 = vmatpush1.bf16.msra.mxu0 0
      %242 = vmatprep.subr.bf16.mxu0 0
      %243 = vmatpush1.bf16.msra.mxu0 0
      %244 = vmatprep.subr.bf16.mxu0 0
      %245 = vmatpush1.bf16.msra.mxu0 0
      %246 = vmatprep.subr.bf16.mxu0 0
      %247 = vmatpush1.bf16.msra.mxu0 0
      %248 = vmatprep.subr.bf16.mxu0 0
      %249 = vmatpush1.bf16.msra.mxu0 0
      %250 = vmatprep.subr.bf16.mxu0 0
      %251 = vmatpush1.bf16.msra.mxu0 0
      %252 = vmatprep.subr.bf16.mxu0 0
      %253 = vmatpush1.bf16.msra.mxu0 0
      %254 = vmatprep.subr.bf16.mxu0 0
      %255 = vmatpush1.bf16.msra.mxu0 0
      %256 = vmatprep.mubr.bf16.mxu0 0
      %257 = vmatmul.mubr.bf16.gmra.mrb[0].mxu0 %v222
      %v258 = vpop.f32.mrb[0].mxu0
      %v259 = vadd.f32 0.0, %v258
      %v260 = vpop.f32.mrb[0].mxu0
      %v261 = vpop.f32.mrb[0].mxu0
      %v262 = vadd.f32 0.0, %v261
      %v263 = vpop.f32.mrb[0].mxu0
      %264 = vdwg.mxu0
      %v269 = vunpack.c.l.b16 %v176
      %v270 = vunpack.c.l.b16 %v177
      %v271 = vunpack.c.l.b16 %v178
      %v272 = vunpack.c.l.b16 %v179
      %v273 = vpack.c.b16 %v270, %v269
      %v274 = vpack.c.b16 %v272, %v271
      %v278 = vsel %vm220, %v205, 0
      %280 = vmatprep.subr.bf16.mxu0 0
      %281 = vmatpush1.bf16.msra.mxu0 %v273
      %282 = vmatprep.subr.bf16.mxu0 0
      %283 = vmatpush1.bf16.msra.mxu0 %v274
      %284 = vmatprep.subr.bf16.mxu0 0
      %285 = vmatpush1.bf16.msra.mxu0 0
      %286 = vmatprep.subr.bf16.mxu0 0
      %287 = vmatpush1.bf16.msra.mxu0 0
      %288 = vmatprep.subr.bf16.mxu0 0
      %289 = vmatpush1.bf16.msra.mxu0 0
      %290 = vmatprep.subr.bf16.mxu0 0
      %291 = vmatpush1.bf16.msra.mxu0 0
      %292 = vmatprep.subr.bf16.mxu0 0
      %293 = vmatpush1.bf16.msra.mxu0 0
      %294 = vmatprep.subr.bf16.mxu0 0
      %295 = vmatpush1.bf16.msra.mxu0 0
      %296 = vmatprep.subr.bf16.mxu0 0
      %297 = vmatpush1.bf16.msra.mxu0 0
      %298 = vmatprep.subr.bf16.mxu0 0
      %299 = vmatpush1.bf16.msra.mxu0 0
      %300 = vmatprep.subr.bf16.mxu0 0
      %301 = vmatpush1.bf16.msra.mxu0 0
      %302 = vmatprep.subr.bf16.mxu0 0
      %303 = vmatpush1.bf16.msra.mxu0 0
      %304 = vmatprep.subr.bf16.mxu0 0
      %305 = vmatpush1.bf16.msra.mxu0 0
      %306 = vmatprep.subr.bf16.mxu0 0
      %307 = vmatpush1.bf16.msra.mxu0 0
      %308 = vmatprep.subr.bf16.mxu0 0
      %309 = vmatpush1.bf16.msra.mxu0 0
      %310 = vmatprep.subr.bf16.mxu0 0
      %311 = vmatpush1.bf16.msra.mxu0 0
      %312 = vmatprep.mubr.bf16.mxu0 0
      %313 = vmatmul.mubr.bf16.gmra.mrb[0].mxu0 %v278
      %v314 = vpop.f32.mrb[0].mxu0
      %v315 = vadd.f32 %v259, %v314
      %v316 = vpop.f32.mrb[0].mxu0
      %v317 = vpop.f32.mrb[0].mxu0
      %v318 = vadd.f32 %v262, %v317
      %v319 = vpop.f32.mrb[0].mxu0
      %320 = vdwg.mxu0
      %v321 = vld [vmem:[%s165] sm:$0x7]
      %v322 = vld [vmem:[%s165 + $0x8] sm:$0x7]
      %v323 = vld [vmem:[%s165 + $0x10] sm:$0x7]
      %v324 = vld [vmem:[%s165 + $0x18] sm:$0x7]
      %v330 = vunpack.c.l.s4 1983009808
      %v331 = vunpack.c.0.s8 %v330
      %v332 = vlaneseq
      %v333 = vshrl.u32 %v332, 7
      %v334 = vsub.s32 %v331, %v333
      %v335 = vrot.slane %v321, %v334
      %v336 = vcombine.high %v335, %v335
      %v338 = vunpack.c.l.s4 1983009808
      %v339 = vunpack.c.0.s8 %v338
      %v340 = vlaneseq
      %v341 = vshrl.u32 %v340, 7
      %v342 = vsub.s32 %v339, %v341
      %v343 = vrot.slane %v322, %v342
      %v344 = vcombine.high %v343, %v343
      %v346 = vunpack.c.l.s4 1983009808
      %v347 = vunpack.c.0.s8 %v346
      %v348 = vlaneseq
      %v349 = vshrl.u32 %v348, 7
      %v350 = vsub.s32 %v347, %v349
      %v351 = vrot.slane %v323, %v350
      %v352 = vcombine.high %v351, %v351
      %v354 = vunpack.c.l.s4 1983009808
      %v355 = vunpack.c.0.s8 %v354
      %v356 = vlaneseq
      %v357 = vshrl.u32 %v356, 7
      %v358 = vsub.s32 %v355, %v357
      %v359 = vrot.slane %v324, %v358
      %v360 = vcombine.high %v359, %v359
      %vm361 = vsmask.f32 1280
      %vm362 = vsmask.f32 3336
      %vm363 = vmor %vm361, %vm362
      %vm364 = vsmask.f32 5392
      %vm365 = vmor %vm363, %vm364
      %vm366 = vsmask.f32 7448
      %vm367 = vmor %vm365, %vm366
      %v369 = vshrl.u32 %v335, 16
      %v371 = vrot.slane %v369, 6
      %v372 = vshll.u32 %v335, 16
      %v374 = vrot.slane %v372, 7
      %v375 = vor.u32 %v371, %v374
      %v376 = vrot.slane %v375, 2
      %v378 = vshll.u32 %v336, 16
      %v380 = vrot.slane %v378, 7
      %v381 = vsel %vm367, %v376, %v380
      %v383 = vshrl.u32 %v343, 16
      %v385 = vrot.slane %v383, 6
      %v386 = vshll.u32 %v343, 16
      %v388 = vrot.slane %v386, 7
      %v389 = vor.u32 %v385, %v388
      %v390 = vrot.slane %v389, 2
      %v392 = vshll.u32 %v344, 16
      %v394 = vrot.slane %v392, 7
      %v395 = vsel %vm367, %v390, %v394
      %v397 = vshrl.u32 %v351, 16
      %v399 = vrot.slane %v397, 6
      %v400 = vshll.u32 %v351, 16
      %v402 = vrot.slane %v400, 7
      %v403 = vor.u32 %v399, %v402
      %v404 = vrot.slane %v403, 2
      %v406 = vshll.u32 %v352, 16
      %v408 = vrot.slane %v406, 7
      %v409 = vsel %vm367, %v404, %v408
      %v411 = vshrl.u32 %v359, 16
      %v413 = vrot.slane %v411, 6
      %v414 = vshll.u32 %v359, 16
      %v416 = vrot.slane %v414, 7
      %v417 = vor.u32 %v413, %v416
      %v418 = vrot.slane %v417, 2
      %v420 = vshll.u32 %v360, 16
      %v422 = vrot.slane %v420, 7
      %v423 = vsel %vm367, %v418, %v422
      %s424 = scalar_lea.vmem %s1, 32
      %v425 = vld [vmem:[%s424] sm:$0xf]
      %v426 = vld [vmem:[%s424 + $0x4] sm:$0xf]
      %v427 = vld [vmem:[%s424 + $0x8] sm:$0xf]
      %v428 = vld [vmem:[%s424 + $0xc] sm:$0xf]
      %v429 = vcombine.low %v381, %v395
      %v430 = vcombine.low %v409, %v423
      %v432 = vunpack.c.l.s4 1983009808
      %v433 = vunpack.c.0.s8 %v432
      %v434 = vlaneseq
      %v435 = vshrl.u32 %v434, 7
      %v436 = vsub.s32 %v433, %v435
      %v437 = vrot.slane %v429, %v436
      %v439 = vunpack.c.l.s4 1983009808
      %v440 = vunpack.c.0.s8 %v439
      %v441 = vlaneseq
      %v442 = vshrl.u32 %v441, 7
      %v443 = vsub.s32 %v440, %v442
      %v444 = vrot.slane %v430, %v443
      %v445 = vcombine.low %v437, %v444
      %v450 = vunpack.c.l.b16 %v425
      %v451 = vunpack.c.l.b16 %v426
      %v452 = vunpack.c.l.b16 %v427
      %v453 = vunpack.c.l.b16 %v428
      %v454 = vpack.c.b16 %v451, %v450
      %v455 = vpack.c.b16 %v453, %v452
      %v459 = vsel %vm220, %v445, 0
      %461 = vmatprep.subr.bf16.mxu0 0
      %462 = vmatpush1.bf16.msra.mxu0 %v454
      %463 = vmatprep.subr.bf16.mxu0 0
      %464 = vmatpush1.bf16.msra.mxu0 %v455
      %465 = vmatprep.subr.bf16.mxu0 0
      %466 = vmatpush1.bf16.msra.mxu0 0
      %467 = vmatprep.subr.bf16.mxu0 0
      %468 = vmatpush1.bf16.msra.mxu0 0
      %469 = vmatprep.subr.bf16.mxu0 0
      %470 = vmatpush1.bf16.msra.mxu0 0
      %471 = vmatprep.subr.bf16.mxu0 0
      %472 = vmatpush1.bf16.msra.mxu0 0
      %473 = vmatprep.subr.bf16.mxu0 0
      %474 = vmatpush1.bf16.msra.mxu0 0
      %475 = vmatprep.subr.bf16.mxu0 0
      %476 = vmatpush1.bf16.msra.mxu0 0
      %477 = vmatprep.subr.bf16.mxu0 0
      %478 = vmatpush1.bf16.msra.mxu0 0
      %479 = vmatprep.subr.bf16.mxu0 0
      %480 = vmatpush1.bf16.msra.mxu0 0
      %481 = vmatprep.subr.bf16.mxu0 0
      %482 = vmatpush1.bf16.msra.mxu0 0
      %483 = vmatprep.subr.bf16.mxu0 0
      %484 = vmatpush1.bf16.msra.mxu0 0
      %485 = vmatprep.subr.bf16.mxu0 0
      %486 = vmatpush1.bf16.msra.mxu0 0
      %487 = vmatprep.subr.bf16.mxu0 0
      %488 = vmatpush1.bf16.msra.mxu0 0
      %489 = vmatprep.subr.bf16.mxu0 0
      %490 = vmatpush1.bf16.msra.mxu0 0
      %491 = vmatprep.subr.bf16.mxu0 0
      %492 = vmatpush1.bf16.msra.mxu0 0
      %493 = vmatprep.mubr.bf16.mxu0 0
      %494 = vmatmul.mubr.bf16.gmra.mrb[0].mxu0 %v459
      %v495 = vpop.f32.mrb[0].mxu0
      %v496 = vadd.f32 0.0, %v495
      %v497 = vpop.f32.mrb[0].mxu0
      %v498 = vpop.f32.mrb[0].mxu0
      %v499 = vadd.f32 0.0, %v498
      %v500 = vpop.f32.mrb[0].mxu0
      %501 = vdwg.mxu0
      %v502 = vadd.f32 %v315, %v496
      %v503 = vadd.f32 %v318, %v499
      %s504 = scalar_lea.vmem %s165, 4
      %v505 = vld [vmem:[%s504] sm:$0x3]
      %v506 = vld [vmem:[%s504 + $0x8] sm:$0x3]
      %v507 = vld [vmem:[%s504 + $0x10] sm:$0x3]
      %v508 = vld [vmem:[%s504 + $0x18] sm:$0x3]
      %s509 = scalar_lea.vmem %s1, 48
      %v510 = vld [vmem:[%s509] sm:$0xf]
      %v511 = vld [vmem:[%s509 + $0x4] sm:$0xf]
      %v512 = vld [vmem:[%s509 + $0x8] sm:$0xf]
      %v513 = vld [vmem:[%s509 + $0xc] sm:$0xf]
      %v518 = vcombine.low %v505, %v506
      %v519 = vcombine.low %v507, %v508
      %v521 = vunpack.c.l.s4 1983009808
      %v522 = vunpack.c.0.s8 %v521
      %v523 = vlaneseq
      %v524 = vshrl.u32 %v523, 7
      %v525 = vsub.s32 %v522, %v524
      %v526 = vrot.slane %v518, %v525
      %v528 = vunpack.c.l.s4 1983009808
      %v529 = vunpack.c.0.s8 %v528
      %v530 = vlaneseq
      %v531 = vshrl.u32 %v530, 7
      %v532 = vsub.s32 %v529, %v531
      %v533 = vrot.slane %v519, %v532
      %v534 = vcombine.low %v526, %v533
      %v539 = vunpack.c.l.b16 %v510
      %v540 = vunpack.c.l.b16 %v511
      %v541 = vunpack.c.l.b16 %v512
      %v542 = vunpack.c.l.b16 %v513
      %v543 = vpack.c.b16 %v540, %v539
      %v544 = vpack.c.b16 %v542, %v541
      %v548 = vsel %vm220, %v534, 0
      %550 = vmatprep.subr.bf16.mxu0 0
      %551 = vmatpush1.bf16.msra.mxu0 %v543
      %552 = vmatprep.subr.bf16.mxu0 0
      %553 = vmatpush1.bf16.msra.mxu0 %v544
      %554 = vmatprep.subr.bf16.mxu0 0
      %555 = vmatpush1.bf16.msra.mxu0 0
      %556 = vmatprep.subr.bf16.mxu0 0
      %557 = vmatpush1.bf16.msra.mxu0 0
      %558 = vmatprep.subr.bf16.mxu0 0
      %559 = vmatpush1.bf16.msra.mxu0 0
      %560 = vmatprep.subr.bf16.mxu0 0
      %561 = vmatpush1.bf16.msra.mxu0 0
      %562 = vmatprep.subr.bf16.mxu0 0
      %563 = vmatpush1.bf16.msra.mxu0 0
      %564 = vmatprep.subr.bf16.mxu0 0
      %565 = vmatpush1.bf16.msra.mxu0 0
      %566 = vmatprep.subr.bf16.mxu0 0
      %567 = vmatpush1.bf16.msra.mxu0 0
      %568 = vmatprep.subr.bf16.mxu0 0
      %569 = vmatpush1.bf16.msra.mxu0 0
      %570 = vmatprep.subr.bf16.mxu0 0
      %571 = vmatpush1.bf16.msra.mxu0 0
      %572 = vmatprep.subr.bf16.mxu0 0
      %573 = vmatpush1.bf16.msra.mxu0 0
      %574 = vmatprep.subr.bf16.mxu0 0
      %575 = vmatpush1.bf16.msra.mxu0 0
      %576 = vmatprep.subr.bf16.mxu0 0
      %577 = vmatpush1.bf16.msra.mxu0 0
      %578 = vmatprep.subr.bf16.mxu0 0
      %579 = vmatpush1.bf16.msra.mxu0 0
      %580 = vmatprep.subr.bf16.mxu0 0
      %581 = vmatpush1.bf16.msra.mxu0 0
      %582 = vmatprep.mubr.bf16.mxu0 0
      %583 = vmatmul.mubr.bf16.gmra.mrb[0].mxu0 %v548
      %v584 = vpop.f32.mrb[0].mxu0
      %v585 = vadd.f32 0.0, %v584
      %v586 = vpop.f32.mrb[0].mxu0
      %v587 = vpop.f32.mrb[0].mxu0
      %v588 = vadd.f32 0.0, %v587
      %v589 = vpop.f32.mrb[0].mxu0
      %590 = vdwg.mxu0
      %v591 = vadd.f32 %v502, %v585
      %v592 = vadd.f32 %v503, %v588
      %v593 = vld [vmem:[%s504] sm:$0x3]
      %v594 = vld [vmem:[%s504 + $0x8] sm:$0x3]
      %v595 = vld [vmem:[%s504 + $0x10] sm:$0x3]
      %v596 = vld [vmem:[%s504 + $0x18] sm:$0x3]
      %s597 = scalar_lea.vmem %s1, 64
      %v598 = vld [vmem:[%s597] sm:$0xf]
      %v599 = vld [vmem:[%s597 + $0x4] sm:$0xf]
      %v600 = vld [vmem:[%s597 + $0x8] sm:$0xf]
      %v601 = vld [vmem:[%s597 + $0xc] sm:$0xf]
      %v606 = vcombine.low %v593, %v594
      %v607 = vcombine.low %v595, %v596
      %v609 = vunpack.c.l.s4 1983009808
      %v610 = vunpack.c.0.s8 %v609
      %v611 = vlaneseq
      %v612 = vshrl.u32 %v611, 7
      %v613 = vsub.s32 %v610, %v612
      %v614 = vrot.slane %v606, %v613
      %v616 = vunpack.c.l.s4 1983009808
      %v617 = vunpack.c.0.s8 %v616
      %v618 = vlaneseq
      %v619 = vshrl.u32 %v618, 7
      %v620 = vsub.s32 %v617, %v619
      %v621 = vrot.slane %v607, %v620
      %v622 = vcombine.low %v614, %v621
      %623 = vrot.lane.b32.xlu0 %v622, 96
      %v624 = vpop.permute.xlu0 %623
      %v629 = vunpack.c.l.b16 %v598
      %v630 = vunpack.c.l.b16 %v599
      %v631 = vunpack.c.l.b16 %v600
      %v632 = vunpack.c.l.b16 %v601
      %v633 = vpack.c.b16 %v630, %v629
      %v634 = vpack.c.b16 %v632, %v631
      %v638 = vsel %vm220, %v624, 0
      %640 = vmatprep.subr.bf16.mxu0 0
      %641 = vmatpush1.bf16.msra.mxu0 %v633
      %642 = vmatprep.subr.bf16.mxu0 0
      %643 = vmatpush1.bf16.msra.mxu0 %v634
      %644 = vmatprep.subr.bf16.mxu0 0
      %645 = vmatpush1.bf16.msra.mxu0 0
      %646 = vmatprep.subr.bf16.mxu0 0
      %647 = vmatpush1.bf16.msra.mxu0 0
      %648 = vmatprep.subr.bf16.mxu0 0
      %649 = vmatpush1.bf16.msra.mxu0 0
      %650 = vmatprep.subr.bf16.mxu0 0
      %651 = vmatpush1.bf16.msra.mxu0 0
      %652 = vmatprep.subr.bf16.mxu0 0
      %653 = vmatpush1.bf16.msra.mxu0 0
      %654 = vmatprep.subr.bf16.mxu0 0
      %655 = vmatpush1.bf16.msra.mxu0 0
      %656 = vmatprep.subr.bf16.mxu0 0
      %657 = vmatpush1.bf16.msra.mxu0 0
      %658 = vmatprep.subr.bf16.mxu0 0
      %659 = vmatpush1.bf16.msra.mxu0 0
      %660 = vmatprep.subr.bf16.mxu0 0
      %661 = vmatpush1.bf16.msra.mxu0 0
      %662 = vmatprep.subr.bf16.mxu0 0
      %663 = vmatpush1.bf16.msra.mxu0 0
      %664 = vmatprep.subr.bf16.mxu0 0
      %665 = vmatpush1.bf16.msra.mxu0 0
      %666 = vmatprep.subr.bf16.mxu0 0
      %667 = vmatpush1.bf16.msra.mxu0 0
      %668 = vmatprep.subr.bf16.mxu0 0
      %669 = vmatpush1.bf16.msra.mxu0 0
      %670 = vmatprep.subr.bf16.mxu0 0
      %671 = vmatpush1.bf16.msra.mxu0 0
      %672 = vmatprep.mubr.bf16.mxu0 0
      %673 = vmatmul.mubr.bf16.gmra.mrb[0].mxu0 %v638
      %v674 = vpop.f32.mrb[0].mxu0
      %v675 = vadd.f32 0.0, %v674
      %v676 = vpop.f32.mrb[0].mxu0
      %v677 = vpop.f32.mrb[0].mxu0
      %v678 = vadd.f32 0.0, %v677
      %v679 = vpop.f32.mrb[0].mxu0
      %680 = vdwg.mxu0
      %v681 = vadd.f32 %v591, %v675
      %v682 = vadd.f32 %v592, %v678
      %v683 = vld [vmem:[%s504] sm:$0x7]
      %v684 = vld [vmem:[%s504 + $0x8] sm:$0x7]
      %v685 = vld [vmem:[%s504 + $0x10] sm:$0x7]
      %v686 = vld [vmem:[%s504 + $0x18] sm:$0x7]
      %v692 = vunpack.c.l.s4 1983009808
      %v693 = vunpack.c.0.s8 %v692
      %v694 = vlaneseq
      %v695 = vshrl.u32 %v694, 7
      %v696 = vsub.s32 %v693, %v695
      %v697 = vrot.slane %v683, %v696
      %v698 = vcombine.high %v697, %v697
      %v700 = vunpack.c.l.s4 1983009808
      %v701 = vunpack.c.0.s8 %v700
      %v702 = vlaneseq
      %v703 = vshrl.u32 %v702, 7
      %v704 = vsub.s32 %v701, %v703
      %v705 = vrot.slane %v684, %v704
      %v706 = vcombine.high %v705, %v705
      %v708 = vunpack.c.l.s4 1983009808
      %v709 = vunpack.c.0.s8 %v708
      %v710 = vlaneseq
      %v711 = vshrl.u32 %v710, 7
      %v712 = vsub.s32 %v709, %v711
      %v713 = vrot.slane %v685, %v712
      %v714 = vcombine.high %v713, %v713
      %v716 = vunpack.c.l.s4 1983009808
      %v717 = vunpack.c.0.s8 %v716
      %v718 = vlaneseq
      %v719 = vshrl.u32 %v718, 7
      %v720 = vsub.s32 %v717, %v719
      %v721 = vrot.slane %v686, %v720
      %v722 = vcombine.high %v721, %v721
      %v724 = vshrl.u32 %v697, 16
      %v726 = vrot.slane %v724, 6
      %v727 = vshll.u32 %v697, 16
      %v729 = vrot.slane %v727, 7
      %v730 = vor.u32 %v726, %v729
      %v731 = vrot.slane %v730, 2
      %v733 = vshll.u32 %v698, 16
      %v735 = vrot.slane %v733, 7
      %v736 = vsel %vm367, %v731, %v735
      %v738 = vshrl.u32 %v705, 16
      %v740 = vrot.slane %v738, 6
      %v741 = vshll.u32 %v705, 16
      %v743 = vrot.slane %v741, 7
      %v744 = vor.u32 %v740, %v743
      %v745 = vrot.slane %v744, 2
      %v747 = vshll.u32 %v706, 16
      %v749 = vrot.slane %v747, 7
      %v750 = vsel %vm367, %v745, %v749
      %v752 = vshrl.u32 %v713, 16
      %v754 = vrot.slane %v752, 6
      %v755 = vshll.u32 %v713, 16
      %v757 = vrot.slane %v755, 7
      %v758 = vor.u32 %v754, %v757
      %v759 = vrot.slane %v758, 2
      %v761 = vshll.u32 %v714, 16
      %v763 = vrot.slane %v761, 7
      %v764 = vsel %vm367, %v759, %v763
      %v766 = vshrl.u32 %v721, 16
      %v768 = vrot.slane %v766, 6
      %v769 = vshll.u32 %v721, 16
      %v771 = vrot.slane %v769, 7
      %v772 = vor.u32 %v768, %v771
      %v773 = vrot.slane %v772, 2
      %v775 = vshll.u32 %v722, 16
      %v777 = vrot.slane %v775, 7
      %v778 = vsel %vm367, %v773, %v777
      %s779 = scalar_lea.vmem %s1, 80
      %v780 = vld [vmem:[%s779] sm:$0xf]
      %v781 = vld [vmem:[%s779 + $0x4] sm:$0xf]
      %v782 = vld [vmem:[%s779 + $0x8] sm:$0xf]
      %v783 = vld [vmem:[%s779 + $0xc] sm:$0xf]
      %v784 = vcombine.low %v736, %v750
      %v785 = vcombine.low %v764, %v778
      %v787 = vunpack.c.l.s4 1983009808
      %v788 = vunpack.c.0.s8 %v787
      %v789 = vlaneseq
      %v790 = vshrl.u32 %v789, 7
      %v791 = vsub.s32 %v788, %v790
      %v792 = vrot.slane %v784, %v791
      %v794 = vunpack.c.l.s4 1983009808
      %v795 = vunpack.c.0.s8 %v794
      %v796 = vlaneseq
      %v797 = vshrl.u32 %v796, 7
      %v798 = vsub.s32 %v795, %v797
      %v799 = vrot.slane %v785, %v798
      %v800 = vcombine.low %v792, %v799
      %v805 = vunpack.c.l.b16 %v780
      %v806 = vunpack.c.l.b16 %v781
      %v807 = vunpack.c.l.b16 %v782
      %v808 = vunpack.c.l.b16 %v783
      %v809 = vpack.c.b16 %v806, %v805
      %v810 = vpack.c.b16 %v808, %v807
      %v814 = vsel %vm220, %v800, 0
      %816 = vmatprep.subr.bf16.mxu0 0
      %817 = vmatpush1.bf16.msra.mxu0 %v809
      %818 = vmatprep.subr.bf16.mxu0 0
      %819 = vmatpush1.bf16.msra.mxu0 %v810
      %820 = vmatprep.subr.bf16.mxu0 0
      %821 = vmatpush1.bf16.msra.mxu0 0
      %822 = vmatprep.subr.bf16.mxu0 0
      %823 = vmatpush1.bf16.msra.mxu0 0
      %824 = vmatprep.subr.bf16.mxu0 0
      %825 = vmatpush1.bf16.msra.mxu0 0
      %826 = vmatprep.subr.bf16.mxu0 0
      %827 = vmatpush1.bf16.msra.mxu0 0
      %828 = vmatprep.subr.bf16.mxu0 0
      %829 = vmatpush1.bf16.msra.mxu0 0
      %830 = vmatprep.subr.bf16.mxu0 0
      %831 = vmatpush1.bf16.msra.mxu0 0
      %832 = vmatprep.subr.bf16.mxu0 0
      %833 = vmatpush1.bf16.msra.mxu0 0
      %834 = vmatprep.subr.bf16.mxu0 0
      %835 = vmatpush1.bf16.msra.mxu0 0
      %836 = vmatprep.subr.bf16.mxu0 0
      %837 = vmatpush1.bf16.msra.mxu0 0
      %838 = vmatprep.subr.bf16.mxu0 0
      %839 = vmatpush1.bf16.msra.mxu0 0
      %840 = vmatprep.subr.bf16.mxu0 0
      %841 = vmatpush1.bf16.msra.mxu0 0
      %842 = vmatprep.subr.bf16.mxu0 0
      %843 = vmatpush1.bf16.msra.mxu0 0
      %844 = vmatprep.subr.bf16.mxu0 0
      %845 = vmatpush1.bf16.msra.mxu0 0
      %846 = vmatprep.subr.bf16.mxu0 0
      %847 = vmatpush1.bf16.msra.mxu0 0
      %848 = vmatprep.mubr.bf16.mxu0 0
      %849 = vmatmul.mubr.bf16.gmra.mrb[0].mxu0 %v814
      %v850 = vpop.f32.mrb[0].mxu0
      %v851 = vadd.f32 0.0, %v850
      %v852 = vpop.f32.mrb[0].mxu0
      %v853 = vpop.f32.mrb[0].mxu0
      %v854 = vadd.f32 0.0, %v853
      %v855 = vpop.f32.mrb[0].mxu0
      %856 = vdwg.mxu0
      %v857 = vadd.f32 %v681, %v851
      %v858 = vadd.f32 %v682, %v854
      %s859 = scalar_lea.vmem %s165, 8
      %v860 = vld [vmem:[%s859] sm:$0x3]
      %v861 = vld [vmem:[%s859 + $0x8] sm:$0x3]
      %v862 = vld [vmem:[%s859 + $0x10] sm:$0x3]
      %v863 = vld [vmem:[%s859 + $0x18] sm:$0x3]
      %s864 = scalar_lea.vmem %s1, 96
      %v865 = vld [vmem:[%s864] sm:$0xf]
      %v866 = vld [vmem:[%s864 + $0x4] sm:$0xf]
      %v867 = vld [vmem:[%s864 + $0x8] sm:$0xf]
      %v868 = vld [vmem:[%s864 + $0xc] sm:$0xf]
      %v873 = vcombine.low %v860, %v861
      %v874 = vcombine.low %v862, %v863
      %v876 = vunpack.c.l.s4 1983009808
      %v877 = vunpack.c.0.s8 %v876
      %v878 = vlaneseq
      %v879 = vshrl.u32 %v878, 7
      %v880 = vsub.s32 %v877, %v879
      %v881 = vrot.slane %v873, %v880
      %v883 = vunpack.c.l.s4 1983009808
      %v884 = vunpack.c.0.s8 %v883
      %v885 = vlaneseq
      %v886 = vshrl.u32 %v885, 7
      %v887 = vsub.s32 %v884, %v886
      %v888 = vrot.slane %v874, %v887
      %v889 = vcombine.low %v881, %v888
      %v894 = vunpack.c.l.b16 %v865
      %v895 = vunpack.c.l.b16 %v866
      %v896 = vunpack.c.l.b16 %v867
      %v897 = vunpack.c.l.b16 %v868
      %v898 = vpack.c.b16 %v895, %v894
      %v899 = vpack.c.b16 %v897, %v896
      %v903 = vsel %vm220, %v889, 0
      %905 = vmatprep.subr.bf16.mxu0 0
      %906 = vmatpush1.bf16.msra.mxu0 %v898
      %907 = vmatprep.subr.bf16.mxu0 0
      %908 = vmatpush1.bf16.msra.mxu0 %v899
      %909 = vmatprep.subr.bf16.mxu0 0
      %910 = vmatpush1.bf16.msra.mxu0 0
      %911 = vmatprep.subr.bf16.mxu0 0
      %912 = vmatpush1.bf16.msra.mxu0 0
      %913 = vmatprep.subr.bf16.mxu0 0
      %914 = vmatpush1.bf16.msra.mxu0 0
      %915 = vmatprep.subr.bf16.mxu0 0
      %916 = vmatpush1.bf16.msra.mxu0 0
      %917 = vmatprep.subr.bf16.mxu0 0
      %918 = vmatpush1.bf16.msra.mxu0 0
      %919 = vmatprep.subr.bf16.mxu0 0
      %920 = vmatpush1.bf16.msra.mxu0 0
      %921 = vmatprep.subr.bf16.mxu0 0
      %922 = vmatpush1.bf16.msra.mxu0 0
      %923 = vmatprep.subr.bf16.mxu0 0
      %924 = vmatpush1.bf16.msra.mxu0 0
      %925 = vmatprep.subr.bf16.mxu0 0
      %926 = vmatpush1.bf16.msra.mxu0 0
      %927 = vmatprep.subr.bf16.mxu0 0
      %928 = vmatpush1.bf16.msra.mxu0 0
      %929 = vmatprep.subr.bf16.mxu0 0
      %930 = vmatpush1.bf16.msra.mxu0 0
      %931 = vmatprep.subr.bf16.mxu0 0
      %932 = vmatpush1.bf16.msra.mxu0 0
      %933 = vmatprep.subr.bf16.mxu0 0
      %934 = vmatpush1.bf16.msra.mxu0 0
      %935 = vmatprep.subr.bf16.mxu0 0
      %936 = vmatpush1.bf16.msra.mxu0 0
      %937 = vmatprep.mubr.bf16.mxu0 0
      %938 = vmatmul.mubr.bf16.gmra.mrb[0].mxu0 %v903
      %v939 = vpop.f32.mrb[0].mxu0
      %v940 = vadd.f32 0.0, %v939
      %v941 = vpop.f32.mrb[0].mxu0
      %v942 = vpop.f32.mrb[0].mxu0
      %v943 = vadd.f32 0.0, %v942
      %v944 = vpop.f32.mrb[0].mxu0
      %945 = vdwg.mxu0
      %v946 = vadd.f32 %v857, %v940
      %v947 = vadd.f32 %v858, %v943
      %v948 = vld [vmem:[%s859] sm:$0x3]
      %v949 = vld [vmem:[%s859 + $0x8] sm:$0x3]
      %v950 = vld [vmem:[%s859 + $0x10] sm:$0x3]
      %v951 = vld [vmem:[%s859 + $0x18] sm:$0x3]
      %s952 = scalar_lea.vmem %s1, 112
      %v953 = vld [vmem:[%s952] sm:$0xf]
      %v954 = vld [vmem:[%s952 + $0x4] sm:$0xf]
      %v955 = vld [vmem:[%s952 + $0x8] sm:$0xf]
      %v956 = vld [vmem:[%s952 + $0xc] sm:$0xf]
      %v961 = vcombine.low %v948, %v949
      %v962 = vcombine.low %v950, %v951
      %v964 = vunpack.c.l.s4 1983009808
      %v965 = vunpack.c.0.s8 %v964
      %v966 = vlaneseq
      %v967 = vshrl.u32 %v966, 7
      %v968 = vsub.s32 %v965, %v967
      %v969 = vrot.slane %v961, %v968
      %v971 = vunpack.c.l.s4 1983009808
      %v972 = vunpack.c.0.s8 %v971
      %v973 = vlaneseq
      %v974 = vshrl.u32 %v973, 7
      %v975 = vsub.s32 %v972, %v974
      %v976 = vrot.slane %v962, %v975
      %v977 = vcombine.low %v969, %v976
      %978 = vrot.lane.b32.xlu0 %v977, 96
      %v979 = vpop.permute.xlu0 %978
      %v984 = vunpack.c.l.b16 %v953
      %v985 = vunpack.c.l.b16 %v954
      %v986 = vunpack.c.l.b16 %v955
      %v987 = vunpack.c.l.b16 %v956
      %v988 = vpack.c.b16 %v985, %v984
      %v989 = vpack.c.b16 %v987, %v986
      %v993 = vsel %vm220, %v979, 0
      %995 = vmatprep.subr.bf16.mxu0 0
      %996 = vmatpush1.bf16.msra.mxu0 %v988
      %997 = vmatprep.subr.bf16.mxu0 0
      %998 = vmatpush1.bf16.msra.mxu0 %v989
      %999 = vmatprep.subr.bf16.mxu0 0
      %1000 = vmatpush1.bf16.msra.mxu0 0
      %1001 = vmatprep.subr.bf16.mxu0 0
      %1002 = vmatpush1.bf16.msra.mxu0 0
      %1003 = vmatprep.subr.bf16.mxu0 0
      %1004 = vmatpush1.bf16.msra.mxu0 0
      %1005 = vmatprep.subr.bf16.mxu0 0
      %1006 = vmatpush1.bf16.msra.mxu0 0
      %1007 = vmatprep.subr.bf16.mxu0 0
      %1008 = vmatpush1.bf16.msra.mxu0 0
      %1009 = vmatprep.subr.bf16.mxu0 0
      %1010 = vmatpush1.bf16.msra.mxu0 0
      %1011 = vmatprep.subr.bf16.mxu0 0
      %1012 = vmatpush1.bf16.msra.mxu0 0
      %1013 = vmatprep.subr.bf16.mxu0 0
      %1014 = vmatpush1.bf16.msra.mxu0 0
      %1015 = vmatprep.subr.bf16.mxu0 0
      %1016 = vmatpush1.bf16.msra.mxu0 0
      %1017 = vmatprep.subr.bf16.mxu0 0
      %1018 = vmatpush1.bf16.msra.mxu0 0
      %1019 = vmatprep.subr.bf16.mxu0 0
      %1020 = vmatpush1.bf16.msra.mxu0 0
      %1021 = vmatprep.subr.bf16.mxu0 0
      %1022 = vmatpush1.bf16.msra.mxu0 0
      %1023 = vmatprep.subr.bf16.mxu0 0
      %1024 = vmatpush1.bf16.msra.mxu0 0
      %1025 = vmatprep.subr.bf16.mxu0 0
      %1026 = vmatpush1.bf16.msra.mxu0 0
      %1027 = vmatprep.mubr.bf16.mxu0 0
      %1028 = vmatmul.mubr.bf16.gmra.mrb[0].mxu0 %v993
      %v1029 = vpop.f32.mrb[0].mxu0
      %v1030 = vadd.f32 0.0, %v1029
      %v1031 = vpop.f32.mrb[0].mxu0
      %v1032 = vpop.f32.mrb[0].mxu0
      %v1033 = vadd.f32 0.0, %v1032
      %v1034 = vpop.f32.mrb[0].mxu0
      %1035 = vdwg.mxu0
      %v1036 = vadd.f32 %v946, %v1030
      %v1037 = vadd.f32 %v947, %v1033
      %v1038 = vld [vmem:[%s859] sm:$0x7]
      %v1039 = vld [vmem:[%s859 + $0x8] sm:$0x7]
      %v1040 = vld [vmem:[%s859 + $0x10] sm:$0x7]
      %v1041 = vld [vmem:[%s859 + $0x18] sm:$0x7]
      %v1047 = vunpack.c.l.s4 1983009808
      %v1048 = vunpack.c.0.s8 %v1047
      %v1049 = vlaneseq
      %v1050 = vshrl.u32 %v1049, 7
      %v1051 = vsub.s32 %v1048, %v1050
      %v1052 = vrot.slane %v1038, %v1051
      %v1053 = vcombine.high %v1052, %v1052
      %v1055 = vunpack.c.l.s4 1983009808
      %v1056 = vunpack.c.0.s8 %v1055
      %v1057 = vlaneseq
      %v1058 = vshrl.u32 %v1057, 7
      %v1059 = vsub.s32 %v1056, %v1058
      %v1060 = vrot.slane %v1039, %v1059
      %v1061 = vcombine.high %v1060, %v1060
      %v1063 = vunpack.c.l.s4 1983009808
      %v1064 = vunpack.c.0.s8 %v1063
      %v1065 = vlaneseq
      %v1066 = vshrl.u32 %v1065, 7
      %v1067 = vsub.s32 %v1064, %v1066
      %v1068 = vrot.slane %v1040, %v1067
      %v1069 = vcombine.high %v1068, %v1068
      %v1071 = vunpack.c.l.s4 1983009808
      %v1072 = vunpack.c.0.s8 %v1071
      %v1073 = vlaneseq
      %v1074 = vshrl.u32 %v1073, 7
      %v1075 = vsub.s32 %v1072, %v1074
      %v1076 = vrot.slane %v1041, %v1075
      %v1077 = vcombine.high %v1076, %v1076
      %v1079 = vshrl.u32 %v1052, 16
      %v1081 = vrot.slane %v1079, 6
      %v1082 = vshll.u32 %v1052, 16
      %v1084 = vrot.slane %v1082, 7
      %v1085 = vor.u32 %v1081, %v1084
      %v1086 = vrot.slane %v1085, 2
      %v1088 = vshll.u32 %v1053, 16
      %v1090 = vrot.slane %v1088, 7
      %v1091 = vsel %vm367, %v1086, %v1090
      %v1093 = vshrl.u32 %v1060, 16
      %v1095 = vrot.slane %v1093, 6
      %v1096 = vshll.u32 %v1060, 16
      %v1098 = vrot.slane %v1096, 7
      %v1099 = vor.u32 %v1095, %v1098
      %v1100 = vrot.slane %v1099, 2
      %v1102 = vshll.u32 %v1061, 16
      %v1104 = vrot.slane %v1102, 7
      %v1105 = vsel %vm367, %v1100, %v1104
      %v1107 = vshrl.u32 %v1068, 16
      %v1109 = vrot.slane %v1107, 6
      %v1110 = vshll.u32 %v1068, 16
      %v1112 = vrot.slane %v1110, 7
      %v1113 = vor.u32 %v1109, %v1112
      %v1114 = vrot.slane %v1113, 2
      %v1116 = vshll.u32 %v1069, 16
      %v1118 = vrot.slane %v1116, 7
      %v1119 = vsel %vm367, %v1114, %v1118
      %v1121 = vshrl.u32 %v1076, 16
      %v1123 = vrot.slane %v1121, 6
      %v1124 = vshll.u32 %v1076, 16
      %v1126 = vrot.slane %v1124, 7
      %v1127 = vor.u32 %v1123, %v1126
      %v1128 = vrot.slane %v1127, 2
      %v1130 = vshll.u32 %v1077, 16
      %v1132 = vrot.slane %v1130, 7
      %v1133 = vsel %vm367, %v1128, %v1132
      %s1134 = scalar_lea.vmem %s1, 128
      %v1135 = vld [vmem:[%s1134] sm:$0xf]
      %v1136 = vld [vmem:[%s1134 + $0x4] sm:$0xf]
      %v1137 = vld [vmem:[%s1134 + $0x8] sm:$0xf]
      %v1138 = vld [vmem:[%s1134 + $0xc] sm:$0xf]
      %v1139 = vcombine.low %v1091, %v1105
      %v1140 = vcombine.low %v1119, %v1133
      %v1142 = vunpack.c.l.s4 1983009808
      %v1143 = vunpack.c.0.s8 %v1142
      %v1144 = vlaneseq
      %v1145 = vshrl.u32 %v1144, 7
      %v1146 = vsub.s32 %v1143, %v1145
      %v1147 = vrot.slane %v1139, %v1146
      %v1149 = vunpack.c.l.s4 1983009808
      %v1150 = vunpack.c.0.s8 %v1149
      %v1151 = vlaneseq
      %v1152 = vshrl.u32 %v1151, 7
      %v1153 = vsub.s32 %v1150, %v1152
      %v1154 = vrot.slane %v1140, %v1153
      %v1155 = vcombine.low %v1147, %v1154
      %v1160 = vunpack.c.l.b16 %v1135
      %v1161 = vunpack.c.l.b16 %v1136
      %v1162 = vunpack.c.l.b16 %v1137
      %v1163 = vunpack.c.l.b16 %v1138
      %v1164 = vpack.c.b16 %v1161, %v1160
      %v1165 = vpack.c.b16 %v1163, %v1162
      %v1169 = vsel %vm220, %v1155, 0
      %1171 = vmatprep.subr.bf16.mxu0 0
      %1172 = vmatpush1.bf16.msra.mxu0 %v1164
      %1173 = vmatprep.subr.bf16.mxu0 0
      %1174 = vmatpush1.bf16.msra.mxu0 %v1165
      %1175 = vmatprep.subr.bf16.mxu0 0
      %1176 = vmatpush1.bf16.msra.mxu0 0
      %1177 = vmatprep.subr.bf16.mxu0 0
      %1178 = vmatpush1.bf16.msra.mxu0 0
      %1179 = vmatprep.subr.bf16.mxu0 0
      %1180 = vmatpush1.bf16.msra.mxu0 0
      %1181 = vmatprep.subr.bf16.mxu0 0
      %1182 = vmatpush1.bf16.msra.mxu0 0
      %1183 = vmatprep.subr.bf16.mxu0 0
      %1184 = vmatpush1.bf16.msra.mxu0 0
      %1185 = vmatprep.subr.bf16.mxu0 0
      %1186 = vmatpush1.bf16.msra.mxu0 0
      %1187 = vmatprep.subr.bf16.mxu0 0
      %1188 = vmatpush1.bf16.msra.mxu0 0
      %1189 = vmatprep.subr.bf16.mxu0 0
      %1190 = vmatpush1.bf16.msra.mxu0 0
      %1191 = vmatprep.subr.bf16.mxu0 0
      %1192 = vmatpush1.bf16.msra.mxu0 0
      %1193 = vmatprep.subr.bf16.mxu0 0
      %1194 = vmatpush1.bf16.msra.mxu0 0
      %1195 = vmatprep.subr.bf16.mxu0 0
      %1196 = vmatpush1.bf16.msra.mxu0 0
      %1197 = vmatprep.subr.bf16.mxu0 0
      %1198 = vmatpush1.bf16.msra.mxu0 0
      %1199 = vmatprep.subr.bf16.mxu0 0
      %1200 = vmatpush1.bf16.msra.mxu0 0
      %1201 = vmatprep.subr.bf16.mxu0 0
      %1202 = vmatpush1.bf16.msra.mxu0 0
      %1203 = vmatprep.mubr.bf16.mxu0 0
      %1204 = vmatmul.mubr.bf16.gmra.mrb[0].mxu0 %v1169
      %v1205 = vpop.f32.mrb[0].mxu0
      %v1206 = vadd.f32 0.0, %v1205
      %v1207 = vpop.f32.mrb[0].mxu0
      %v1208 = vpop.f32.mrb[0].mxu0
      %v1209 = vadd.f32 0.0, %v1208
      %v1210 = vpop.f32.mrb[0].mxu0
      %1211 = vdwg.mxu0
      %v1212 = vadd.f32 %v1036, %v1206
      %v1213 = vadd.f32 %v1037, %v1209
      %v1214 = vld [vmem:[%s2] sm:$0x1]
      %v1216 = vlaneseq
      %v1217 = vshrl.u32 %v1216, 7
      %v1218 = vsub.s32 0, %v1217
      %v1219 = vrot.slane %v1214, %v1218
      %v1221 = vadd.f32 %v1212, %v1219
      %v1222 = vadd.f32 %v1213, %v1219
      %v1223 = vmax.f32 %v1221, 0.0
      %v1224 = vmax.f32 %v1222, 0.0
      %v1227 = vcombine.high %v1223, %v1223
      %v1228 = vcombine.high %v1224, %v1224
      %v1231 = vpack.c.bf16 %v1223, %v1223
      %v1232 = vpack.c.bf16 %v1227, %v1227
      %v1233 = vpack.c.bf16 %v1224, %v1224
      %v1234 = vpack.c.bf16 %v1228, %v1228
      %vm1235 = vcmask 517120
      %1236 = vst.msk [vmem:[%s170] sm:$0x3] %vm1235, %v1231
      %1237 = vst.msk [vmem:[%s170 + $0x2] sm:$0x3] %vm1235, %v1232
      %1238 = vst.msk [vmem:[%s170 + $0x4] sm:$0x3] %vm1235, %v1233
      %1239 = vst.msk [vmem:[%s170 + $0x6] sm:$0x3] %vm1235, %v1234
      %p1240 = scmp.lt.s32.totalorder %s14, 1
      %s1241 = scalar_select %p1240, %s14, 1
      %s1242 = smul.addr %s1241, 4
      %s1243 = smul.addr %s1242, 2
      %s1244 = scalar_lea.vmem %s3, %s1243
      // Predicated region
      $region33: #{st_dim_cnn_forward.6} parent=31 // pred_check
        %p1245 = pneg %p100
      $region34: #{st_dim_cnn_forward.6} parent=31 // pred_check_branch
        %1247 = sbr.rel (%p1245) target = $region36
      $region35: #{st_dim_cnn_forward.6} parent=31 // pred_region
        _
      $region36: #{st_dim_cnn_forward.6} parent=31 // pred_fallthru
        _
    $region32: #{st_dim_cnn_forward.6} parent=5 // pred_fallthru
      _
    %p1248 = scmp.le.s32.totalorder 2, %s9
    // Predicated region
    $region37: #{st_dim_cnn_forward.6} parent=5 // pred_check
      %p1249 = pneg %p1248
    $region38: #{st_dim_cnn_forward.6} parent=5 // pred_check_branch
      %1251 = sbr.rel (%p1249) target = $region40
    $region39: #{st_dim_cnn_forward.6} parent=5 // pred_region
      %s1252 = ssub.s32 %s9, 2
      // Predicated region
      $region41: #{st_dim_cnn_forward.6} parent=39 // pred_check
        %p1253 = pneg %p106
      $region42: #{st_dim_cnn_forward.6} parent=39 // pred_check_branch
        %1255 = sbr.rel (%p1253) target = $region44
      $region43: #{st_dim_cnn_forward.6} parent=39 // pred_region
        %p1256 = scmp.lt.s32.totalorder %s15, 1
        %s1257 = scalar_select %p1256, %s15, 1
        %s1258 = smul.addr %s1257, 4
        %s1259 = smul.addr %s1258, 2
        %s1260 = scalar_lea.vmem %s3, %s1259
      $region44: #{st_dim_cnn_forward.6} parent=39 // pred_fallthru
        _
    $region40: #{st_dim_cnn_forward.6} parent=5 // pred_fallthru
      _
  $region6: #{st_dim_cnn_forward.6} parent=0 // loop_footer
    %s13 = sadd.s32 1, %s9
  $region7: #{st_dim_cnn_forward.6} parent=0 // loop_footer_branch
    %8 = sbr.rel target = $region3
  $region8: #{st_dim_cnn_forward.6} parent=0 // loop_exit
    _

// kernel: st_dim_cnn_forward.5
$region0: #{st_dim_cnn_forward.5}
  #allocation0 [shape = 'u32[]', space=smem, size = 0x4, offset = 0x4, fixed_abs, tag = 'smem constant byte address 0x4 - core index']
  #allocation1 [shape = 'u32[144,128]{1,0:T(1,128)}', space=vmem, size = 0x12000, scoped, tag = 'internal scratch']
  %s0 = inlined_call_operand.vmem [shape: bf16[2,9,2,9,8], index: 0, kind: input, shape index: {}]
  %s1 = inlined_call_operand.vmem [shape: bf16[3,3,4,32], index: 1, kind: input, shape index: {}]
  %s2 = inlined_call_operand.vmem [shape: f32[1,32], index: 2, kind: input, shape index: {}]
  %s3 = inlined_call_operand.vmem [shape: bf16[2,8,8,32], index: 3, kind: output, shape index: {}]
  %s4 = sld [smem:[#allocation0]]
  $region45: #{st_dim_cnn_forward.5} parent=0
    _
  %s6 = ssub.s32 1, %s4
  %s7 = scalar_select 0, %s6, %s4
  loop: start=0, step=1, limit=4
  $region2: #{st_dim_cnn_forward.5} parent=0 // loop_pre_header
    _
  $region3: #{st_dim_cnn_forward.5} parent=0 // loop_header
    %s9 = sphi 0, %s13
    %p10 = scmp.ge.s32.totalorder %s9, 4
    %s19 = sphi 0, %s21
    %s22 = sphi 0, %s19
    %s23 = sphi 0, %s22
    %s39 = sphi 0, %s23
    %s43 = sphi 0, %s43
    %s45 = sphi 0, %s43
    %s46 = sphi 0, %s45
    %s60 = sphi 0, %s46
    %s64 = sphi 0, %s64
    %s66 = sphi 0, %s64
    %s67 = sphi 0, %s66
    %s81 = sphi 0, %s67
    %s87 = sphi 0, %s89
    %s90 = sphi 0, %s87
    %s91 = sphi 0, %s90
    %s107 = sphi 0, %s91
  $region4: #{st_dim_cnn_forward.5} parent=0 // loop_header_branch
    %12 = sbr.rel (%p10) target = $region8
  $region5: #{st_dim_cnn_forward.5} parent=0 // loop_body
    %s14 = ssub.s32 %s9, 1
    %s15 = ssub.s32 %s9, 2
    %s16 = sadd.s32 %s9, 1
    %s17 = ssub.s32 %s9, %s16
    %p18 = scmp.eq.s32.totalorder %s17, 0
    %s20 = sadd.s32 %s19, 1
    %s21 = scalar_select %p18, %s19, %s20
    %p24 = pneg %p18
    %p25 = scmp.eq.s32.totalorder %s9, 1
    %p26 = por %p24, %p25
    %p27 = scmp.ne.s32.totalorder %s19, %s22
    %p28 = scmp.eq.s32.totalorder %s9, 0
    %p29 = por %p27, %p28
    %p30 = scmp.ne.s32.totalorder %s19, %s22
    %p31 = scmp.eq.s32.totalorder %s14, 1
    %p32 = por %p30, %p31
    %p33 = scmp.ne.s32.totalorder %s22, %s23
    %p34 = scmp.eq.s32.totalorder %s14, 0
    %p35 = por %p33, %p34
    %p36 = scmp.ne.s32.totalorder %s22, %s23
    %p37 = scmp.eq.s32.totalorder %s15, 1
    %p38 = por %p36, %p37
    %p40 = scmp.ne.s32.totalorder %s23, %s39
    %p41 = scmp.eq.s32.totalorder %s15, 0
    %p42 = por %p40, %p41
    %s44 = sadd.s32 %s43, 1
    %p47 = scmp.eq.s32.totalorder %s9, 1
    %p48 = scmp.ne.s32.totalorder %s43, %s45
    %p49 = scmp.eq.s32.totalorder %s9, 0
    %p50 = por %p48, %p49
    %p51 = scmp.ne.s32.totalorder %s43, %s45
    %p52 = scmp.eq.s32.totalorder %s14, 1
    %p53 = por %p51, %p52
    %p54 = scmp.ne.s32.totalorder %s45, %s46
    %p55 = scmp.eq.s32.totalorder %s14, 0
    %p56 = por %p54, %p55
    %p57 = scmp.ne.s32.totalorder %s45, %s46
    %p58 = scmp.eq.s32.totalorder %s15, 1
    %p59 = por %p57, %p58
    %p61 = scmp.ne.s32.totalorder %s46, %s60
    %p62 = scmp.eq.s32.totalorder %s15, 0
    %p63 = por %p61, %p62
    %s65 = sadd.s32 %s64, 1
    %p68 = scmp.eq.s32.totalorder %s9, 1
    %p69 = scmp.ne.s32.totalorder %s64, %s66
    %p70 = scmp.eq.s32.totalorder %s9, 0
    %p71 = por %p69, %p70
    %p72 = scmp.ne.s32.totalorder %s64, %s66
    %p73 = scmp.eq.s32.totalorder %s14, 1
    %p74 = por %p72, %p73
    %p75 = scmp.ne.s32.totalorder %s66, %s67
    %p76 = scmp.eq.s32.totalorder %s14, 0
    %p77 = por %p75, %p76
    %p78 = scmp.ne.s32.totalorder %s66, %s67
    %p79 = scmp.eq.s32.totalorder %s15, 1
    %p80 = por %p78, %p79
    %p82 = scmp.ne.s32.totalorder %s67, %s81
    %p83 = scmp.eq.s32.totalorder %s15, 0
    %p84 = por %p82, %p83
    %s85 = ssub.s32 %s9, %s16
    %p86 = scmp.eq.s32.totalorder %s85, 0
    %s88 = sadd.s32 %s87, 1
    %s89 = scalar_select %p86, %s87, %s88
    %p92 = pneg %p86
    %p93 = scmp.eq.s32.totalorder %s9, 1
    %p94 = por %p92, %p93
    %p95 = scmp.ne.s32.totalorder %s87, %s90
    %p96 = scmp.eq.s32.totalorder %s9, 0
    %p97 = por %p95, %p96
    %p98 = scmp.ne.s32.totalorder %s87, %s90
    %p99 = scmp.eq.s32.totalorder %s14, 1
    %p100 = por %p98, %p99
    %p101 = scmp.ne.s32.totalorder %s90, %s91
    %p102 = scmp.eq.s32.totalorder %s14, 0
    %p103 = por %p101, %p102
    %p104 = scmp.ne.s32.totalorder %s90, %s91
    %p105 = scmp.eq.s32.totalorder %s15, 1
    %p106 = por %p104, %p105
    %p108 = scmp.ne.s32.totalorder %s91, %s107
    %p109 = scmp.eq.s32.totalorder %s15, 0
    %p110 = por %p108, %p109
    %p111 = scmp.le.s32.totalorder 1, %s9
    %p112 = scmp.lt.s32.totalorder %s9, 3
    %p113 = pnand %p111, %p112
    %p114 = pneg %p113
    // Predicated region
    $region9: #{st_dim_cnn_forward.5} parent=5 // pred_check
      _
    $region10: #{st_dim_cnn_forward.5} parent=5 // pred_check_branch
      %116 = sbr.rel (%p113) target = $region12
    $region11: #{st_dim_cnn_forward.5} parent=5 // pred_region
      %s117 = ssub.s32 %s9, 1
      // Predicated region
      $region13: #{st_dim_cnn_forward.5} parent=11 // pred_check
        %p118 = pneg %p56
      $region14: #{st_dim_cnn_forward.5} parent=11 // pred_check_branch
        %120 = sbr.rel (%p118) target = $region16
      $region15: #{st_dim_cnn_forward.5} parent=11 // pred_region
        _
      $region16: #{st_dim_cnn_forward.5} parent=11 // pred_fallthru
        _
      // Predicated region
      $region17: #{st_dim_cnn_forward.5} parent=11 // pred_check
        %p121 = pneg %p77
      $region18: #{st_dim_cnn_forward.5} parent=11 // pred_check_branch
        %123 = sbr.rel (%p121) target = $region20
      $region19: #{st_dim_cnn_forward.5} parent=11 // pred_region
        _
      $region20: #{st_dim_cnn_forward.5} parent=11 // pred_fallthru
        _
    $region12: #{st_dim_cnn_forward.5} parent=5 // pred_fallthru
      _
    %p124 = scmp.lt.s32.totalorder %s9, 2
    // Predicated region
    $region21: #{st_dim_cnn_forward.5} parent=5 // pred_check
      %p125 = pneg %p124
    $region22: #{st_dim_cnn_forward.5} parent=5 // pred_check_branch
      %127 = sbr.rel (%p125) target = $region24
    $region23: #{st_dim_cnn_forward.5} parent=5 // pred_region
      // Predicated region
      $region25: #{st_dim_cnn_forward.5} parent=23 // pred_check
        %p128 = pneg %p29
      $region26: #{st_dim_cnn_forward.5} parent=23 // pred_check_branch
        %130 = sbr.rel (%p128) target = $region28
      $region27: #{st_dim_cnn_forward.5} parent=23 // pred_region
        %p131 = scmp.lt.s32.totalorder %s9, 1
        %s132 = scalar_select %p131, %s9, 1
        %s133 = smul.addr %s132, 36
        %s134 = smul.addr %s133, 4
        %s135 = scalar_lea.vmem %s0, %s134
      $region28: #{st_dim_cnn_forward.5} parent=23 // pred_fallthru
        _
    $region24: #{st_dim_cnn_forward.5} parent=5 // pred_fallthru
      _
    %p136 = scmp.le.s32.totalorder 1, %s9
    %p137 = scmp.lt.s32.totalorder %s9, 3
    %p138 = pnand %p136, %p137
    %p139 = pneg %p138
    // Predicated region
    $region29: #{st_dim_cnn_forward.5} parent=5 // pred_check
      _
    $region30: #{st_dim_cnn_forward.5} parent=5 // pred_check_branch
      %141 = sbr.rel (%p138) target = $region32
    $region31: #{st_dim_cnn_forward.5} parent=5 // pred_region
      %s142 = ssub.s32 %s9, 1
      %p143 = scmp.lt.s32.totalorder %s14, 1
      %s144 = scalar_select %p143, %s14, 1
      %s145 = smul.addr %s144, 36
      %s146 = smul.addr %s145, 4
      %s147 = scalar_lea.vmem %s0, %s146
      %p148 = pneg %p35
      %p149 = pneg %p32
      %p150 = pneg %p56
      %p151 = pneg %p53
      %p152 = pneg %p77
      %p153 = pneg %p74
      %p154 = pneg %p103
      %p155 = pneg %p100
      %p156 = scmp.lt.s32.totalorder %s14, 1
      %s157 = scalar_select %p156, %s14, 1
      %s158 = smul.addr %s157, 8
      %s159 = smul.addr %s158, 4
      %s160 = scalar_lea.vmem %s3, %s159
      %p161 = scmp.lt.s32.totalorder %s14, 1
      %s162 = scalar_select %p161, %s14, 1
      %s163 = smul.addr %s162, 36
      %s164 = smul.addr %s163, 4
      %s165 = scalar_lea.vmem %s0, %s164
      %p166 = scmp.lt.s32.totalorder %s14, 1
      %s167 = scalar_select %p166, %s14, 1
      %s168 = smul.addr %s167, 8
      %s169 = smul.addr %s168, 4
      %s170 = scalar_lea.vmem %s3, %s169
      %v172 = vld [vmem:[%s165] sm:$0xf]
      %v173 = vld [vmem:[%s165 + $0x10] sm:$0xf]
      %v174 = vld [vmem:[%s165 + $0x20] sm:$0xf]
      %v175 = vld [vmem:[%s165 + $0x30] sm:$0xf]
      %v176 = vld [vmem:[%s165 + $0x40] sm:$0xf]
      %v177 = vld [vmem:[%s165 + $0x50] sm:$0xf]
      %v178 = vld [vmem:[%s165 + $0x60] sm:$0xf]
      %v179 = vld [vmem:[%s165 + $0x70] sm:$0xf]
      %v180 = vld [vmem:[%s1] sm:$0x3]
      %s181 = scalar_lea.vmem %s1, 2
      %v182 = vld [vmem:[%s181] sm:$0x3]
      %v191 = vunpack.c.l.b16 %v172
      %v192 = vunpack.c.l.b16 %v173
      %v193 = vunpack.c.l.b16 %v174
      %v194 = vunpack.c.l.b16 %v175
      %v195 = vunpack.c.l.b16 %v176
      %v196 = vunpack.c.l.b16 %v177
      %v197 = vunpack.c.l.b16 %v178
      %v198 = vunpack.c.l.b16 %v179
      %v199 = vpack.c.b16 %v192, %v191
      %v200 = vpack.c.b16 %v194, %v193
      %v201 = vpack.c.b16 %v196, %v195
      %v202 = vpack.c.b16 %v198, %v197
      %203 = vrot.lane.b32.xlu0 %v199, 124
      %v204 = vpop.permute.xlu0 %203
      %205 = vrot.lane.b32.xlu0 %v200, 124
      %v206 = vpop.permute.xlu0 %205
      %207 = vrot.lane.b32.xlu0 %v201, 124
      %v208 = vpop.permute.xlu0 %207
      %209 = vrot.lane.b32.xlu0 %v202, 124
      %v210 = vpop.permute.xlu0 %209
      %vm211 = vcmask 31744
      %v213 = vsel %vm211, %v204, 0
      %v216 = vsel %vm211, %v206, 0
      %v219 = vsel %vm211, %v208, 0
      %v222 = vsel %vm211, %v210, 0
      %vm224 = vcmask 1041408
      %v226 = vsel %vm224, %v182, 0
      %228 = vmatprep.subr.bf16.mxu0 0
      %229 = vmatpush1.bf16.msra.mxu0 %v226
      %230 = vmatprep.subr.bf16.mxu0 0
      %231 = vmatpush1.bf16.msra.mxu0 0
      %232 = vmatprep.subr.bf16.mxu0 0
      %233 = vmatpush1.bf16.msra.mxu0 0
      %234 = vmatprep.subr.bf16.mxu0 0
      %235 = vmatpush1.bf16.msra.mxu0 0
      %236 = vmatprep.subr.bf16.mxu0 0
      %237 = vmatpush1.bf16.msra.mxu0 0
      %238 = vmatprep.subr.bf16.mxu0 0
      %239 = vmatpush1.bf16.msra.mxu0 0
      %240 = vmatprep.subr.bf16.mxu0 0
      %241 = vmatpush1.bf16.msra.mxu0 0
      %242 = vmatprep.subr.bf16.mxu0 0
      %243 = vmatpush1.bf16.msra.mxu0 0
      %244 = vmatprep.subr.bf16.mxu0 0
      %245 = vmatpush1.bf16.msra.mxu0 0
      %246 = vmatprep.subr.bf16.mxu0 0
      %247 = vmatpush1.bf16.msra.mxu0 0
      %248 = vmatprep.subr.bf16.mxu0 0
      %249 = vmatpush1.bf16.msra.mxu0 0
      %250 = vmatprep.subr.bf16.mxu0 0
      %251 = vmatpush1.bf16.msra.mxu0 0
      %252 = vmatprep.subr.bf16.mxu0 0
      %253 = vmatpush1.bf16.msra.mxu0 0
      %254 = vmatprep.subr.bf16.mxu0 0
      %255 = vmatpush1.bf16.msra.mxu0 0
      %256 = vmatprep.subr.bf16.mxu0 0
      %257 = vmatpush1.bf16.msra.mxu0 0
      %258 = vmatprep.subr.bf16.mxu0 0
      %259 = vmatpush1.bf16.msra.mxu0 0
      %260 = vmatprep.mubr.bf16.mxu0 0
      %261 = vmatmul.mubr.bf16.gmra.mrb[0].mxu0 %v213
      %v262 = vpop.f32.mrb[0].mxu0
      %v263 = vadd.f32 0.0, %v262
      %v264 = vpop.f32.mrb[0].mxu0
      %v265 = vpop.f32.mrb[0].mxu0
      %v266 = vadd.f32 0.0, %v265
      %v267 = vpop.f32.mrb[0].mxu0
      %268 = vmatprep.mubr.bf16.mxu0 0
      %269 = vmatmul.mubr.bf16.gmra.mrb[0].mxu0 %v216
      %v270 = vpop.f32.mrb[0].mxu0
      %v271 = vadd.f32 0.0, %v270
      %v272 = vpop.f32.mrb[0].mxu0
      %v273 = vpop.f32.mrb[0].mxu0
      %v274 = vadd.f32 0.0, %v273
      %v275 = vpop.f32.mrb[0].mxu0
      %276 = vmatprep.mubr.bf16.mxu0 0
      %277 = vmatmul.mubr.bf16.gmra.mrb[0].mxu0 %v219
      %v278 = vpop.f32.mrb[0].mxu0
      %v279 = vadd.f32 0.0, %v278
      %v280 = vpop.f32.mrb[0].mxu0
      %v281 = vpop.f32.mrb[0].mxu0
      %v282 = vadd.f32 0.0, %v281
      %v283 = vpop.f32.mrb[0].mxu0
      %284 = vmatprep.mubr.bf16.mxu0 0
      %285 = vmatmul.mubr.bf16.gmra.mrb[0].mxu0 %v222
      %v286 = vpop.f32.mrb[0].mxu0
      %v287 = vadd.f32 0.0, %v286
      %v288 = vpop.f32.mrb[0].mxu0
      %v289 = vpop.f32.mrb[0].mxu0
      %v290 = vadd.f32 0.0, %v289
      %v291 = vpop.f32.mrb[0].mxu0
      %292 = vdwg.mxu0
      %v294 = vsel %vm211, %v199, 0
      %v297 = vsel %vm211, %v200, 0
      %v300 = vsel %vm211, %v201, 0
      %v303 = vsel %vm211, %v202, 0
      %v306 = vsel %vm224, %v180, 0
      %308 = vmatprep.subr.bf16.mxu0 0
      %309 = vmatpush1.bf16.msra.mxu0 %v306
      %310 = vmatprep.subr.bf16.mxu0 0
      %311 = vmatpush1.bf16.msra.mxu0 0
      %312 = vmatprep.subr.bf16.mxu0 0
      %313 = vmatpush1.bf16.msra.mxu0 0
      %314 = vmatprep.subr.bf16.mxu0 0
      %315 = vmatpush1.bf16.msra.mxu0 0
      %316 = vmatprep.subr.bf16.mxu0 0
      %317 = vmatpush1.bf16.msra.mxu0 0
      %318 = vmatprep.subr.bf16.mxu0 0
      %319 = vmatpush1.bf16.msra.mxu0 0
      %320 = vmatprep.subr.bf16.mxu0 0
      %321 = vmatpush1.bf16.msra.mxu0 0
      %322 = vmatprep.subr.bf16.mxu0 0
      %323 = vmatpush1.bf16.msra.mxu0 0
      %324 = vmatprep.subr.bf16.mxu0 0
      %325 = vmatpush1.bf16.msra.mxu0 0
      %326 = vmatprep.subr.bf16.mxu0 0
      %327 = vmatpush1.bf16.msra.mxu0 0
      %328 = vmatprep.subr.bf16.mxu0 0
      %329 = vmatpush1.bf16.msra.mxu0 0
      %330 = vmatprep.subr.bf16.mxu0 0
      %331 = vmatpush1.bf16.msra.mxu0 0
      %332 = vmatprep.subr.bf16.mxu0 0
      %333 = vmatpush1.bf16.msra.mxu0 0
      %334 = vmatprep.subr.bf16.mxu0 0
      %335 = vmatpush1.bf16.msra.mxu0 0
      %336 = vmatprep.subr.bf16.mxu0 0
      %337 = vmatpush1.bf16.msra.mxu0 0
      %338 = vmatprep.subr.bf16.mxu0 0
      %339 = vmatpush1.bf16.msra.mxu0 0
      %340 = vmatprep.mubr.bf16.mxu0 0
      %341 = vmatmul.mubr.bf16.gmra.mrb[0].mxu0 %v294
      %v342 = vpop.f32.mrb[0].mxu0
      %v343 = vadd.f32 %v263, %v342
      %v344 = vpop.f32.mrb[0].mxu0
      %v345 = vpop.f32.mrb[0].mxu0
      %v346 = vadd.f32 %v266, %v345
      %v347 = vpop.f32.mrb[0].mxu0
      %348 = vmatprep.mubr.bf16.mxu0 0
      %349 = vmatmul.mubr.bf16.gmra.mrb[0].mxu0 %v297
      %v350 = vpop.f32.mrb[0].mxu0
      %v351 = vadd.f32 %v271, %v350
      %v352 = vpop.f32.mrb[0].mxu0
      %v353 = vpop.f32.mrb[0].mxu0
      %v354 = vadd.f32 %v274, %v353
      %v355 = vpop.f32.mrb[0].mxu0
      %356 = vmatprep.mubr.bf16.mxu0 0
      %357 = vmatmul.mubr.bf16.gmra.mrb[0].mxu0 %v300
      %v358 = vpop.f32.mrb[0].mxu0
      %v359 = vadd.f32 %v279, %v358
      %v360 = vpop.f32.mrb[0].mxu0
      %v361 = vpop.f32.mrb[0].mxu0
      %v362 = vadd.f32 %v282, %v361
      %v363 = vpop.f32.mrb[0].mxu0
      %364 = vmatprep.mubr.bf16.mxu0 0
      %365 = vmatmul.mubr.bf16.gmra.mrb[0].mxu0 %v303
      %v366 = vpop.f32.mrb[0].mxu0
      %v367 = vadd.f32 %v287, %v366
      %v368 = vpop.f32.mrb[0].mxu0
      %v369 = vpop.f32.mrb[0].mxu0
      %v370 = vadd.f32 %v290, %v369
      %v371 = vpop.f32.mrb[0].mxu0
      %372 = vdwg.mxu0
      %v373 = vld [vmem:[%s165] sm:$0xf]
      %v374 = vld [vmem:[%s165 + $0x4] sm:$0x1]
      %v375 = vld [vmem:[%s165 + $0x10] sm:$0xf]
      %v376 = vld [vmem:[%s165 + $0x14] sm:$0x1]
      %v377 = vld [vmem:[%s165 + $0x20] sm:$0xf]
      %v378 = vld [vmem:[%s165 + $0x24] sm:$0x1]
      %v379 = vld [vmem:[%s165 + $0x30] sm:$0xf]
      %v380 = vld [vmem:[%s165 + $0x34] sm:$0x1]
      %v381 = vld [vmem:[%s165 + $0x40] sm:$0xf]
      %v382 = vld [vmem:[%s165 + $0x44] sm:$0x1]
      %v383 = vld [vmem:[%s165 + $0x50] sm:$0xf]
      %v384 = vld [vmem:[%s165 + $0x54] sm:$0x1]
      %v385 = vld [vmem:[%s165 + $0x60] sm:$0xf]
      %v386 = vld [vmem:[%s165 + $0x64] sm:$0x1]
      %v387 = vld [vmem:[%s165 + $0x70] sm:$0xf]
      %v388 = vld [vmem:[%s165 + $0x74] sm:$0x1]
      %vm389 = vsmask.f32 3328
      %vm390 = vsmask.f32 7440
      %vm391 = vmor %vm389, %vm390
      %v393 = vshrl.u32 %v373, 16
      %v395 = vrot.slane %v393, 4
      %v396 = vshll.u32 %v373, 16
      %v398 = vrot.slane %v396, 5
      %v399 = vor.u32 %v395, %v398
      %v400 = vrot.slane %v399, 4
      %v402 = vshll.u32 %v374, 16
      %v404 = vrot.slane %v402, 5
      %v405 = vsel %vm391, %v400, %v404
      %v407 = vshrl.u32 %v375, 16
      %v409 = vrot.slane %v407, 4
      %v410 = vshll.u32 %v375, 16
      %v412 = vrot.slane %v410, 5
      %v413 = vor.u32 %v409, %v412
      %v414 = vrot.slane %v413, 4
      %v416 = vshll.u32 %v376, 16
      %v418 = vrot.slane %v416, 5
      %v419 = vsel %vm391, %v414, %v418
      %v421 = vshrl.u32 %v377, 16
      %v423 = vrot.slane %v421, 4
      %v424 = vshll.u32 %v377, 16
      %v426 = vrot.slane %v424, 5
      %v427 = vor.u32 %v423, %v426
      %v428 = vrot.slane %v427, 4
      %v430 = vshll.u32 %v378, 16
      %v432 = vrot.slane %v430, 5
      %v433 = vsel %vm391, %v428, %v432
      %v435 = vshrl.u32 %v379, 16
      %v437 = vrot.slane %v435, 4
      %v438 = vshll.u32 %v379, 16
      %v440 = vrot.slane %v438, 5
      %v441 = vor.u32 %v437, %v440
      %v442 = vrot.slane %v441, 4
      %v444 = vshll.u32 %v380, 16
      %v446 = vrot.slane %v444, 5
      %v447 = vsel %vm391, %v442, %v446
      %v449 = vshrl.u32 %v381, 16
      %v451 = vrot.slane %v449, 4
      %v452 = vshll.u32 %v381, 16
      %v454 = vrot.slane %v452, 5
      %v455 = vor.u32 %v451, %v454
      %v456 = vrot.slane %v455, 4
      %v458 = vshll.u32 %v382, 16
      %v460 = vrot.slane %v458, 5
      %v461 = vsel %vm391, %v456, %v460
      %v463 = vshrl.u32 %v383, 16
      %v465 = vrot.slane %v463, 4
      %v466 = vshll.u32 %v383, 16
      %v468 = vrot.slane %v466, 5
      %v469 = vor.u32 %v465, %v468
      %v470 = vrot.slane %v469, 4
      %v472 = vshll.u32 %v384, 16
      %v474 = vrot.slane %v472, 5
      %v475 = vsel %vm391, %v470, %v474
      %v477 = vshrl.u32 %v385, 16
      %v479 = vrot.slane %v477, 4
      %v480 = vshll.u32 %v385, 16
      %v482 = vrot.slane %v480, 5
      %v483 = vor.u32 %v479, %v482
      %v484 = vrot.slane %v483, 4
      %v486 = vshll.u32 %v386, 16
      %v488 = vrot.slane %v486, 5
      %v489 = vsel %vm391, %v484, %v488
      %v491 = vshrl.u32 %v387, 16
      %v493 = vrot.slane %v491, 4
      %v494 = vshll.u32 %v387, 16
      %v496 = vrot.slane %v494, 5
      %v497 = vor.u32 %v493, %v496
      %v498 = vrot.slane %v497, 4
      %v500 = vshll.u32 %v388, 16
      %v502 = vrot.slane %v500, 5
      %v503 = vsel %vm391, %v498, %v502
      %s504 = scalar_lea.vmem %s1, 4
      %v505 = vld [vmem:[%s504] sm:$0x3]
      %v506 = vunpack.c.l.b16 %v405
      %v507 = vunpack.c.l.b16 %v419
      %v508 = vunpack.c.l.b16 %v433
      %v509 = vunpack.c.l.b16 %v447
      %v510 = vunpack.c.l.b16 %v461
      %v511 = vunpack.c.l.b16 %v475
      %v512 = vunpack.c.l.b16 %v489
      %v513 = vunpack.c.l.b16 %v503
      %v514 = vpack.c.b16 %v507, %v506
      %v515 = vpack.c.b16 %v509, %v508
      %v516 = vpack.c.b16 %v511, %v510
      %v517 = vpack.c.b16 %v513, %v512
      %v519 = vsel %vm211, %v514, 0
      %v522 = vsel %vm211, %v515, 0
      %v525 = vsel %vm211, %v516, 0
      %v528 = vsel %vm211, %v517, 0
      %v531 = vsel %vm224, %v505, 0
      %533 = vmatprep.subr.bf16.mxu0 0
      %534 = vmatpush1.bf16.msra.mxu0 %v531
      %535 = vmatprep.subr.bf16.mxu0 0
      %536 = vmatpush1.bf16.msra.mxu0 0
      %537 = vmatprep.subr.bf16.mxu0 0
      %538 = vmatpush1.bf16.msra.mxu0 0
      %539 = vmatprep.subr.bf16.mxu0 0
      %540 = vmatpush1.bf16.msra.mxu0 0
      %541 = vmatprep.subr.bf16.mxu0 0
      %542 = vmatpush1.bf16.msra.mxu0 0
      %543 = vmatprep.subr.bf16.mxu0 0
      %544 = vmatpush1.bf16.msra.mxu0 0
      %545 = vmatprep.subr.bf16.mxu0 0
      %546 = vmatpush1.bf16.msra.mxu0 0
      %547 = vmatprep.subr.bf16.mxu0 0
      %548 = vmatpush1.bf16.msra.mxu0 0
      %549 = vmatprep.subr.bf16.mxu0 0
      %550 = vmatpush1.bf16.msra.mxu0 0
      %551 = vmatprep.subr.bf16.mxu0 0
      %552 = vmatpush1.bf16.msra.mxu0 0
      %553 = vmatprep.subr.bf16.mxu0 0
      %554 = vmatpush1.bf16.msra.mxu0 0
      %555 = vmatprep.subr.bf16.mxu0 0
      %556 = vmatpush1.bf16.msra.mxu0 0
      %557 = vmatprep.subr.bf16.mxu0 0
      %558 = vmatpush1.bf16.msra.mxu0 0
      %559 = vmatprep.subr.bf16.mxu0 0
      %560 = vmatpush1.bf16.msra.mxu0 0
      %561 = vmatprep.subr.bf16.mxu0 0
      %562 = vmatpush1.bf16.msra.mxu0 0
      %563 = vmatprep.subr.bf16.mxu0 0
      %564 = vmatpush1.bf16.msra.mxu0 0
      %565 = vmatprep.mubr.bf16.mxu0 0
      %566 = vmatmul.mubr.bf16.gmra.mrb[0].mxu0 %v519
      %v567 = vpop.f32.mrb[0].mxu0
      %v568 = vadd.f32 0.0, %v567
      %v569 = vpop.f32.mrb[0].mxu0
      %v570 = vpop.f32.mrb[0].mxu0
      %v571 = vadd.f32 0.0, %v570
      %v572 = vpop.f32.mrb[0].mxu0
      %573 = vmatprep.mubr.bf16.mxu0 0
      %574 = vmatmul.mubr.bf16.gmra.mrb[0].mxu0 %v522
      %v575 = vpop.f32.mrb[0].mxu0
      %v576 = vadd.f32 0.0, %v575
      %v577 = vpop.f32.mrb[0].mxu0
      %v578 = vpop.f32.mrb[0].mxu0
      %v579 = vadd.f32 0.0, %v578
      %v580 = vpop.f32.mrb[0].mxu0
      %581 = vmatprep.mubr.bf16.mxu0 0
      %582 = vmatmul.mubr.bf16.gmra.mrb[0].mxu0 %v525
      %v583 = vpop.f32.mrb[0].mxu0
      %v584 = vadd.f32 0.0, %v583
      %v585 = vpop.f32.mrb[0].mxu0
      %v586 = vpop.f32.mrb[0].mxu0
      %v587 = vadd.f32 0.0, %v586
      %v588 = vpop.f32.mrb[0].mxu0
      %589 = vmatprep.mubr.bf16.mxu0 0
      %590 = vmatmul.mubr.bf16.gmra.mrb[0].mxu0 %v528
      %v591 = vpop.f32.mrb[0].mxu0
      %v592 = vadd.f32 0.0, %v591
      %v593 = vpop.f32.mrb[0].mxu0
      %v594 = vpop.f32.mrb[0].mxu0
      %v595 = vadd.f32 0.0, %v594
      %v596 = vpop.f32.mrb[0].mxu0
      %597 = vdwg.mxu0
      %v598 = vadd.f32 %v343, %v568
      %v599 = vadd.f32 %v346, %v571
      %v600 = vadd.f32 %v351, %v576
      %v601 = vadd.f32 %v354, %v579
      %v602 = vadd.f32 %v359, %v584
      %v603 = vadd.f32 %v362, %v587
      %v604 = vadd.f32 %v367, %v592
      %v605 = vadd.f32 %v370, %v595
      %s606 = scalar_lea.vmem %s165, 8
      %v607 = vld [vmem:[%s606] sm:$0xf]
      %v608 = vld [vmem:[%s606 + $0x10] sm:$0xf]
      %v609 = vld [vmem:[%s606 + $0x20] sm:$0xf]
      %v610 = vld [vmem:[%s606 + $0x30] sm:$0xf]
      %v611 = vld [vmem:[%s606 + $0x40] sm:$0xf]
      %v612 = vld [vmem:[%s606 + $0x50] sm:$0xf]
      %v613 = vld [vmem:[%s606 + $0x60] sm:$0xf]
      %v614 = vld [vmem:[%s606 + $0x70] sm:$0xf]
      %s615 = scalar_lea.vmem %s1, 6
      %v616 = vld [vmem:[%s615] sm:$0x3]
      %v625 = vunpack.c.l.b16 %v607
      %v626 = vunpack.c.l.b16 %v608
      %v627 = vunpack.c.l.b16 %v609
      %v628 = vunpack.c.l.b16 %v610
      %v629 = vunpack.c.l.b16 %v611
      %v630 = vunpack.c.l.b16 %v612
      %v631 = vunpack.c.l.b16 %v613
      %v632 = vunpack.c.l.b16 %v614
      %v633 = vpack.c.b16 %v626, %v625
      %v634 = vpack.c.b16 %v628, %v627
      %v635 = vpack.c.b16 %v630, %v629
      %v636 = vpack.c.b16 %v632, %v631
      %v638 = vsel %vm211, %v633, 0
      %v641 = vsel %vm211, %v634, 0
      %v644 = vsel %vm211, %v635, 0
      %v647 = vsel %vm211, %v636, 0
      %v650 = vsel %vm224, %v616, 0
      %652 = vmatprep.subr.bf16.mxu0 0
      %653 = vmatpush1.bf16.msra.mxu0 %v650
      %654 = vmatprep.subr.bf16.mxu0 0
      %655 = vmatpush1.bf16.msra.mxu0 0
      %656 = vmatprep.subr.bf16.mxu0 0
      %657 = vmatpush1.bf16.msra.mxu0 0
      %658 = vmatprep.subr.bf16.mxu0 0
      %659 = vmatpush1.bf16.msra.mxu0 0
      %660 = vmatprep.subr.bf16.mxu0 0
      %661 = vmatpush1.bf16.msra.mxu0 0
      %662 = vmatprep.subr.bf16.mxu0 0
      %663 = vmatpush1.bf16.msra.mxu0 0
      %664 = vmatprep.subr.bf16.mxu0 0
      %665 = vmatpush1.bf16.msra.mxu0 0
      %666 = vmatprep.subr.bf16.mxu0 0
      %667 = vmatpush1.bf16.msra.mxu0 0
      %668 = vmatprep.subr.bf16.mxu0 0
      %669 = vmatpush1.bf16.msra.mxu0 0
      %670 = vmatprep.subr.bf16.mxu0 0
      %671 = vmatpush1.bf16.msra.mxu0 0
      %672 = vmatprep.subr.bf16.mxu0 0
      %673 = vmatpush1.bf16.msra.mxu0 0
      %674 = vmatprep.subr.bf16.mxu0 0
      %675 = vmatpush1.bf16.msra.mxu0 0
      %676 = vmatprep.subr.bf16.mxu0 0
      %677 = vmatpush1.bf16.msra.mxu0 0
      %678 = vmatprep.subr.bf16.mxu0 0
      %679 = vmatpush1.bf16.msra.mxu0 0
      %680 = vmatprep.subr.bf16.mxu0 0
      %681 = vmatpush1.bf16.msra.mxu0 0
      %682 = vmatprep.subr.bf16.mxu0 0
      %683 = vmatpush1.bf16.msra.mxu0 0
      %684 = vmatprep.mubr.bf16.mxu0 0
      %685 = vmatmul.mubr.bf16.gmra.mrb[0].mxu0 %v638
      %v686 = vpop.f32.mrb[0].mxu0
      %v687 = vadd.f32 0.0, %v686
      %v688 = vpop.f32.mrb[0].mxu0
      %v689 = vpop.f32.mrb[0].mxu0
      %v690 = vadd.f32 0.0, %v689
      %v691 = vpop.f32.mrb[0].mxu0
      %692 = vmatprep.mubr.bf16.mxu0 0
      %693 = vmatmul.mubr.bf16.gmra.mrb[0].mxu0 %v641
      %v694 = vpop.f32.mrb[0].mxu0
      %v695 = vadd.f32 0.0, %v694
      %v696 = vpop.f32.mrb[0].mxu0
      %v697 = vpop.f32.mrb[0].mxu0
      %v698 = vadd.f32 0.0, %v697
      %v699 = vpop.f32.mrb[0].mxu0
      %700 = vmatprep.mubr.bf16.mxu0 0
      %701 = vmatmul.mubr.bf16.gmra.mrb[0].mxu0 %v644
      %v702 = vpop.f32.mrb[0].mxu0
      %v703 = vadd.f32 0.0, %v702
      %v704 = vpop.f32.mrb[0].mxu0
      %v705 = vpop.f32.mrb[0].mxu0
      %v706 = vadd.f32 0.0, %v705
      %v707 = vpop.f32.mrb[0].mxu0
      %708 = vmatprep.mubr.bf16.mxu0 0
      %709 = vmatmul.mubr.bf16.gmra.mrb[0].mxu0 %v647
      %v710 = vpop.f32.mrb[0].mxu0
      %v711 = vadd.f32 0.0, %v710
      %v712 = vpop.f32.mrb[0].mxu0
      %v713 = vpop.f32.mrb[0].mxu0
      %v714 = vadd.f32 0.0, %v713
      %v715 = vpop.f32.mrb[0].mxu0
      %716 = vdwg.mxu0
      %v717 = vadd.f32 %v598, %v687
      %v718 = vadd.f32 %v599, %v690
      %v719 = vadd.f32 %v600, %v695
      %v720 = vadd.f32 %v601, %v698
      %v721 = vadd.f32 %v602, %v703
      %v722 = vadd.f32 %v603, %v706
      %v723 = vadd.f32 %v604, %v711
      %v724 = vadd.f32 %v605, %v714
      %s725 = scalar_lea.vmem %s1, 8
      %v726 = vld [vmem:[%s725] sm:$0x3]
      %727 = vrot.lane.b32.xlu0 %v633, 124
      %v728 = vpop.permute.xlu0 %727
      %729 = vrot.lane.b32.xlu0 %v634, 124
      %v730 = vpop.permute.xlu0 %729
      %731 = vrot.lane.b32.xlu0 %v635, 124
      %v732 = vpop.permute.xlu0 %731
      %733 = vrot.lane.b32.xlu0 %v636, 124
      %v734 = vpop.permute.xlu0 %733
      %v736 = vsel %vm211, %v728, 0
      %v739 = vsel %vm211, %v730, 0
      %v742 = vsel %vm211, %v732, 0
      %v745 = vsel %vm211, %v734, 0
      %v748 = vsel %vm224, %v726, 0
      %750 = vmatprep.subr.bf16.mxu0 0
      %751 = vmatpush1.bf16.msra.mxu0 %v748
      %752 = vmatprep.subr.bf16.mxu0 0
      %753 = vmatpush1.bf16.msra.mxu0 0
      %754 = vmatprep.subr.bf16.mxu0 0
      %755 = vmatpush1.bf16.msra.mxu0 0
      %756 = vmatprep.subr.bf16.mxu0 0
      %757 = vmatpush1.bf16.msra.mxu0 0
      %758 = vmatprep.subr.bf16.mxu0 0
      %759 = vmatpush1.bf16.msra.mxu0 0
      %760 = vmatprep.subr.bf16.mxu0 0
      %761 = vmatpush1.bf16.msra.mxu0 0
      %762 = vmatprep.subr.bf16.mxu0 0
      %763 = vmatpush1.bf16.msra.mxu0 0
      %764 = vmatprep.subr.bf16.mxu0 0
      %765 = vmatpush1.bf16.msra.mxu0 0
      %766 = vmatprep.subr.bf16.mxu0 0
      %767 = vmatpush1.bf16.msra.mxu0 0
      %768 = vmatprep.subr.bf16.mxu0 0
      %769 = vmatpush1.bf16.msra.mxu0 0
      %770 = vmatprep.subr.bf16.mxu0 0
      %771 = vmatpush1.bf16.msra.mxu0 0
      %772 = vmatprep.subr.bf16.mxu0 0
      %773 = vmatpush1.bf16.msra.mxu0 0
      %774 = vmatprep.subr.bf16.mxu0 0
      %775 = vmatpush1.bf16.msra.mxu0 0
      %776 = vmatprep.subr.bf16.mxu0 0
      %777 = vmatpush1.bf16.msra.mxu0 0
      %778 = vmatprep.subr.bf16.mxu0 0
      %779 = vmatpush1.bf16.msra.mxu0 0
      %780 = vmatprep.subr.bf16.mxu0 0
      %781 = vmatpush1.bf16.msra.mxu0 0
      %782 = vmatprep.mubr.bf16.mxu0 0
      %783 = vmatmul.mubr.bf16.gmra.mrb[0].mxu0 %v736
      %v784 = vpop.f32.mrb[0].mxu0
      %v785 = vadd.f32 0.0, %v784
      %v786 = vpop.f32.mrb[0].mxu0
      %v787 = vpop.f32.mrb[0].mxu0
      %v788 = vadd.f32 0.0, %v787
      %v789 = vpop.f32.mrb[0].mxu0
      %790 = vmatprep.mubr.bf16.mxu0 0
      %791 = vmatmul.mubr.bf16.gmra.mrb[0].mxu0 %v739
      %v792 = vpop.f32.mrb[0].mxu0
      %v793 = vadd.f32 0.0, %v792
      %v794 = vpop.f32.mrb[0].mxu0
      %v795 = vpop.f32.mrb[0].mxu0
      %v796 = vadd.f32 0.0, %v795
      %v797 = vpop.f32.mrb[0].mxu0
      %798 = vmatprep.mubr.bf16.mxu0 0
      %799 = vmatmul.mubr.bf16.gmra.mrb[0].mxu0 %v742
      %v800 = vpop.f32.mrb[0].mxu0
      %v801 = vadd.f32 0.0, %v800
      %v802 = vpop.f32.mrb[0].mxu0
      %v803 = vpop.f32.mrb[0].mxu0
      %v804 = vadd.f32 0.0, %v803
      %v805 = vpop.f32.mrb[0].mxu0
      %806 = vmatprep.mubr.bf16.mxu0 0
      %807 = vmatmul.mubr.bf16.gmra.mrb[0].mxu0 %v745
      %v808 = vpop.f32.mrb[0].mxu0
      %v809 = vadd.f32 0.0, %v808
      %v810 = vpop.f32.mrb[0].mxu0
      %v811 = vpop.f32.mrb[0].mxu0
      %v812 = vadd.f32 0.0, %v811
      %v813 = vpop.f32.mrb[0].mxu0
      %814 = vdwg.mxu0
      %v815 = vadd.f32 %v717, %v785
      %v816 = vadd.f32 %v718, %v788
      %v817 = vadd.f32 %v719, %v793
      %v818 = vadd.f32 %v720, %v796
      %v819 = vadd.f32 %v721, %v801
      %v820 = vadd.f32 %v722, %v804
      %v821 = vadd.f32 %v723, %v809
      %v822 = vadd.f32 %v724, %v812
      %v823 = vld [vmem:[%s606] sm:$0xf]
      %v824 = vld [vmem:[%s606 + $0x4] sm:$0x1]
      %v825 = vld [vmem:[%s606 + $0x10] sm:$0xf]
      %v826 = vld [vmem:[%s606 + $0x14] sm:$0x1]
      %v827 = vld [vmem:[%s606 + $0x20] sm:$0xf]
      %v828 = vld [vmem:[%s606 + $0x24] sm:$0x1]
      %v829 = vld [vmem:[%s606 + $0x30] sm:$0xf]
      %v830 = vld [vmem:[%s606 + $0x34] sm:$0x1]
      %v831 = vld [vmem:[%s606 + $0x40] sm:$0xf]
      %v832 = vld [vmem:[%s606 + $0x44] sm:$0x1]
      %v833 = vld [vmem:[%s606 + $0x50] sm:$0xf]
      %v834 = vld [vmem:[%s606 + $0x54] sm:$0x1]
      %v835 = vld [vmem:[%s606 + $0x60] sm:$0xf]
      %v836 = vld [vmem:[%s606 + $0x64] sm:$0x1]
      %v837 = vld [vmem:[%s606 + $0x70] sm:$0xf]
      %v838 = vld [vmem:[%s606 + $0x74] sm:$0x1]
      %v840 = vshrl.u32 %v823, 16
      %v842 = vrot.slane %v840, 4
      %v843 = vshll.u32 %v823, 16
      %v845 = vrot.slane %v843, 5
      %v846 = vor.u32 %v842, %v845
      %v847 = vrot.slane %v846, 4
      %v849 = vshll.u32 %v824, 16
      %v851 = vrot.slane %v849, 5
      %v852 = vsel %vm391, %v847, %v851
      %v854 = vshrl.u32 %v825, 16
      %v856 = vrot.slane %v854, 4
      %v857 = vshll.u32 %v825, 16
      %v859 = vrot.slane %v857, 5
      %v860 = vor.u32 %v856, %v859
      %v861 = vrot.slane %v860, 4
      %v863 = vshll.u32 %v826, 16
      %v865 = vrot.slane %v863, 5
      %v866 = vsel %vm391, %v861, %v865
      %v868 = vshrl.u32 %v827, 16
      %v870 = vrot.slane %v868, 4
      %v871 = vshll.u32 %v827, 16
      %v873 = vrot.slane %v871, 5
      %v874 = vor.u32 %v870, %v873
      %v875 = vrot.slane %v874, 4
      %v877 = vshll.u32 %v828, 16
      %v879 = vrot.slane %v877, 5
      %v880 = vsel %vm391, %v875, %v879
      %v882 = vshrl.u32 %v829, 16
      %v884 = vrot.slane %v882, 4
      %v885 = vshll.u32 %v829, 16
      %v887 = vrot.slane %v885, 5
      %v888 = vor.u32 %v884, %v887
      %v889 = vrot.slane %v888, 4
      %v891 = vshll.u32 %v830, 16
      %v893 = vrot.slane %v891, 5
      %v894 = vsel %vm391, %v889, %v893
      %v896 = vshrl.u32 %v831, 16
      %v898 = vrot.slane %v896, 4
      %v899 = vshll.u32 %v831, 16
      %v901 = vrot.slane %v899, 5
      %v902 = vor.u32 %v898, %v901
      %v903 = vrot.slane %v902, 4
      %v905 = vshll.u32 %v832, 16
      %v907 = vrot.slane %v905, 5
      %v908 = vsel %vm391, %v903, %v907
      %v910 = vshrl.u32 %v833, 16
      %v912 = vrot.slane %v910, 4
      %v913 = vshll.u32 %v833, 16
      %v915 = vrot.slane %v913, 5
      %v916 = vor.u32 %v912, %v915
      %v917 = vrot.slane %v916, 4
      %v919 = vshll.u32 %v834, 16
      %v921 = vrot.slane %v919, 5
      %v922 = vsel %vm391, %v917, %v921
      %v924 = vshrl.u32 %v835, 16
      %v926 = vrot.slane %v924, 4
      %v927 = vshll.u32 %v835, 16
      %v929 = vrot.slane %v927, 5
      %v930 = vor.u32 %v926, %v929
      %v931 = vrot.slane %v930, 4
      %v933 = vshll.u32 %v836, 16
      %v935 = vrot.slane %v933, 5
      %v936 = vsel %vm391, %v931, %v935
      %v938 = vshrl.u32 %v837, 16
      %v940 = vrot.slane %v938, 4
      %v941 = vshll.u32 %v837, 16
      %v943 = vrot.slane %v941, 5
      %v944 = vor.u32 %v940, %v943
      %v945 = vrot.slane %v944, 4
      %v947 = vshll.u32 %v838, 16
      %v949 = vrot.slane %v947, 5
      %v950 = vsel %vm391, %v945, %v949
      %s951 = scalar_lea.vmem %s1, 10
      %v952 = vld [vmem:[%s951] sm:$0x3]
      %v953 = vunpack.c.l.b16 %v852
      %v954 = vunpack.c.l.b16 %v866
      %v955 = vunpack.c.l.b16 %v880
      %v956 = vunpack.c.l.b16 %v894
      %v957 = vunpack.c.l.b16 %v908
      %v958 = vunpack.c.l.b16 %v922
      %v959 = vunpack.c.l.b16 %v936
      %v960 = vunpack.c.l.b16 %v950
      %v961 = vpack.c.b16 %v954, %v953
      %v962 = vpack.c.b16 %v956, %v955
      %v963 = vpack.c.b16 %v958, %v957
      %v964 = vpack.c.b16 %v960, %v959
      %v966 = vsel %vm211, %v961, 0
      %v969 = vsel %vm211, %v962, 0
      %v972 = vsel %vm211, %v963, 0
      %v975 = vsel %vm211, %v964, 0
      %v978 = vsel %vm224, %v952, 0
      %980 = vmatprep.subr.bf16.mxu0 0
      %981 = vmatpush1.bf16.msra.mxu0 %v978
      %982 = vmatprep.subr.bf16.mxu0 0
      %983 = vmatpush1.bf16.msra.mxu0 0
      %984 = vmatprep.subr.bf16.mxu0 0
      %985 = vmatpush1.bf16.msra.mxu0 0
      %986 = vmatprep.subr.bf16.mxu0 0
      %987 = vmatpush1.bf16.msra.mxu0 0
      %988 = vmatprep.subr.bf16.mxu0 0
      %989 = vmatpush1.bf16.msra.mxu0 0
      %990 = vmatprep.subr.bf16.mxu0 0
      %991 = vmatpush1.bf16.msra.mxu0 0
      %992 = vmatprep.subr.bf16.mxu0 0
      %993 = vmatpush1.bf16.msra.mxu0 0
      %994 = vmatprep.subr.bf16.mxu0 0
      %995 = vmatpush1.bf16.msra.mxu0 0
      %996 = vmatprep.subr.bf16.mxu0 0
      %997 = vmatpush1.bf16.msra.mxu0 0
      %998 = vmatprep.subr.bf16.mxu0 0
      %999 = vmatpush1.bf16.msra.mxu0 0
      %1000 = vmatprep.subr.bf16.mxu0 0
      %1001 = vmatpush1.bf16.msra.mxu0 0
      %1002 = vmatprep.subr.bf16.mxu0 0
      %1003 = vmatpush1.bf16.msra.mxu0 0
      %1004 = vmatprep.subr.bf16.mxu0 0
      %1005 = vmatpush1.bf16.msra.mxu0 0
      %1006 = vmatprep.subr.bf16.mxu0 0
      %1007 = vmatpush1.bf16.msra.mxu0 0
      %1008 = vmatprep.subr.bf16.mxu0 0
      %1009 = vmatpush1.bf16.msra.mxu0 0
      %1010 = vmatprep.subr.bf16.mxu0 0
      %1011 = vmatpush1.bf16.msra.mxu0 0
      %1012 = vmatprep.mubr.bf16.mxu0 0
      %1013 = vmatmul.mubr.bf16.gmra.mrb[0].mxu0 %v966
      %v1014 = vpop.f32.mrb[0].mxu0
      %v1015 = vadd.f32 0.0, %v1014
      %v1016 = vpop.f32.mrb[0].mxu0
      %v1017 = vpop.f32.mrb[0].mxu0
      %v1018 = vadd.f32 0.0, %v1017
      %v1019 = vpop.f32.mrb[0].mxu0
      %1020 = vmatprep.mubr.bf16.mxu0 0
      %1021 = vmatmul.mubr.bf16.gmra.mrb[0].mxu0 %v969
      %v1022 = vpop.f32.mrb[0].mxu0
      %v1023 = vadd.f32 0.0, %v1022
      %v1024 = vpop.f32.mrb[0].mxu0
      %v1025 = vpop.f32.mrb[0].mxu0
      %v1026 = vadd.f32 0.0, %v1025
      %v1027 = vpop.f32.mrb[0].mxu0
      %1028 = vmatprep.mubr.bf16.mxu0 0
      %1029 = vmatmul.mubr.bf16.gmra.mrb[0].mxu0 %v972
      %v1030 = vpop.f32.mrb[0].mxu0
      %v1031 = vadd.f32 0.0, %v1030
      %v1032 = vpop.f32.mrb[0].mxu0
      %v1033 = vpop.f32.mrb[0].mxu0
      %v1034 = vadd.f32 0.0, %v1033
      %v1035 = vpop.f32.mrb[0].mxu0
      %1036 = vmatprep.mubr.bf16.mxu0 0
      %1037 = vmatmul.mubr.bf16.gmra.mrb[0].mxu0 %v975
      %v1038 = vpop.f32.mrb[0].mxu0
      %v1039 = vadd.f32 0.0, %v1038
      %v1040 = vpop.f32.mrb[0].mxu0
      %v1041 = vpop.f32.mrb[0].mxu0
      %v1042 = vadd.f32 0.0, %v1041
      %v1043 = vpop.f32.mrb[0].mxu0
      %1044 = vdwg.mxu0
      %v1045 = vadd.f32 %v815, %v1015
      %v1046 = vadd.f32 %v816, %v1018
      %v1047 = vadd.f32 %v817, %v1023
      %v1048 = vadd.f32 %v818, %v1026
      %v1049 = vadd.f32 %v819, %v1031
      %v1050 = vadd.f32 %v820, %v1034
      %v1051 = vadd.f32 %v821, %v1039
      %v1052 = vadd.f32 %v822, %v1042
      %s1053 = scalar_lea.vmem %s165, 16
      %v1054 = vld [vmem:[%s1053] sm:$0xf]
      %v1055 = vld [vmem:[%s1053 + $0x10] sm:$0xf]
      %v1056 = vld [vmem:[%s1053 + $0x20] sm:$0xf]
      %v1057 = vld [vmem:[%s1053 + $0x30] sm:$0xf]
      %v1058 = vld [vmem:[%s1053 + $0x40] sm:$0xf]
      %v1059 = vld [vmem:[%s1053 + $0x50] sm:$0xf]
      %v1060 = vld [vmem:[%s1053 + $0x60] sm:$0xf]
      %v1061 = vld [vmem:[%s1053 + $0x70] sm:$0xf]
      %s1062 = scalar_lea.vmem %s1, 12
      %v1063 = vld [vmem:[%s1062] sm:$0x3]
      %v1072 = vunpack.c.l.b16 %v1054
      %v1073 = vunpack.c.l.b16 %v1055
      %v1074 = vunpack.c.l.b16 %v1056
      %v1075 = vunpack.c.l.b16 %v1057
      %v1076 = vunpack.c.l.b16 %v1058
      %v1077 = vunpack.c.l.b16 %v1059
      %v1078 = vunpack.c.l.b16 %v1060
      %v1079 = vunpack.c.l.b16 %v1061
      %v1080 = vpack.c.b16 %v1073, %v1072
      %v1081 = vpack.c.b16 %v1075, %v1074
      %v1082 = vpack.c.b16 %v1077, %v1076
      %v1083 = vpack.c.b16 %v1079, %v1078
      %v1085 = vsel %vm211, %v1080, 0
      %v1088 = vsel %vm211, %v1081, 0
      %v1091 = vsel %vm211, %v1082, 0
      %v1094 = vsel %vm211, %v1083, 0
      %v1097 = vsel %vm224, %v1063, 0
      %1099 = vmatprep.subr.bf16.mxu0 0
      %1100 = vmatpush1.bf16.msra.mxu0 %v1097
      %1101 = vmatprep.subr.bf16.mxu0 0
      %1102 = vmatpush1.bf16.msra.mxu0 0
      %1103 = vmatprep.subr.bf16.mxu0 0
      %1104 = vmatpush1.bf16.msra.mxu0 0
      %1105 = vmatprep.subr.bf16.mxu0 0
      %1106 = vmatpush1.bf16.msra.mxu0 0
      %1107 = vmatprep.subr.bf16.mxu0 0
      %1108 = vmatpush1.bf16.msra.mxu0 0
      %1109 = vmatprep.subr.bf16.mxu0 0
      %1110 = vmatpush1.bf16.msra.mxu0 0
      %1111 = vmatprep.subr.bf16.mxu0 0
      %1112 = vmatpush1.bf16.msra.mxu0 0
      %1113 = vmatprep.subr.bf16.mxu0 0
      %1114 = vmatpush1.bf16.msra.mxu0 0
      %1115 = vmatprep.subr.bf16.mxu0 0
      %1116 = vmatpush1.bf16.msra.mxu0 0
      %1117 = vmatprep.subr.bf16.mxu0 0
      %1118 = vmatpush1.bf16.msra.mxu0 0
      %1119 = vmatprep.subr.bf16.mxu0 0
      %1120 = vmatpush1.bf16.msra.mxu0 0
      %1121 = vmatprep.subr.bf16.mxu0 0
      %1122 = vmatpush1.bf16.msra.mxu0 0
      %1123 = vmatprep.subr.bf16.mxu0 0
      %1124 = vmatpush1.bf16.msra.mxu0 0
      %1125 = vmatprep.subr.bf16.mxu0 0
      %1126 = vmatpush1.bf16.msra.mxu0 0
      %1127 = vmatprep.subr.bf16.mxu0 0
      %1128 = vmatpush1.bf16.msra.mxu0 0
      %1129 = vmatprep.subr.bf16.mxu0 0
      %1130 = vmatpush1.bf16.msra.mxu0 0
      %1131 = vmatprep.mubr.bf16.mxu0 0
      %1132 = vmatmul.mubr.bf16.gmra.mrb[0].mxu0 %v1085
      %v1133 = vpop.f32.mrb[0].mxu0
      %v1134 = vadd.f32 0.0, %v1133
      %v1135 = vpop.f32.mrb[0].mxu0
      %v1136 = vpop.f32.mrb[0].mxu0
      %v1137 = vadd.f32 0.0, %v1136
      %v1138 = vpop.f32.mrb[0].mxu0
      %1139 = vmatprep.mubr.bf16.mxu0 0
      %1140 = vmatmul.mubr.bf16.gmra.mrb[0].mxu0 %v1088
      %v1141 = vpop.f32.mrb[0].mxu0
      %v1142 = vadd.f32 0.0, %v1141
      %v1143 = vpop.f32.mrb[0].mxu0
      %v1144 = vpop.f32.mrb[0].mxu0
      %v1145 = vadd.f32 0.0, %v1144
      %v1146 = vpop.f32.mrb[0].mxu0
      %1147 = vmatprep.mubr.bf16.mxu0 0
      %1148 = vmatmul.mubr.bf16.gmra.mrb[0].mxu0 %v1091
      %v1149 = vpop.f32.mrb[0].mxu0
      %v1150 = vadd.f32 0.0, %v1149
      %v1151 = vpop.f32.mrb[0].mxu0
      %v1152 = vpop.f32.mrb[0].mxu0
      %v1153 = vadd.f32 0.0, %v1152
      %v1154 = vpop.f32.mrb[0].mxu0
      %1155 = vmatprep.mubr.bf16.mxu0 0
      %1156 = vmatmul.mubr.bf16.gmra.mrb[0].mxu0 %v1094
      %v1157 = vpop.f32.mrb[0].mxu0
      %v1158 = vadd.f32 0.0, %v1157
      %v1159 = vpop.f32.mrb[0].mxu0
      %v1160 = vpop.f32.mrb[0].mxu0
      %v1161 = vadd.f32 0.0, %v1160
      %v1162 = vpop.f32.mrb[0].mxu0
      %1163 = vdwg.mxu0
      %v1164 = vadd.f32 %v1045, %v1134
      %v1165 = vadd.f32 %v1046, %v1137
      %v1166 = vadd.f32 %v1047, %v1142
      %v1167 = vadd.f32 %v1048, %v1145
      %v1168 = vadd.f32 %v1049, %v1150
      %v1169 = vadd.f32 %v1050, %v1153
      %v1170 = vadd.f32 %v1051, %v1158
      %v1171 = vadd.f32 %v1052, %v1161
      %s1172 = scalar_lea.vmem %s1, 14
      %v1173 = vld [vmem:[%s1172] sm:$0x3]
      %1174 = vrot.lane.b32.xlu0 %v1080, 124
      %v1175 = vpop.permute.xlu0 %1174
      %1176 = vrot.lane.b32.xlu0 %v1081, 124
      %v1177 = vpop.permute.xlu0 %1176
      %1178 = vrot.lane.b32.xlu0 %v1082, 124
      %v1179 = vpop.permute.xlu0 %1178
      %1180 = vrot.lane.b32.xlu0 %v1083, 124
      %v1181 = vpop.permute.xlu0 %1180
      %v1183 = vsel %vm211, %v1175, 0
      %v1186 = vsel %vm211, %v1177, 0
      %v1189 = vsel %vm211, %v1179, 0
      %v1192 = vsel %vm211, %v1181, 0
      %v1195 = vsel %vm224, %v1173, 0
      %1197 = vmatprep.subr.bf16.mxu0 0
      %1198 = vmatpush1.bf16.msra.mxu0 %v1195
      %1199 = vmatprep.subr.bf16.mxu0 0
      %1200 = vmatpush1.bf16.msra.mxu0 0
      %1201 = vmatprep.subr.bf16.mxu0 0
      %1202 = vmatpush1.bf16.msra.mxu0 0
      %1203 = vmatprep.subr.bf16.mxu0 0
      %1204 = vmatpush1.bf16.msra.mxu0 0
      %1205 = vmatprep.subr.bf16.mxu0 0
      %1206 = vmatpush1.bf16.msra.mxu0 0
      %1207 = vmatprep.subr.bf16.mxu0 0
      %1208 = vmatpush1.bf16.msra.mxu0 0
      %1209 = vmatprep.subr.bf16.mxu0 0
      %1210 = vmatpush1.bf16.msra.mxu0 0
      %1211 = vmatprep.subr.bf16.mxu0 0
      %1212 = vmatpush1.bf16.msra.mxu0 0
      %1213 = vmatprep.subr.bf16.mxu0 0
      %1214 = vmatpush1.bf16.msra.mxu0 0
      %1215 = vmatprep.subr.bf16.mxu0 0
      %1216 = vmatpush1.bf16.msra.mxu0 0
      %1217 = vmatprep.subr.bf16.mxu0 0
      %1218 = vmatpush1.bf16.msra.mxu0 0
      %1219 = vmatprep.subr.bf16.mxu0 0
      %1220 = vmatpush1.bf16.msra.mxu0 0
      %1221 = vmatprep.subr.bf16.mxu0 0
      %1222 = vmatpush1.bf16.msra.mxu0 0
      %1223 = vmatprep.subr.bf16.mxu0 0
      %1224 = vmatpush1.bf16.msra.mxu0 0
      %1225 = vmatprep.subr.bf16.mxu0 0
      %1226 = vmatpush1.bf16.msra.mxu0 0
      %1227 = vmatprep.subr.bf16.mxu0 0
      %1228 = vmatpush1.bf16.msra.mxu0 0
      %1229 = vmatprep.mubr.bf16.mxu0 0
      %1230 = vmatmul.mubr.bf16.gmra.mrb[0].mxu0 %v1183
      %v1231 = vpop.f32.mrb[0].mxu0
      %v1232 = vadd.f32 0.0, %v1231
      %v1233 = vpop.f32.mrb[0].mxu0
      %v1234 = vpop.f32.mrb[0].mxu0
      %v1235 = vadd.f32 0.0, %v1234
      %v1236 = vpop.f32.mrb[0].mxu0
      %1237 = vmatprep.mubr.bf16.mxu0 0
      %1238 = vmatmul.mubr.bf16.gmra.mrb[0].mxu0 %v1186
      %v1239 = vpop.f32.mrb[0].mxu0
      %v1240 = vadd.f32 0.0, %v1239
      %v1241 = vpop.f32.mrb[0].mxu0
      %v1242 = vpop.f32.mrb[0].mxu0
      %v1243 = vadd.f32 0.0, %v1242
      %v1244 = vpop.f32.mrb[0].mxu0
      %1245 = vmatprep.mubr.bf16.mxu0 0
      %1246 = vmatmul.mubr.bf16.gmra.mrb[0].mxu0 %v1189
      %v1247 = vpop.f32.mrb[0].mxu0
      %v1248 = vadd.f32 0.0, %v1247
      %v1249 = vpop.f32.mrb[0].mxu0
      %v1250 = vpop.f32.mrb[0].mxu0
      %v1251 = vadd.f32 0.0, %v1250
      %v1252 = vpop.f32.mrb[0].mxu0
      %1253 = vmatprep.mubr.bf16.mxu0 0
      %1254 = vmatmul.mubr.bf16.gmra.mrb[0].mxu0 %v1192
      %v1255 = vpop.f32.mrb[0].mxu0
      %v1256 = vadd.f32 0.0, %v1255
      %v1257 = vpop.f32.mrb[0].mxu0
      %v1258 = vpop.f32.mrb[0].mxu0
      %v1259 = vadd.f32 0.0, %v1258
      %v1260 = vpop.f32.mrb[0].mxu0
      %1261 = vdwg.mxu0
      %v1262 = vadd.f32 %v1164, %v1232
      %v1263 = vadd.f32 %v1165, %v1235
      %v1264 = vadd.f32 %v1166, %v1240
      %v1265 = vadd.f32 %v1167, %v1243
      %v1266 = vadd.f32 %v1168, %v1248
      %v1267 = vadd.f32 %v1169, %v1251
      %v1268 = vadd.f32 %v1170, %v1256
      %v1269 = vadd.f32 %v1171, %v1259
      %v1270 = vld [vmem:[%s1053] sm:$0xf]
      %v1271 = vld [vmem:[%s1053 + $0x4] sm:$0x1]
      %v1272 = vld [vmem:[%s1053 + $0x10] sm:$0xf]
      %v1273 = vld [vmem:[%s1053 + $0x14] sm:$0x1]
      %v1274 = vld [vmem:[%s1053 + $0x20] sm:$0xf]
      %v1275 = vld [vmem:[%s1053 + $0x24] sm:$0x1]
      %v1276 = vld [vmem:[%s1053 + $0x30] sm:$0xf]
      %v1277 = vld [vmem:[%s1053 + $0x34] sm:$0x1]
      %v1278 = vld [vmem:[%s1053 + $0x40] sm:$0xf]
      %v1279 = vld [vmem:[%s1053 + $0x44] sm:$0x1]
      %v1280 = vld [vmem:[%s1053 + $0x50] sm:$0xf]
      %v1281 = vld [vmem:[%s1053 + $0x54] sm:$0x1]
      %v1282 = vld [vmem:[%s1053 + $0x60] sm:$0xf]
      %v1283 = vld [vmem:[%s1053 + $0x64] sm:$0x1]
      %v1284 = vld [vmem:[%s1053 + $0x70] sm:$0xf]
      %v1285 = vld [vmem:[%s1053 + $0x74] sm:$0x1]
      %v1287 = vshrl.u32 %v1270, 16
      %v1289 = vrot.slane %v1287, 4
      %v1290 = vshll.u32 %v1270, 16
      %v1292 = vrot.slane %v1290, 5
      %v1293 = vor.u32 %v1289, %v1292
      %v1294 = vrot.slane %v1293, 4
      %v1296 = vshll.u32 %v1271, 16
      %v1298 = vrot.slane %v1296, 5
      %v1299 = vsel %vm391, %v1294, %v1298
      %v1301 = vshrl.u32 %v1272, 16
      %v1303 = vrot.slane %v1301, 4
      %v1304 = vshll.u32 %v1272, 16
      %v1306 = vrot.slane %v1304, 5
      %v1307 = vor.u32 %v1303, %v1306
      %v1308 = vrot.slane %v1307, 4
      %v1310 = vshll.u32 %v1273, 16
      %v1312 = vrot.slane %v1310, 5
      %v1313 = vsel %vm391, %v1308, %v1312
      %v1315 = vshrl.u32 %v1274, 16
      %v1317 = vrot.slane %v1315, 4
      %v1318 = vshll.u32 %v1274, 16
      %v1320 = vrot.slane %v1318, 5
      %v1321 = vor.u32 %v1317, %v1320
      %v1322 = vrot.slane %v1321, 4
      %v1324 = vshll.u32 %v1275, 16
      %v1326 = vrot.slane %v1324, 5
      %v1327 = vsel %vm391, %v1322, %v1326
      %v1329 = vshrl.u32 %v1276, 16
      %v1331 = vrot.slane %v1329, 4
      %v1332 = vshll.u32 %v1276, 16
      %v1334 = vrot.slane %v1332, 5
      %v1335 = vor.u32 %v1331, %v1334
      %v1336 = vrot.slane %v1335, 4
      %v1338 = vshll.u32 %v1277, 16
      %v1340 = vrot.slane %v1338, 5
      %v1341 = vsel %vm391, %v1336, %v1340
      %v1343 = vshrl.u32 %v1278, 16
      %v1345 = vrot.slane %v1343, 4
      %v1346 = vshll.u32 %v1278, 16
      %v1348 = vrot.slane %v1346, 5
      %v1349 = vor.u32 %v1345, %v1348
      %v1350 = vrot.slane %v1349, 4
      %v1352 = vshll.u32 %v1279, 16
      %v1354 = vrot.slane %v1352, 5
      %v1355 = vsel %vm391, %v1350, %v1354
      %v1357 = vshrl.u32 %v1280, 16
      %v1359 = vrot.slane %v1357, 4
      %v1360 = vshll.u32 %v1280, 16
      %v1362 = vrot.slane %v1360, 5
      %v1363 = vor.u32 %v1359, %v1362
      %v1364 = vrot.slane %v1363, 4
      %v1366 = vshll.u32 %v1281, 16
      %v1368 = vrot.slane %v1366, 5
      %v1369 = vsel %vm391, %v1364, %v1368
      %v1371 = vshrl.u32 %v1282, 16
      %v1373 = vrot.slane %v1371, 4
      %v1374 = vshll.u32 %v1282, 16
      %v1376 = vrot.slane %v1374, 5
      %v1377 = vor.u32 %v1373, %v1376
      %v1378 = vrot.slane %v1377, 4
      %v1380 = vshll.u32 %v1283, 16
      %v1382 = vrot.slane %v1380, 5
      %v1383 = vsel %vm391, %v1378, %v1382
      %v1385 = vshrl.u32 %v1284, 16
      %v1387 = vrot.slane %v1385, 4
      %v1388 = vshll.u32 %v1284, 16
      %v1390 = vrot.slane %v1388, 5
      %v1391 = vor.u32 %v1387, %v1390
      %v1392 = vrot.slane %v1391, 4
      %v1394 = vshll.u32 %v1285, 16
      %v1396 = vrot.slane %v1394, 5
      %v1397 = vsel %vm391, %v1392, %v1396
      %s1398 = scalar_lea.vmem %s1, 16
      %v1399 = vld [vmem:[%s1398] sm:$0x3]
      %v1400 = vunpack.c.l.b16 %v1299
      %v1401 = vunpack.c.l.b16 %v1313
      %v1402 = vunpack.c.l.b16 %v1327
      %v1403 = vunpack.c.l.b16 %v1341
      %v1404 = vunpack.c.l.b16 %v1355
      %v1405 = vunpack.c.l.b16 %v1369
      %v1406 = vunpack.c.l.b16 %v1383
      %v1407 = vunpack.c.l.b16 %v1397
      %v1408 = vpack.c.b16 %v1401, %v1400
      %v1409 = vpack.c.b16 %v1403, %v1402
      %v1410 = vpack.c.b16 %v1405, %v1404
      %v1411 = vpack.c.b16 %v1407, %v1406
      %v1413 = vsel %vm211, %v1408, 0
      %v1416 = vsel %vm211, %v1409, 0
      %v1419 = vsel %vm211, %v1410, 0
      %v1422 = vsel %vm211, %v1411, 0
      %v1425 = vsel %vm224, %v1399, 0
      %1427 = vmatprep.subr.bf16.mxu0 0
      %1428 = vmatpush1.bf16.msra.mxu0 %v1425
      %1429 = vmatprep.subr.bf16.mxu0 0
      %1430 = vmatpush1.bf16.msra.mxu0 0
      %1431 = vmatprep.subr.bf16.mxu0 0
      %1432 = vmatpush1.bf16.msra.mxu0 0
      %1433 = vmatprep.subr.bf16.mxu0 0
      %1434 = vmatpush1.bf16.msra.mxu0 0
      %1435 = vmatprep.subr.bf16.mxu0 0
      %1436 = vmatpush1.bf16.msra.mxu0 0
      %1437 = vmatprep.subr.bf16.mxu0 0
      %1438 = vmatpush1.bf16.msra.mxu0 0
      %1439 = vmatprep.subr.bf16.mxu0 0
      %1440 = vmatpush1.bf16.msra.mxu0 0
      %1441 = vmatprep.subr.bf16.mxu0 0
      %1442 = vmatpush1.bf16.msra.mxu0 0
      %1443 = vmatprep.subr.bf16.mxu0 0
      %1444 = vmatpush1.bf16.msra.mxu0 0
      %1445 = vmatprep.subr.bf16.mxu0 0
      %1446 = vmatpush1.bf16.msra.mxu0 0
      %1447 = vmatprep.subr.bf16.mxu0 0
      %1448 = vmatpush1.bf16.msra.mxu0 0
      %1449 = vmatprep.subr.bf16.mxu0 0
      %1450 = vmatpush1.bf16.msra.mxu0 0
      %1451 = vmatprep.subr.bf16.mxu0 0
      %1452 = vmatpush1.bf16.msra.mxu0 0
      %1453 = vmatprep.subr.bf16.mxu0 0
      %1454 = vmatpush1.bf16.msra.mxu0 0
      %1455 = vmatprep.subr.bf16.mxu0 0
      %1456 = vmatpush1.bf16.msra.mxu0 0
      %1457 = vmatprep.subr.bf16.mxu0 0
      %1458 = vmatpush1.bf16.msra.mxu0 0
      %1459 = vmatprep.mubr.bf16.mxu0 0
      %1460 = vmatmul.mubr.bf16.gmra.mrb[0].mxu0 %v1413
      %v1461 = vpop.f32.mrb[0].mxu0
      %v1462 = vadd.f32 0.0, %v1461
      %v1463 = vpop.f32.mrb[0].mxu0
      %v1464 = vpop.f32.mrb[0].mxu0
      %v1465 = vadd.f32 0.0, %v1464
      %v1466 = vpop.f32.mrb[0].mxu0
      %1467 = vmatprep.mubr.bf16.mxu0 0
      %1468 = vmatmul.mubr.bf16.gmra.mrb[0].mxu0 %v1416
      %v1469 = vpop.f32.mrb[0].mxu0
      %v1470 = vadd.f32 0.0, %v1469
      %v1471 = vpop.f32.mrb[0].mxu0
      %v1472 = vpop.f32.mrb[0].mxu0
      %v1473 = vadd.f32 0.0, %v1472
      %v1474 = vpop.f32.mrb[0].mxu0
      %1475 = vmatprep.mubr.bf16.mxu0 0
      %1476 = vmatmul.mubr.bf16.gmra.mrb[0].mxu0 %v1419
      %v1477 = vpop.f32.mrb[0].mxu0
      %v1478 = vadd.f32 0.0, %v1477
      %v1479 = vpop.f32.mrb[0].mxu0
      %v1480 = vpop.f32.mrb[0].mxu0
      %v1481 = vadd.f32 0.0, %v1480
      %v1482 = vpop.f32.mrb[0].mxu0
      %1483 = vmatprep.mubr.bf16.mxu0 0
      %1484 = vmatmul.mubr.bf16.gmra.mrb[0].mxu0 %v1422
      %v1485 = vpop.f32.mrb[0].mxu0
      %v1486 = vadd.f32 0.0, %v1485
      %v1487 = vpop.f32.mrb[0].mxu0
      %v1488 = vpop.f32.mrb[0].mxu0
      %v1489 = vadd.f32 0.0, %v1488
      %v1490 = vpop.f32.mrb[0].mxu0
      %1491 = vdwg.mxu0
      %v1492 = vadd.f32 %v1262, %v1462
      %v1493 = vadd.f32 %v1263, %v1465
      %v1494 = vadd.f32 %v1264, %v1470
      %v1495 = vadd.f32 %v1265, %v1473
      %v1496 = vadd.f32 %v1266, %v1478
      %v1497 = vadd.f32 %v1267, %v1481
      %v1498 = vadd.f32 %v1268, %v1486
      %v1499 = vadd.f32 %v1269, %v1489
      %v1500 = vld [vmem:[%s2] sm:$0x1]
      %v1502 = vlaneseq
      %v1503 = vshrl.u32 %v1502, 7
      %v1504 = vsub.s32 0, %v1503
      %v1505 = vrot.slane %v1500, %v1504
      %v1507 = vadd.f32 %v1492, %v1505
      %v1508 = vadd.f32 %v1493, %v1505
      %v1509 = vadd.f32 %v1494, %v1505
      %v1510 = vadd.f32 %v1495, %v1505
      %v1511 = vadd.f32 %v1496, %v1505
      %v1512 = vadd.f32 %v1497, %v1505
      %v1513 = vadd.f32 %v1498, %v1505
      %v1514 = vadd.f32 %v1499, %v1505
      %v1515 = vmax.f32 %v1507, 0.0
      %v1516 = vmax.f32 %v1508, 0.0
      %v1517 = vmax.f32 %v1509, 0.0
      %v1518 = vmax.f32 %v1510, 0.0
      %v1519 = vmax.f32 %v1511, 0.0
      %v1520 = vmax.f32 %v1512, 0.0
      %v1521 = vmax.f32 %v1513, 0.0
      %v1522 = vmax.f32 %v1514, 0.0
      %v1523 = vpack.c.bf16 %v1515, %v1515
      %v1524 = vpack.c.bf16 %v1516, %v1516
      %v1525 = vpack.c.bf16 %v1517, %v1517
      %v1526 = vpack.c.bf16 %v1518, %v1518
      %v1527 = vpack.c.bf16 %v1519, %v1519
      %v1528 = vpack.c.bf16 %v1520, %v1520
      %v1529 = vpack.c.bf16 %v1521, %v1521
      %v1530 = vpack.c.bf16 %v1522, %v1522
      %vm1531 = vcmask 257024
      %1532 = vst.msk [vmem:[%s170] sm:$0xf] %vm1531, %v1523
      %1533 = vst.msk [vmem:[%s170 + $0x4] sm:$0xf] %vm1531, %v1524
      %1534 = vst.msk [vmem:[%s170 + $0x8] sm:$0xf] %vm1531, %v1525
      %1535 = vst.msk [vmem:[%s170 + $0xc] sm:$0xf] %vm1531, %v1526
      %1536 = vst.msk [vmem:[%s170 + $0x10] sm:$0xf] %vm1531, %v1527
      %1537 = vst.msk [vmem:[%s170 + $0x14] sm:$0xf] %vm1531, %v1528
      %1538 = vst.msk [vmem:[%s170 + $0x18] sm:$0xf] %vm1531, %v1529
      %1539 = vst.msk [vmem:[%s170 + $0x1c] sm:$0xf] %vm1531, %v1530
      %p1540 = scmp.lt.s32.totalorder %s14, 1
      %s1541 = scalar_select %p1540, %s14, 1
      %s1542 = smul.addr %s1541, 8
      %s1543 = smul.addr %s1542, 4
      %s1544 = scalar_lea.vmem %s3, %s1543
      // Predicated region
      $region33: #{st_dim_cnn_forward.5} parent=31 // pred_check
        %p1545 = pneg %p100
      $region34: #{st_dim_cnn_forward.5} parent=31 // pred_check_branch
        %1547 = sbr.rel (%p1545) target = $region36
      $region35: #{st_dim_cnn_forward.5} parent=31 // pred_region
        _
      $region36: #{st_dim_cnn_forward.5} parent=31 // pred_fallthru
        _
    $region32: #{st_dim_cnn_forward.5} parent=5 // pred_fallthru
      _
    %p1548 = scmp.le.s32.totalorder 2, %s9
    // Predicated region
    $region37: #{st_dim_cnn_forward.5} parent=5 // pred_check
      %p1549 = pneg %p1548
    $region38: #{st_dim_cnn_forward.5} parent=5 // pred_check_branch
      %1551 = sbr.rel (%p1549) target = $region40
    $region39: #{st_dim_cnn_forward.5} parent=5 // pred_region
      %s1552 = ssub.s32 %s9, 2
      // Predicated region
      $region41: #{st_dim_cnn_forward.5} parent=39 // pred_check
        %p1553 = pneg %p106
      $region42: #{st_dim_cnn_forward.5} parent=39 // pred_check_branch
        %1555 = sbr.rel (%p1553) target = $region44
      $region43: #{st_dim_cnn_forward.5} parent=39 // pred_region
        %p1556 = scmp.lt.s32.totalorder %s15, 1
        %s1557 = scalar_select %p1556, %s15, 1
        %s1558 = smul.addr %s1557, 8
        %s1559 = smul.addr %s1558, 4
        %s1560 = scalar_lea.vmem %s3, %s1559
      $region44: #{st_dim_cnn_forward.5} parent=39 // pred_fallthru
        _
    $region40: #{st_dim_cnn_forward.5} parent=5 // pred_fallthru
      _
  $region6: #{st_dim_cnn_forward.5} parent=0 // loop_footer
    %s13 = sadd.s32 1, %s9
  $region7: #{st_dim_cnn_forward.5} parent=0 // loop_footer_branch
    %8 = sbr.rel target = $region3
  $region8: #{st_dim_cnn_forward.5} parent=0 // loop_exit
    _

// kernel: st_dim_cnn_forward.7
$region0: #{st_dim_cnn_forward.7}
  #allocation0 [shape = 'u32[]', space=smem, size = 0x4, offset = 0x4, fixed_abs, tag = 'smem constant byte address 0x4 - core index']
  #allocation1 [shape = 'u32[144,128]{1,0:T(1,128)}', space=vmem, size = 0x12000, scoped, tag = 'internal scratch']
  %s0 = inlined_call_operand.vmem [shape: bf16[2,3,2,3,128], index: 0, kind: input, shape index: {}]
  %s1 = inlined_call_operand.vmem [shape: bf16[3,3,64,64], index: 1, kind: input, shape index: {}]
  %s2 = inlined_call_operand.vmem [shape: f32[1,64], index: 2, kind: input, shape index: {}]
  %s3 = inlined_call_operand.vmem [shape: bf16[2,2,2,64], index: 3, kind: output, shape index: {}]
  %s4 = sld [smem:[#allocation0]]
  $region45: #{st_dim_cnn_forward.7} parent=0
    _
  %s6 = ssub.s32 1, %s4
  %s7 = scalar_select 0, %s6, %s4
  loop: start=0, step=1, limit=4
  $region2: #{st_dim_cnn_forward.7} parent=0 // loop_pre_header
    _
  $region3: #{st_dim_cnn_forward.7} parent=0 // loop_header
    %s9 = sphi 0, %s13
    %p10 = scmp.ge.s32.totalorder %s9, 4
    %s19 = sphi 0, %s21
    %s22 = sphi 0, %s19
    %s23 = sphi 0, %s22
    %s39 = sphi 0, %s23
    %s43 = sphi 0, %s43
    %s45 = sphi 0, %s43
    %s46 = sphi 0, %s45
    %s60 = sphi 0, %s46
    %s64 = sphi 0, %s64
    %s66 = sphi 0, %s64
    %s67 = sphi 0, %s66
    %s81 = sphi 0, %s67
    %s87 = sphi 0, %s89
    %s90 = sphi 0, %s87
    %s91 = sphi 0, %s90
    %s107 = sphi 0, %s91
  $region4: #{st_dim_cnn_forward.7} parent=0 // loop_header_branch
    %12 = sbr.rel (%p10) target = $region8
  $region5: #{st_dim_cnn_forward.7} parent=0 // loop_body
    %s14 = ssub.s32 %s9, 1
    %s15 = ssub.s32 %s9, 2
    %s16 = sadd.s32 %s9, 1
    %s17 = ssub.s32 %s9, %s16
    %p18 = scmp.eq.s32.totalorder %s17, 0
    %s20 = sadd.s32 %s19, 1
    %s21 = scalar_select %p18, %s19, %s20
    %p24 = pneg %p18
    %p25 = scmp.eq.s32.totalorder %s9, 1
    %p26 = por %p24, %p25
    %p27 = scmp.ne.s32.totalorder %s19, %s22
    %p28 = scmp.eq.s32.totalorder %s9, 0
    %p29 = por %p27, %p28
    %p30 = scmp.ne.s32.totalorder %s19, %s22
    %p31 = scmp.eq.s32.totalorder %s14, 1
    %p32 = por %p30, %p31
    %p33 = scmp.ne.s32.totalorder %s22, %s23
    %p34 = scmp.eq.s32.totalorder %s14, 0
    %p35 = por %p33, %p34
    %p36 = scmp.ne.s32.totalorder %s22, %s23
    %p37 = scmp.eq.s32.totalorder %s15, 1
    %p38 = por %p36, %p37
    %p40 = scmp.ne.s32.totalorder %s23, %s39
    %p41 = scmp.eq.s32.totalorder %s15, 0
    %p42 = por %p40, %p41
    %s44 = sadd.s32 %s43, 1
    %p47 = scmp.eq.s32.totalorder %s9, 1
    %p48 = scmp.ne.s32.totalorder %s43, %s45
    %p49 = scmp.eq.s32.totalorder %s9, 0
    %p50 = por %p48, %p49
    %p51 = scmp.ne.s32.totalorder %s43, %s45
    %p52 = scmp.eq.s32.totalorder %s14, 1
    %p53 = por %p51, %p52
    %p54 = scmp.ne.s32.totalorder %s45, %s46
    %p55 = scmp.eq.s32.totalorder %s14, 0
    %p56 = por %p54, %p55
    %p57 = scmp.ne.s32.totalorder %s45, %s46
    %p58 = scmp.eq.s32.totalorder %s15, 1
    %p59 = por %p57, %p58
    %p61 = scmp.ne.s32.totalorder %s46, %s60
    %p62 = scmp.eq.s32.totalorder %s15, 0
    %p63 = por %p61, %p62
    %s65 = sadd.s32 %s64, 1
    %p68 = scmp.eq.s32.totalorder %s9, 1
    %p69 = scmp.ne.s32.totalorder %s64, %s66
    %p70 = scmp.eq.s32.totalorder %s9, 0
    %p71 = por %p69, %p70
    %p72 = scmp.ne.s32.totalorder %s64, %s66
    %p73 = scmp.eq.s32.totalorder %s14, 1
    %p74 = por %p72, %p73
    %p75 = scmp.ne.s32.totalorder %s66, %s67
    %p76 = scmp.eq.s32.totalorder %s14, 0
    %p77 = por %p75, %p76
    %p78 = scmp.ne.s32.totalorder %s66, %s67
    %p79 = scmp.eq.s32.totalorder %s15, 1
    %p80 = por %p78, %p79
    %p82 = scmp.ne.s32.totalorder %s67, %s81
    %p83 = scmp.eq.s32.totalorder %s15, 0
    %p84 = por %p82, %p83
    %s85 = ssub.s32 %s9, %s16
    %p86 = scmp.eq.s32.totalorder %s85, 0
    %s88 = sadd.s32 %s87, 1
    %s89 = scalar_select %p86, %s87, %s88
    %p92 = pneg %p86
    %p93 = scmp.eq.s32.totalorder %s9, 1
    %p94 = por %p92, %p93
    %p95 = scmp.ne.s32.totalorder %s87, %s90
    %p96 = scmp.eq.s32.totalorder %s9, 0
    %p97 = por %p95, %p96
    %p98 = scmp.ne.s32.totalorder %s87, %s90
    %p99 = scmp.eq.s32.totalorder %s14, 1
    %p100 = por %p98, %p99
    %p101 = scmp.ne.s32.totalorder %s90, %s91
    %p102 = scmp.eq.s32.totalorder %s14, 0
    %p103 = por %p101, %p102
    %p104 = scmp.ne.s32.totalorder %s90, %s91
    %p105 = scmp.eq.s32.totalorder %s15, 1
    %p106 = por %p104, %p105
    %p108 = scmp.ne.s32.totalorder %s91, %s107
    %p109 = scmp.eq.s32.totalorder %s15, 0
    %p110 = por %p108, %p109
    %p111 = scmp.le.s32.totalorder 1, %s9
    %p112 = scmp.lt.s32.totalorder %s9, 3
    %p113 = pnand %p111, %p112
    %p114 = pneg %p113
    // Predicated region
    $region9: #{st_dim_cnn_forward.7} parent=5 // pred_check
      _
    $region10: #{st_dim_cnn_forward.7} parent=5 // pred_check_branch
      %116 = sbr.rel (%p113) target = $region12
    $region11: #{st_dim_cnn_forward.7} parent=5 // pred_region
      %s117 = ssub.s32 %s9, 1
      // Predicated region
      $region13: #{st_dim_cnn_forward.7} parent=11 // pred_check
        %p118 = pneg %p56
      $region14: #{st_dim_cnn_forward.7} parent=11 // pred_check_branch
        %120 = sbr.rel (%p118) target = $region16
      $region15: #{st_dim_cnn_forward.7} parent=11 // pred_region
        _
      $region16: #{st_dim_cnn_forward.7} parent=11 // pred_fallthru
        _
      // Predicated region
      $region17: #{st_dim_cnn_forward.7} parent=11 // pred_check
        %p121 = pneg %p77
      $region18: #{st_dim_cnn_forward.7} parent=11 // pred_check_branch
        %123 = sbr.rel (%p121) target = $region20
      $region19: #{st_dim_cnn_forward.7} parent=11 // pred_region
        _
      $region20: #{st_dim_cnn_forward.7} parent=11 // pred_fallthru
        _
    $region12: #{st_dim_cnn_forward.7} parent=5 // pred_fallthru
      _
    %p124 = scmp.lt.s32.totalorder %s9, 2
    // Predicated region
    $region21: #{st_dim_cnn_forward.7} parent=5 // pred_check
      %p125 = pneg %p124
    $region22: #{st_dim_cnn_forward.7} parent=5 // pred_check_branch
      %127 = sbr.rel (%p125) target = $region24
    $region23: #{st_dim_cnn_forward.7} parent=5 // pred_region
      // Predicated region
      $region25: #{st_dim_cnn_forward.7} parent=23 // pred_check
        %p128 = pneg %p29
      $region26: #{st_dim_cnn_forward.7} parent=23 // pred_check_branch
        %130 = sbr.rel (%p128) target = $region28
      $region27: #{st_dim_cnn_forward.7} parent=23 // pred_region
        %p131 = scmp.lt.s32.totalorder %s9, 1
        %s132 = scalar_select %p131, %s9, 1
        %s133 = smul.addr %s132, 6
        %s134 = smul.addr %s133, 2
        %s135 = scalar_lea.vmem %s0, %s134
      $region28: #{st_dim_cnn_forward.7} parent=23 // pred_fallthru
        _
    $region24: #{st_dim_cnn_forward.7} parent=5 // pred_fallthru
      _
    %p136 = scmp.le.s32.totalorder 1, %s9
    %p137 = scmp.lt.s32.totalorder %s9, 3
    %p138 = pnand %p136, %p137
    %p139 = pneg %p138
    // Predicated region
    $region29: #{st_dim_cnn_forward.7} parent=5 // pred_check
      _
    $region30: #{st_dim_cnn_forward.7} parent=5 // pred_check_branch
      %141 = sbr.rel (%p138) target = $region32
    $region31: #{st_dim_cnn_forward.7} parent=5 // pred_region
      %s142 = ssub.s32 %s9, 1
      %p143 = scmp.lt.s32.totalorder %s14, 1
      %s144 = scalar_select %p143, %s14, 1
      %s145 = smul.addr %s144, 6
      %s146 = smul.addr %s145, 2
      %s147 = scalar_lea.vmem %s0, %s146
      %p148 = pneg %p35
      %p149 = pneg %p32
      %p150 = pneg %p56
      %p151 = pneg %p53
      %p152 = pneg %p77
      %p153 = pneg %p74
      %p154 = pneg %p103
      %p155 = pneg %p100
      %p156 = scmp.lt.s32.totalorder %s14, 1
      %s157 = scalar_select %p156, %s14, 1
      %s158 = smul.addr %s157, 2
      %s159 = scalar_lea.vmem %s3, %s158
      %p160 = scmp.lt.s32.totalorder %s14, 1
      %s161 = scalar_select %p160, %s14, 1
      %s162 = smul.addr %s161, 6
      %s163 = smul.addr %s162, 2
      %s164 = scalar_lea.vmem %s0, %s163
      %p165 = scmp.lt.s32.totalorder %s14, 1
      %s166 = scalar_select %p165, %s14, 1
      %s167 = smul.addr %s166, 2
      %s168 = scalar_lea.vmem %s3, %s167
      %v170 = vld [vmem:[%s164] sm:$0x1]
      %v171 = vld [vmem:[%s164 + $0x4] sm:$0x1]
      %v172 = vld [vmem:[%s1] sm:$0xf]
      %v173 = vld [vmem:[%s1 + $0x4] sm:$0xf]
      %v174 = vld [vmem:[%s1 + $0x8] sm:$0xf]
      %v175 = vld [vmem:[%s1 + $0xc] sm:$0xf]
      %v176 = vld [vmem:[%s1 + $0x10] sm:$0xf]
      %v177 = vld [vmem:[%s1 + $0x14] sm:$0xf]
      %v178 = vld [vmem:[%s1 + $0x18] sm:$0xf]
      %v179 = vld [vmem:[%s1 + $0x1c] sm:$0xf]
      %s180 = scalar_lea.vmem %s1, 32
      %v181 = vld [vmem:[%s180] sm:$0xf]
      %v182 = vld [vmem:[%s180 + $0x4] sm:$0xf]
      %v183 = vld [vmem:[%s180 + $0x8] sm:$0xf]
      %v184 = vld [vmem:[%s180 + $0xc] sm:$0xf]
      %v185 = vld [vmem:[%s180 + $0x10] sm:$0xf]
      %v186 = vld [vmem:[%s180 + $0x14] sm:$0xf]
      %v187 = vld [vmem:[%s180 + $0x18] sm:$0xf]
      %v188 = vld [vmem:[%s180 + $0x1c] sm:$0xf]
      %v191 = vcombine.low %v170, %v171
      %v193 = vunpack.c.l.s4 1966171168
      %v194 = vunpack.c.0.s8 %v193
      %v195 = vlaneseq
      %v196 = vshrl.u32 %v195, 7
      %v197 = vsub.s32 %v194, %v196
      %v198 = vrot.slane %v191, %v197
      %v200 = vunpack.c.l.s4 1966171168
      %v201 = vunpack.c.0.s8 %v200
      %v202 = vlaneseq
      %v203 = vshrl.u32 %v202, 7
      %v204 = vsub.s32 %v201, %v203
      %v205 = vrot.slane %v198, %v204
      %206 = vrot.lane.b32.xlu0 %v205, 64
      %v207 = vpop.permute.xlu0 %206
      %v216 = vunpack.c.l.b16 %v181
      %v217 = vunpack.c.l.b16 %v182
      %v218 = vunpack.c.l.b16 %v183
      %v219 = vunpack.c.l.b16 %v184
      %v220 = vunpack.c.l.b16 %v185
      %v221 = vunpack.c.l.b16 %v186
      %v222 = vunpack.c.l.b16 %v187
      %v223 = vunpack.c.l.b16 %v188
      %v224 = vpack.c.b16 %v217, %v216
      %v225 = vpack.c.b16 %v219, %v218
      %v226 = vpack.c.b16 %v221, %v220
      %v227 = vpack.c.b16 %v223, %v222
      %vm232 = vcmask 523264
      %v234 = vsel %vm232, %v207, 0
      %236 = vmatprep.subr.bf16.mxu0 0
      %237 = vmatpush1.bf16.msra.mxu0 %v224
      %238 = vmatprep.subr.bf16.mxu0 0
      %239 = vmatpush1.bf16.msra.mxu0 %v225
      %240 = vmatprep.subr.bf16.mxu0 0
      %241 = vmatpush1.bf16.msra.mxu0 %v226
      %242 = vmatprep.subr.bf16.mxu0 0
      %243 = vmatpush1.bf16.msra.mxu0 %v227
      %244 = vmatprep.subr.bf16.mxu0 0
      %245 = vmatpush1.bf16.msra.mxu0 0
      %246 = vmatprep.subr.bf16.mxu0 0
      %247 = vmatpush1.bf16.msra.mxu0 0
      %248 = vmatprep.subr.bf16.mxu0 0
      %249 = vmatpush1.bf16.msra.mxu0 0
      %250 = vmatprep.subr.bf16.mxu0 0
      %251 = vmatpush1.bf16.msra.mxu0 0
      %252 = vmatprep.subr.bf16.mxu0 0
      %253 = vmatpush1.bf16.msra.mxu0 0
      %254 = vmatprep.subr.bf16.mxu0 0
      %255 = vmatpush1.bf16.msra.mxu0 0
      %256 = vmatprep.subr.bf16.mxu0 0
      %257 = vmatpush1.bf16.msra.mxu0 0
      %258 = vmatprep.subr.bf16.mxu0 0
      %259 = vmatpush1.bf16.msra.mxu0 0
      %260 = vmatprep.subr.bf16.mxu0 0
      %261 = vmatpush1.bf16.msra.mxu0 0
      %262 = vmatprep.subr.bf16.mxu0 0
      %263 = vmatpush1.bf16.msra.mxu0 0
      %264 = vmatprep.subr.bf16.mxu0 0
      %265 = vmatpush1.bf16.msra.mxu0 0
      %266 = vmatprep.subr.bf16.mxu0 0
      %267 = vmatpush1.bf16.msra.mxu0 0
      %268 = vmatprep.mubr.bf16.mxu0 0
      %269 = vmatmul.mubr.bf16.gmra.mrb[0].mxu0 %v234
      %v270 = vpop.f32.mrb[0].mxu0
      %v271 = vadd.f32 0.0, %v270
      %v272 = vpop.f32.mrb[0].mxu0
      %v273 = vpop.f32.mrb[0].mxu0
      %v274 = vpop.f32.mrb[0].mxu0
      %275 = vdwg.mxu0
      %v284 = vunpack.c.l.b16 %v172
      %v285 = vunpack.c.l.b16 %v173
      %v286 = vunpack.c.l.b16 %v174
      %v287 = vunpack.c.l.b16 %v175
      %v288 = vunpack.c.l.b16 %v176
      %v289 = vunpack.c.l.b16 %v177
      %v290 = vunpack.c.l.b16 %v178
      %v291 = vunpack.c.l.b16 %v179
      %v292 = vpack.c.b16 %v285, %v284
      %v293 = vpack.c.b16 %v287, %v286
      %v294 = vpack.c.b16 %v289, %v288
      %v295 = vpack.c.b16 %v291, %v290
      %v301 = vsel %vm232, %v205, 0
      %303 = vmatprep.subr.bf16.mxu0 0
      %304 = vmatpush1.bf16.msra.mxu0 %v292
      %305 = vmatprep.subr.bf16.mxu0 0
      %306 = vmatpush1.bf16.msra.mxu0 %v293
      %307 = vmatprep.subr.bf16.mxu0 0
      %308 = vmatpush1.bf16.msra.mxu0 %v294
      %309 = vmatprep.subr.bf16.mxu0 0
      %310 = vmatpush1.bf16.msra.mxu0 %v295
      %311 = vmatprep.subr.bf16.mxu0 0
      %312 = vmatpush1.bf16.msra.mxu0 0
      %313 = vmatprep.subr.bf16.mxu0 0
      %314 = vmatpush1.bf16.msra.mxu0 0
      %315 = vmatprep.subr.bf16.mxu0 0
      %316 = vmatpush1.bf16.msra.mxu0 0
      %317 = vmatprep.subr.bf16.mxu0 0
      %318 = vmatpush1.bf16.msra.mxu0 0
      %319 = vmatprep.subr.bf16.mxu0 0
      %320 = vmatpush1.bf16.msra.mxu0 0
      %321 = vmatprep.subr.bf16.mxu0 0
      %322 = vmatpush1.bf16.msra.mxu0 0
      %323 = vmatprep.subr.bf16.mxu0 0
      %324 = vmatpush1.bf16.msra.mxu0 0
      %325 = vmatprep.subr.bf16.mxu0 0
      %326 = vmatpush1.bf16.msra.mxu0 0
      %327 = vmatprep.subr.bf16.mxu0 0
      %328 = vmatpush1.bf16.msra.mxu0 0
      %329 = vmatprep.subr.bf16.mxu0 0
      %330 = vmatpush1.bf16.msra.mxu0 0
      %331 = vmatprep.subr.bf16.mxu0 0
      %332 = vmatpush1.bf16.msra.mxu0 0
      %333 = vmatprep.subr.bf16.mxu0 0
      %334 = vmatpush1.bf16.msra.mxu0 0
      %335 = vmatprep.mubr.bf16.mxu0 0
      %336 = vmatmul.mubr.bf16.gmra.mrb[0].mxu0 %v301
      %v337 = vpop.f32.mrb[0].mxu0
      %v338 = vadd.f32 %v271, %v337
      %v339 = vpop.f32.mrb[0].mxu0
      %v340 = vpop.f32.mrb[0].mxu0
      %v341 = vpop.f32.mrb[0].mxu0
      %342 = vdwg.mxu0
      %v343 = vld [vmem:[%s164] sm:$0x3]
      %v344 = vld [vmem:[%s164 + $0x4] sm:$0x3]
      %v348 = vunpack.c.l.s4 1966171168
      %v349 = vunpack.c.0.s8 %v348
      %v350 = vlaneseq
      %v351 = vshrl.u32 %v350, 7
      %v352 = vsub.s32 %v349, %v351
      %v353 = vrot.slane %v343, %v352
      %v354 = vcombine.high %v353, %v353
      %v356 = vunpack.c.l.s4 1966171168
      %v357 = vunpack.c.0.s8 %v356
      %v358 = vlaneseq
      %v359 = vshrl.u32 %v358, 7
      %v360 = vsub.s32 %v357, %v359
      %v361 = vrot.slane %v344, %v360
      %v362 = vcombine.high %v361, %v361
      %vm363 = vsmask.f32 256
      %vm364 = vsmask.f32 1284
      %vm365 = vmor %vm363, %vm364
      %vm366 = vsmask.f32 2312
      %vm367 = vmor %vm365, %vm366
      %vm368 = vsmask.f32 3340
      %vm369 = vmor %vm367, %vm368
      %vm370 = vsmask.f32 4368
      %vm371 = vmor %vm369, %vm370
      %vm372 = vsmask.f32 5396
      %vm373 = vmor %vm371, %vm372
      %vm374 = vsmask.f32 6424
      %vm375 = vmor %vm373, %vm374
      %vm376 = vsmask.f32 7452
      %vm377 = vmor %vm375, %vm376
      %v379 = vshrl.u32 %v353, 16
      %v381 = vrot.slane %v379, 7
      %v382 = vrot.slane %v381, 1
      %v384 = vshll.u32 %v354, 16
      %v386 = vsel %vm377, %v382, %v384
      %v388 = vshrl.u32 %v361, 16
      %v390 = vrot.slane %v388, 7
      %v391 = vrot.slane %v390, 1
      %v393 = vshll.u32 %v362, 16
      %v395 = vsel %vm377, %v391, %v393
      %s396 = scalar_lea.vmem %s1, 64
      %v397 = vld [vmem:[%s396] sm:$0xf]
      %v398 = vld [vmem:[%s396 + $0x4] sm:$0xf]
      %v399 = vld [vmem:[%s396 + $0x8] sm:$0xf]
      %v400 = vld [vmem:[%s396 + $0xc] sm:$0xf]
      %v401 = vld [vmem:[%s396 + $0x10] sm:$0xf]
      %v402 = vld [vmem:[%s396 + $0x14] sm:$0xf]
      %v403 = vld [vmem:[%s396 + $0x18] sm:$0xf]
      %v404 = vld [vmem:[%s396 + $0x1c] sm:$0xf]
      %v405 = vcombine.low %v386, %v395
      %v407 = vunpack.c.l.s4 1966171168
      %v408 = vunpack.c.0.s8 %v407
      %v409 = vlaneseq
      %v410 = vshrl.u32 %v409, 7
      %v411 = vsub.s32 %v408, %v410
      %v412 = vrot.slane %v405, %v411
      %v414 = vunpack.c.l.s4 1966171168
      %v415 = vunpack.c.0.s8 %v414
      %v416 = vlaneseq
      %v417 = vshrl.u32 %v416, 7
      %v418 = vsub.s32 %v415, %v417
      %v419 = vrot.slane %v412, %v418
      %v428 = vunpack.c.l.b16 %v397
      %v429 = vunpack.c.l.b16 %v398
      %v430 = vunpack.c.l.b16 %v399
      %v431 = vunpack.c.l.b16 %v400
      %v432 = vunpack.c.l.b16 %v401
      %v433 = vunpack.c.l.b16 %v402
      %v434 = vunpack.c.l.b16 %v403
      %v435 = vunpack.c.l.b16 %v404
      %v436 = vpack.c.b16 %v429, %v428
      %v437 = vpack.c.b16 %v431, %v430
      %v438 = vpack.c.b16 %v433, %v432
      %v439 = vpack.c.b16 %v435, %v434
      %v445 = vsel %vm232, %v419, 0
      %447 = vmatprep.subr.bf16.mxu0 0
      %448 = vmatpush1.bf16.msra.mxu0 %v436
      %449 = vmatprep.subr.bf16.mxu0 0
      %450 = vmatpush1.bf16.msra.mxu0 %v437
      %451 = vmatprep.subr.bf16.mxu0 0
      %452 = vmatpush1.bf16.msra.mxu0 %v438
      %453 = vmatprep.subr.bf16.mxu0 0
      %454 = vmatpush1.bf16.msra.mxu0 %v439
      %455 = vmatprep.subr.bf16.mxu0 0
      %456 = vmatpush1.bf16.msra.mxu0 0
      %457 = vmatprep.subr.bf16.mxu0 0
      %458 = vmatpush1.bf16.msra.mxu0 0
      %459 = vmatprep.subr.bf16.mxu0 0
      %460 = vmatpush1.bf16.msra.mxu0 0
      %461 = vmatprep.subr.bf16.mxu0 0
      %462 = vmatpush1.bf16.msra.mxu0 0
      %463 = vmatprep.subr.bf16.mxu0 0
      %464 = vmatpush1.bf16.msra.mxu0 0
      %465 = vmatprep.subr.bf16.mxu0 0
      %466 = vmatpush1.bf16.msra.mxu0 0
      %467 = vmatprep.subr.bf16.mxu0 0
      %468 = vmatpush1.bf16.msra.mxu0 0
      %469 = vmatprep.subr.bf16.mxu0 0
      %470 = vmatpush1.bf16.msra.mxu0 0
      %471 = vmatprep.subr.bf16.mxu0 0
      %472 = vmatpush1.bf16.msra.mxu0 0
      %473 = vmatprep.subr.bf16.mxu0 0
      %474 = vmatpush1.bf16.msra.mxu0 0
      %475 = vmatprep.subr.bf16.mxu0 0
      %476 = vmatpush1.bf16.msra.mxu0 0
      %477 = vmatprep.subr.bf16.mxu0 0
      %478 = vmatpush1.bf16.msra.mxu0 0
      %479 = vmatprep.mubr.bf16.mxu0 0
      %480 = vmatmul.mubr.bf16.gmra.mrb[0].mxu0 %v445
      %v481 = vpop.f32.mrb[0].mxu0
      %v482 = vadd.f32 0.0, %v481
      %v483 = vpop.f32.mrb[0].mxu0
      %v484 = vpop.f32.mrb[0].mxu0
      %v485 = vpop.f32.mrb[0].mxu0
      %486 = vdwg.mxu0
      %v487 = vadd.f32 %v338, %v482
      %s488 = scalar_lea.vmem %s164, 2
      %v489 = vld [vmem:[%s488] sm:$0x1]
      %v490 = vld [vmem:[%s488 + $0x4] sm:$0x1]
      %s491 = scalar_lea.vmem %s1, 96
      %v492 = vld [vmem:[%s491] sm:$0xf]
      %v493 = vld [vmem:[%s491 + $0x4] sm:$0xf]
      %v494 = vld [vmem:[%s491 + $0x8] sm:$0xf]
      %v495 = vld [vmem:[%s491 + $0xc] sm:$0xf]
      %v496 = vld [vmem:[%s491 + $0x10] sm:$0xf]
      %v497 = vld [vmem:[%s491 + $0x14] sm:$0xf]
      %v498 = vld [vmem:[%s491 + $0x18] sm:$0xf]
      %v499 = vld [vmem:[%s491 + $0x1c] sm:$0xf]
      %v502 = vcombine.low %v489, %v490
      %v504 = vunpack.c.l.s4 1966171168
      %v505 = vunpack.c.0.s8 %v504
      %v506 = vlaneseq
      %v507 = vshrl.u32 %v506, 7
      %v508 = vsub.s32 %v505, %v507
      %v509 = vrot.slane %v502, %v508
      %v511 = vunpack.c.l.s4 1966171168
      %v512 = vunpack.c.0.s8 %v511
      %v513 = vlaneseq
      %v514 = vshrl.u32 %v513, 7
      %v515 = vsub.s32 %v512, %v514
      %v516 = vrot.slane %v509, %v515
      %v525 = vunpack.c.l.b16 %v492
      %v526 = vunpack.c.l.b16 %v493
      %v527 = vunpack.c.l.b16 %v494
      %v528 = vunpack.c.l.b16 %v495
      %v529 = vunpack.c.l.b16 %v496
      %v530 = vunpack.c.l.b16 %v497
      %v531 = vunpack.c.l.b16 %v498
      %v532 = vunpack.c.l.b16 %v499
      %v533 = vpack.c.b16 %v526, %v525
      %v534 = vpack.c.b16 %v528, %v527
      %v535 = vpack.c.b16 %v530, %v529
      %v536 = vpack.c.b16 %v532, %v531
      %v542 = vsel %vm232, %v516, 0
      %544 = vmatprep.subr.bf16.mxu0 0
      %545 = vmatpush1.bf16.msra.mxu0 %v533
      %546 = vmatprep.subr.bf16.mxu0 0
      %547 = vmatpush1.bf16.msra.mxu0 %v534
      %548 = vmatprep.subr.bf16.mxu0 0
      %549 = vmatpush1.bf16.msra.mxu0 %v535
      %550 = vmatprep.subr.bf16.mxu0 0
      %551 = vmatpush1.bf16.msra.mxu0 %v536
      %552 = vmatprep.subr.bf16.mxu0 0
      %553 = vmatpush1.bf16.msra.mxu0 0
      %554 = vmatprep.subr.bf16.mxu0 0
      %555 = vmatpush1.bf16.msra.mxu0 0
      %556 = vmatprep.subr.bf16.mxu0 0
      %557 = vmatpush1.bf16.msra.mxu0 0
      %558 = vmatprep.subr.bf16.mxu0 0
      %559 = vmatpush1.bf16.msra.mxu0 0
      %560 = vmatprep.subr.bf16.mxu0 0
      %561 = vmatpush1.bf16.msra.mxu0 0
      %562 = vmatprep.subr.bf16.mxu0 0
      %563 = vmatpush1.bf16.msra.mxu0 0
      %564 = vmatprep.subr.bf16.mxu0 0
      %565 = vmatpush1.bf16.msra.mxu0 0
      %566 = vmatprep.subr.bf16.mxu0 0
      %567 = vmatpush1.bf16.msra.mxu0 0
      %568 = vmatprep.subr.bf16.mxu0 0
      %569 = vmatpush1.bf16.msra.mxu0 0
      %570 = vmatprep.subr.bf16.mxu0 0
      %571 = vmatpush1.bf16.msra.mxu0 0
      %572 = vmatprep.subr.bf16.mxu0 0
      %573 = vmatpush1.bf16.msra.mxu0 0
      %574 = vmatprep.subr.bf16.mxu0 0
      %575 = vmatpush1.bf16.msra.mxu0 0
      %576 = vmatprep.mubr.bf16.mxu0 0
      %577 = vmatmul.mubr.bf16.gmra.mrb[0].mxu0 %v542
      %v578 = vpop.f32.mrb[0].mxu0
      %v579 = vadd.f32 0.0, %v578
      %v580 = vpop.f32.mrb[0].mxu0
      %v581 = vpop.f32.mrb[0].mxu0
      %v582 = vpop.f32.mrb[0].mxu0
      %583 = vdwg.mxu0
      %v584 = vadd.f32 %v487, %v579
      %v585 = vld [vmem:[%s488] sm:$0x1]
      %v586 = vld [vmem:[%s488 + $0x4] sm:$0x1]
      %s587 = scalar_lea.vmem %s1, 128
      %v588 = vld [vmem:[%s587] sm:$0xf]
      %v589 = vld [vmem:[%s587 + $0x4] sm:$0xf]
      %v590 = vld [vmem:[%s587 + $0x8] sm:$0xf]
      %v591 = vld [vmem:[%s587 + $0xc] sm:$0xf]
      %v592 = vld [vmem:[%s587 + $0x10] sm:$0xf]
      %v593 = vld [vmem:[%s587 + $0x14] sm:$0xf]
      %v594 = vld [vmem:[%s587 + $0x18] sm:$0xf]
      %v595 = vld [vmem:[%s587 + $0x1c] sm:$0xf]
      %v598 = vcombine.low %v585, %v586
      %v600 = vunpack.c.l.s4 1966171168
      %v601 = vunpack.c.0.s8 %v600
      %v602 = vlaneseq
      %v603 = vshrl.u32 %v602, 7
      %v604 = vsub.s32 %v601, %v603
      %v605 = vrot.slane %v598, %v604
      %v607 = vunpack.c.l.s4 1966171168
      %v608 = vunpack.c.0.s8 %v607
      %v609 = vlaneseq
      %v610 = vshrl.u32 %v609, 7
      %v611 = vsub.s32 %v608, %v610
      %v612 = vrot.slane %v605, %v611
      %613 = vrot.lane.b32.xlu0 %v612, 64
      %v614 = vpop.permute.xlu0 %613
      %v623 = vunpack.c.l.b16 %v588
      %v624 = vunpack.c.l.b16 %v589
      %v625 = vunpack.c.l.b16 %v590
      %v626 = vunpack.c.l.b16 %v591
      %v627 = vunpack.c.l.b16 %v592
      %v628 = vunpack.c.l.b16 %v593
      %v629 = vunpack.c.l.b16 %v594
      %v630 = vunpack.c.l.b16 %v595
      %v631 = vpack.c.b16 %v624, %v623
      %v632 = vpack.c.b16 %v626, %v625
      %v633 = vpack.c.b16 %v628, %v627
      %v634 = vpack.c.b16 %v630, %v629
      %v640 = vsel %vm232, %v614, 0
      %642 = vmatprep.subr.bf16.mxu0 0
      %643 = vmatpush1.bf16.msra.mxu0 %v631
      %644 = vmatprep.subr.bf16.mxu0 0
      %645 = vmatpush1.bf16.msra.mxu0 %v632
      %646 = vmatprep.subr.bf16.mxu0 0
      %647 = vmatpush1.bf16.msra.mxu0 %v633
      %648 = vmatprep.subr.bf16.mxu0 0
      %649 = vmatpush1.bf16.msra.mxu0 %v634
      %650 = vmatprep.subr.bf16.mxu0 0
      %651 = vmatpush1.bf16.msra.mxu0 0
      %652 = vmatprep.subr.bf16.mxu0 0
      %653 = vmatpush1.bf16.msra.mxu0 0
      %654 = vmatprep.subr.bf16.mxu0 0
      %655 = vmatpush1.bf16.msra.mxu0 0
      %656 = vmatprep.subr.bf16.mxu0 0
      %657 = vmatpush1.bf16.msra.mxu0 0
      %658 = vmatprep.subr.bf16.mxu0 0
      %659 = vmatpush1.bf16.msra.mxu0 0
      %660 = vmatprep.subr.bf16.mxu0 0
      %661 = vmatpush1.bf16.msra.mxu0 0
      %662 = vmatprep.subr.bf16.mxu0 0
      %663 = vmatpush1.bf16.msra.mxu0 0
      %664 = vmatprep.subr.bf16.mxu0 0
      %665 = vmatpush1.bf16.msra.mxu0 0
      %666 = vmatprep.subr.bf16.mxu0 0
      %667 = vmatpush1.bf16.msra.mxu0 0
      %668 = vmatprep.subr.bf16.mxu0 0
      %669 = vmatpush1.bf16.msra.mxu0 0
      %670 = vmatprep.subr.bf16.mxu0 0
      %671 = vmatpush1.bf16.msra.mxu0 0
      %672 = vmatprep.subr.bf16.mxu0 0
      %673 = vmatpush1.bf16.msra.mxu0 0
      %674 = vmatprep.mubr.bf16.mxu0 0
      %675 = vmatmul.mubr.bf16.gmra.mrb[0].mxu0 %v640
      %v676 = vpop.f32.mrb[0].mxu0
      %v677 = vadd.f32 0.0, %v676
      %v678 = vpop.f32.mrb[0].mxu0
      %v679 = vpop.f32.mrb[0].mxu0
      %v680 = vpop.f32.mrb[0].mxu0
      %681 = vdwg.mxu0
      %v682 = vadd.f32 %v584, %v677
      %v683 = vld [vmem:[%s488] sm:$0x3]
      %v684 = vld [vmem:[%s488 + $0x4] sm:$0x3]
      %v688 = vunpack.c.l.s4 1966171168
      %v689 = vunpack.c.0.s8 %v688
      %v690 = vlaneseq
      %v691 = vshrl.u32 %v690, 7
      %v692 = vsub.s32 %v689, %v691
      %v693 = vrot.slane %v683, %v692
      %v694 = vcombine.high %v693, %v693
      %v696 = vunpack.c.l.s4 1966171168
      %v697 = vunpack.c.0.s8 %v696
      %v698 = vlaneseq
      %v699 = vshrl.u32 %v698, 7
      %v700 = vsub.s32 %v697, %v699
      %v701 = vrot.slane %v684, %v700
      %v702 = vcombine.high %v701, %v701
      %v704 = vshrl.u32 %v693, 16
      %v706 = vrot.slane %v704, 7
      %v707 = vrot.slane %v706, 1
      %v709 = vshll.u32 %v694, 16
      %v711 = vsel %vm377, %v707, %v709
      %v713 = vshrl.u32 %v701, 16
      %v715 = vrot.slane %v713, 7
      %v716 = vrot.slane %v715, 1
      %v718 = vshll.u32 %v702, 16
      %v720 = vsel %vm377, %v716, %v718
      %s721 = scalar_lea.vmem %s1, 160
      %v722 = vld [vmem:[%s721] sm:$0xf]
      %v723 = vld [vmem:[%s721 + $0x4] sm:$0xf]
      %v724 = vld [vmem:[%s721 + $0x8] sm:$0xf]
      %v725 = vld [vmem:[%s721 + $0xc] sm:$0xf]
      %v726 = vld [vmem:[%s721 + $0x10] sm:$0xf]
      %v727 = vld [vmem:[%s721 + $0x14] sm:$0xf]
      %v728 = vld [vmem:[%s721 + $0x18] sm:$0xf]
      %v729 = vld [vmem:[%s721 + $0x1c] sm:$0xf]
      %v730 = vcombine.low %v711, %v720
      %v732 = vunpack.c.l.s4 1966171168
      %v733 = vunpack.c.0.s8 %v732
      %v734 = vlaneseq
      %v735 = vshrl.u32 %v734, 7
      %v736 = vsub.s32 %v733, %v735
      %v737 = vrot.slane %v730, %v736
      %v739 = vunpack.c.l.s4 1966171168
      %v740 = vunpack.c.0.s8 %v739
      %v741 = vlaneseq
      %v742 = vshrl.u32 %v741, 7
      %v743 = vsub.s32 %v740, %v742
      %v744 = vrot.slane %v737, %v743
      %v753 = vunpack.c.l.b16 %v722
      %v754 = vunpack.c.l.b16 %v723
      %v755 = vunpack.c.l.b16 %v724
      %v756 = vunpack.c.l.b16 %v725
      %v757 = vunpack.c.l.b16 %v726
      %v758 = vunpack.c.l.b16 %v727
      %v759 = vunpack.c.l.b16 %v728
      %v760 = vunpack.c.l.b16 %v729
      %v761 = vpack.c.b16 %v754, %v753
      %v762 = vpack.c.b16 %v756, %v755
      %v763 = vpack.c.b16 %v758, %v757
      %v764 = vpack.c.b16 %v760, %v759
      %v770 = vsel %vm232, %v744, 0
      %772 = vmatprep.subr.bf16.mxu0 0
      %773 = vmatpush1.bf16.msra.mxu0 %v761
      %774 = vmatprep.subr.bf16.mxu0 0
      %775 = vmatpush1.bf16.msra.mxu0 %v762
      %776 = vmatprep.subr.bf16.mxu0 0
      %777 = vmatpush1.bf16.msra.mxu0 %v763
      %778 = vmatprep.subr.bf16.mxu0 0
      %779 = vmatpush1.bf16.msra.mxu0 %v764
      %780 = vmatprep.subr.bf16.mxu0 0
      %781 = vmatpush1.bf16.msra.mxu0 0
      %782 = vmatprep.subr.bf16.mxu0 0
      %783 = vmatpush1.bf16.msra.mxu0 0
      %784 = vmatprep.subr.bf16.mxu0 0
      %785 = vmatpush1.bf16.msra.mxu0 0
      %786 = vmatprep.subr.bf16.mxu0 0
      %787 = vmatpush1.bf16.msra.mxu0 0
      %788 = vmatprep.subr.bf16.mxu0 0
      %789 = vmatpush1.bf16.msra.mxu0 0
      %790 = vmatprep.subr.bf16.mxu0 0
      %791 = vmatpush1.bf16.msra.mxu0 0
      %792 = vmatprep.subr.bf16.mxu0 0
      %793 = vmatpush1.bf16.msra.mxu0 0
      %794 = vmatprep.subr.bf16.mxu0 0
      %795 = vmatpush1.bf16.msra.mxu0 0
      %796 = vmatprep.subr.bf16.mxu0 0
      %797 = vmatpush1.bf16.msra.mxu0 0
      %798 = vmatprep.subr.bf16.mxu0 0
      %799 = vmatpush1.bf16.msra.mxu0 0
      %800 = vmatprep.subr.bf16.mxu0 0
      %801 = vmatpush1.bf16.msra.mxu0 0
      %802 = vmatprep.subr.bf16.mxu0 0
      %803 = vmatpush1.bf16.msra.mxu0 0
      %804 = vmatprep.mubr.bf16.mxu0 0
      %805 = vmatmul.mubr.bf16.gmra.mrb[0].mxu0 %v770
      %v806 = vpop.f32.mrb[0].mxu0
      %v807 = vadd.f32 0.0, %v806
      %v808 = vpop.f32.mrb[0].mxu0
      %v809 = vpop.f32.mrb[0].mxu0
      %v810 = vpop.f32.mrb[0].mxu0
      %811 = vdwg.mxu0
      %v812 = vadd.f32 %v682, %v807
      %s813 = scalar_lea.vmem %s164, 4
      %v814 = vld [vmem:[%s813] sm:$0x1]
      %v815 = vld [vmem:[%s813 + $0x4] sm:$0x1]
      %s816 = scalar_lea.vmem %s1, 192
      %v817 = vld [vmem:[%s816] sm:$0xf]
      %v818 = vld [vmem:[%s816 + $0x4] sm:$0xf]
      %v819 = vld [vmem:[%s816 + $0x8] sm:$0xf]
      %v820 = vld [vmem:[%s816 + $0xc] sm:$0xf]
      %v821 = vld [vmem:[%s816 + $0x10] sm:$0xf]
      %v822 = vld [vmem:[%s816 + $0x14] sm:$0xf]
      %v823 = vld [vmem:[%s816 + $0x18] sm:$0xf]
      %v824 = vld [vmem:[%s816 + $0x1c] sm:$0xf]
      %v827 = vcombine.low %v814, %v815
      %v829 = vunpack.c.l.s4 1966171168
      %v830 = vunpack.c.0.s8 %v829
      %v831 = vlaneseq
      %v832 = vshrl.u32 %v831, 7
      %v833 = vsub.s32 %v830, %v832
      %v834 = vrot.slane %v827, %v833
      %v836 = vunpack.c.l.s4 1966171168
      %v837 = vunpack.c.0.s8 %v836
      %v838 = vlaneseq
      %v839 = vshrl.u32 %v838, 7
      %v840 = vsub.s32 %v837, %v839
      %v841 = vrot.slane %v834, %v840
      %v850 = vunpack.c.l.b16 %v817
      %v851 = vunpack.c.l.b16 %v818
      %v852 = vunpack.c.l.b16 %v819
      %v853 = vunpack.c.l.b16 %v820
      %v854 = vunpack.c.l.b16 %v821
      %v855 = vunpack.c.l.b16 %v822
      %v856 = vunpack.c.l.b16 %v823
      %v857 = vunpack.c.l.b16 %v824
      %v858 = vpack.c.b16 %v851, %v850
      %v859 = vpack.c.b16 %v853, %v852
      %v860 = vpack.c.b16 %v855, %v854
      %v861 = vpack.c.b16 %v857, %v856
      %v867 = vsel %vm232, %v841, 0
      %869 = vmatprep.subr.bf16.mxu0 0
      %870 = vmatpush1.bf16.msra.mxu0 %v858
      %871 = vmatprep.subr.bf16.mxu0 0
      %872 = vmatpush1.bf16.msra.mxu0 %v859
      %873 = vmatprep.subr.bf16.mxu0 0
      %874 = vmatpush1.bf16.msra.mxu0 %v860
      %875 = vmatprep.subr.bf16.mxu0 0
      %876 = vmatpush1.bf16.msra.mxu0 %v861
      %877 = vmatprep.subr.bf16.mxu0 0
      %878 = vmatpush1.bf16.msra.mxu0 0
      %879 = vmatprep.subr.bf16.mxu0 0
      %880 = vmatpush1.bf16.msra.mxu0 0
      %881 = vmatprep.subr.bf16.mxu0 0
      %882 = vmatpush1.bf16.msra.mxu0 0
      %883 = vmatprep.subr.bf16.mxu0 0
      %884 = vmatpush1.bf16.msra.mxu0 0
      %885 = vmatprep.subr.bf16.mxu0 0
      %886 = vmatpush1.bf16.msra.mxu0 0
      %887 = vmatprep.subr.bf16.mxu0 0
      %888 = vmatpush1.bf16.msra.mxu0 0
      %889 = vmatprep.subr.bf16.mxu0 0
      %890 = vmatpush1.bf16.msra.mxu0 0
      %891 = vmatprep.subr.bf16.mxu0 0
      %892 = vmatpush1.bf16.msra.mxu0 0
      %893 = vmatprep.subr.bf16.mxu0 0
      %894 = vmatpush1.bf16.msra.mxu0 0
      %895 = vmatprep.subr.bf16.mxu0 0
      %896 = vmatpush1.bf16.msra.mxu0 0
      %897 = vmatprep.subr.bf16.mxu0 0
      %898 = vmatpush1.bf16.msra.mxu0 0
      %899 = vmatprep.subr.bf16.mxu0 0
      %900 = vmatpush1.bf16.msra.mxu0 0
      %901 = vmatprep.mubr.bf16.mxu0 0
      %902 = vmatmul.mubr.bf16.gmra.mrb[0].mxu0 %v867
      %v903 = vpop.f32.mrb[0].mxu0
      %v904 = vadd.f32 0.0, %v903
      %v905 = vpop.f32.mrb[0].mxu0
      %v906 = vpop.f32.mrb[0].mxu0
      %v907 = vpop.f32.mrb[0].mxu0
      %908 = vdwg.mxu0
      %v909 = vadd.f32 %v812, %v904
      %v910 = vld [vmem:[%s813] sm:$0x1]
      %v911 = vld [vmem:[%s813 + $0x4] sm:$0x1]
      %s912 = scalar_lea.vmem %s1, 224
      %v913 = vld [vmem:[%s912] sm:$0xf]
      %v914 = vld [vmem:[%s912 + $0x4] sm:$0xf]
      %v915 = vld [vmem:[%s912 + $0x8] sm:$0xf]
      %v916 = vld [vmem:[%s912 + $0xc] sm:$0xf]
      %v917 = vld [vmem:[%s912 + $0x10] sm:$0xf]
      %v918 = vld [vmem:[%s912 + $0x14] sm:$0xf]
      %v919 = vld [vmem:[%s912 + $0x18] sm:$0xf]
      %v920 = vld [vmem:[%s912 + $0x1c] sm:$0xf]
      %v923 = vcombine.low %v910, %v911
      %v925 = vunpack.c.l.s4 1966171168
      %v926 = vunpack.c.0.s8 %v925
      %v927 = vlaneseq
      %v928 = vshrl.u32 %v927, 7
      %v929 = vsub.s32 %v926, %v928
      %v930 = vrot.slane %v923, %v929
      %v932 = vunpack.c.l.s4 1966171168
      %v933 = vunpack.c.0.s8 %v932
      %v934 = vlaneseq
      %v935 = vshrl.u32 %v934, 7
      %v936 = vsub.s32 %v933, %v935
      %v937 = vrot.slane %v930, %v936
      %938 = vrot.lane.b32.xlu0 %v937, 64
      %v939 = vpop.permute.xlu0 %938
      %v948 = vunpack.c.l.b16 %v913
      %v949 = vunpack.c.l.b16 %v914
      %v950 = vunpack.c.l.b16 %v915
      %v951 = vunpack.c.l.b16 %v916
      %v952 = vunpack.c.l.b16 %v917
      %v953 = vunpack.c.l.b16 %v918
      %v954 = vunpack.c.l.b16 %v919
      %v955 = vunpack.c.l.b16 %v920
      %v956 = vpack.c.b16 %v949, %v948
      %v957 = vpack.c.b16 %v951, %v950
      %v958 = vpack.c.b16 %v953, %v952
      %v959 = vpack.c.b16 %v955, %v954
      %v965 = vsel %vm232, %v939, 0
      %967 = vmatprep.subr.bf16.mxu0 0
      %968 = vmatpush1.bf16.msra.mxu0 %v956
      %969 = vmatprep.subr.bf16.mxu0 0
      %970 = vmatpush1.bf16.msra.mxu0 %v957
      %971 = vmatprep.subr.bf16.mxu0 0
      %972 = vmatpush1.bf16.msra.mxu0 %v958
      %973 = vmatprep.subr.bf16.mxu0 0
      %974 = vmatpush1.bf16.msra.mxu0 %v959
      %975 = vmatprep.subr.bf16.mxu0 0
      %976 = vmatpush1.bf16.msra.mxu0 0
      %977 = vmatprep.subr.bf16.mxu0 0
      %978 = vmatpush1.bf16.msra.mxu0 0
      %979 = vmatprep.subr.bf16.mxu0 0
      %980 = vmatpush1.bf16.msra.mxu0 0
      %981 = vmatprep.subr.bf16.mxu0 0
      %982 = vmatpush1.bf16.msra.mxu0 0
      %983 = vmatprep.subr.bf16.mxu0 0
      %984 = vmatpush1.bf16.msra.mxu0 0
      %985 = vmatprep.subr.bf16.mxu0 0
      %986 = vmatpush1.bf16.msra.mxu0 0
      %987 = vmatprep.subr.bf16.mxu0 0
      %988 = vmatpush1.bf16.msra.mxu0 0
      %989 = vmatprep.subr.bf16.mxu0 0
      %990 = vmatpush1.bf16.msra.mxu0 0
      %991 = vmatprep.subr.bf16.mxu0 0
      %992 = vmatpush1.bf16.msra.mxu0 0
      %993 = vmatprep.subr.bf16.mxu0 0
      %994 = vmatpush1.bf16.msra.mxu0 0
      %995 = vmatprep.subr.bf16.mxu0 0
      %996 = vmatpush1.bf16.msra.mxu0 0
      %997 = vmatprep.subr.bf16.mxu0 0
      %998 = vmatpush1.bf16.msra.mxu0 0
      %999 = vmatprep.mubr.bf16.mxu0 0
      %1000 = vmatmul.mubr.bf16.gmra.mrb[0].mxu0 %v965
      %v1001 = vpop.f32.mrb[0].mxu0
      %v1002 = vadd.f32 0.0, %v1001
      %v1003 = vpop.f32.mrb[0].mxu0
      %v1004 = vpop.f32.mrb[0].mxu0
      %v1005 = vpop.f32.mrb[0].mxu0
      %1006 = vdwg.mxu0
      %v1007 = vadd.f32 %v909, %v1002
      %v1008 = vld [vmem:[%s813] sm:$0x3]
      %v1009 = vld [vmem:[%s813 + $0x4] sm:$0x3]
      %v1013 = vunpack.c.l.s4 1966171168
      %v1014 = vunpack.c.0.s8 %v1013
      %v1015 = vlaneseq
      %v1016 = vshrl.u32 %v1015, 7
      %v1017 = vsub.s32 %v1014, %v1016
      %v1018 = vrot.slane %v1008, %v1017
      %v1019 = vcombine.high %v1018, %v1018
      %v1021 = vunpack.c.l.s4 1966171168
      %v1022 = vunpack.c.0.s8 %v1021
      %v1023 = vlaneseq
      %v1024 = vshrl.u32 %v1023, 7
      %v1025 = vsub.s32 %v1022, %v1024
      %v1026 = vrot.slane %v1009, %v1025
      %v1027 = vcombine.high %v1026, %v1026
      %v1029 = vshrl.u32 %v1018, 16
      %v1031 = vrot.slane %v1029, 7
      %v1032 = vrot.slane %v1031, 1
      %v1034 = vshll.u32 %v1019, 16
      %v1036 = vsel %vm377, %v1032, %v1034
      %v1038 = vshrl.u32 %v1026, 16
      %v1040 = vrot.slane %v1038, 7
      %v1041 = vrot.slane %v1040, 1
      %v1043 = vshll.u32 %v1027, 16
      %v1045 = vsel %vm377, %v1041, %v1043
      %s1046 = scalar_lea.vmem %s1, 256
      %v1047 = vld [vmem:[%s1046] sm:$0xf]
      %v1048 = vld [vmem:[%s1046 + $0x4] sm:$0xf]
      %v1049 = vld [vmem:[%s1046 + $0x8] sm:$0xf]
      %v1050 = vld [vmem:[%s1046 + $0xc] sm:$0xf]
      %v1051 = vld [vmem:[%s1046 + $0x10] sm:$0xf]
      %v1052 = vld [vmem:[%s1046 + $0x14] sm:$0xf]
      %v1053 = vld [vmem:[%s1046 + $0x18] sm:$0xf]
      %v1054 = vld [vmem:[%s1046 + $0x1c] sm:$0xf]
      %v1055 = vcombine.low %v1036, %v1045
      %v1057 = vunpack.c.l.s4 1966171168
      %v1058 = vunpack.c.0.s8 %v1057
      %v1059 = vlaneseq
      %v1060 = vshrl.u32 %v1059, 7
      %v1061 = vsub.s32 %v1058, %v1060
      %v1062 = vrot.slane %v1055, %v1061
      %v1064 = vunpack.c.l.s4 1966171168
      %v1065 = vunpack.c.0.s8 %v1064
      %v1066 = vlaneseq
      %v1067 = vshrl.u32 %v1066, 7
      %v1068 = vsub.s32 %v1065, %v1067
      %v1069 = vrot.slane %v1062, %v1068
      %v1078 = vunpack.c.l.b16 %v1047
      %v1079 = vunpack.c.l.b16 %v1048
      %v1080 = vunpack.c.l.b16 %v1049
      %v1081 = vunpack.c.l.b16 %v1050
      %v1082 = vunpack.c.l.b16 %v1051
      %v1083 = vunpack.c.l.b16 %v1052
      %v1084 = vunpack.c.l.b16 %v1053
      %v1085 = vunpack.c.l.b16 %v1054
      %v1086 = vpack.c.b16 %v1079, %v1078
      %v1087 = vpack.c.b16 %v1081, %v1080
      %v1088 = vpack.c.b16 %v1083, %v1082
      %v1089 = vpack.c.b16 %v1085, %v1084
      %v1095 = vsel %vm232, %v1069, 0
      %1097 = vmatprep.subr.bf16.mxu0 0
      %1098 = vmatpush1.bf16.msra.mxu0 %v1086
      %1099 = vmatprep.subr.bf16.mxu0 0
      %1100 = vmatpush1.bf16.msra.mxu0 %v1087
      %1101 = vmatprep.subr.bf16.mxu0 0
      %1102 = vmatpush1.bf16.msra.mxu0 %v1088
      %1103 = vmatprep.subr.bf16.mxu0 0
      %1104 = vmatpush1.bf16.msra.mxu0 %v1089
      %1105 = vmatprep.subr.bf16.mxu0 0
      %1106 = vmatpush1.bf16.msra.mxu0 0
      %1107 = vmatprep.subr.bf16.mxu0 0
      %1108 = vmatpush1.bf16.msra.mxu0 0
      %1109 = vmatprep.subr.bf16.mxu0 0
      %1110 = vmatpush1.bf16.msra.mxu0 0
      %1111 = vmatprep.subr.bf16.mxu0 0
      %1112 = vmatpush1.bf16.msra.mxu0 0
      %1113 = vmatprep.subr.bf16.mxu0 0
      %1114 = vmatpush1.bf16.msra.mxu0 0
      %1115 = vmatprep.subr.bf16.mxu0 0
      %1116 = vmatpush1.bf16.msra.mxu0 0
      %1117 = vmatprep.subr.bf16.mxu0 0
      %1118 = vmatpush1.bf16.msra.mxu0 0
      %1119 = vmatprep.subr.bf16.mxu0 0
      %1120 = vmatpush1.bf16.msra.mxu0 0
      %1121 = vmatprep.subr.bf16.mxu0 0
      %1122 = vmatpush1.bf16.msra.mxu0 0
      %1123 = vmatprep.subr.bf16.mxu0 0
      %1124 = vmatpush1.bf16.msra.mxu0 0
      %1125 = vmatprep.subr.bf16.mxu0 0
      %1126 = vmatpush1.bf16.msra.mxu0 0
      %1127 = vmatprep.subr.bf16.mxu0 0
      %1128 = vmatpush1.bf16.msra.mxu0 0
      %1129 = vmatprep.mubr.bf16.mxu0 0
      %1130 = vmatmul.mubr.bf16.gmra.mrb[0].mxu0 %v1095
      %v1131 = vpop.f32.mrb[0].mxu0
      %v1132 = vadd.f32 0.0, %v1131
      %v1133 = vpop.f32.mrb[0].mxu0
      %v1134 = vpop.f32.mrb[0].mxu0
      %v1135 = vpop.f32.mrb[0].mxu0
      %1136 = vdwg.mxu0
      %v1137 = vadd.f32 %v1007, %v1132
      %v1138 = vld [vmem:[%s2] sm:$0x1]
      %v1140 = vlaneseq
      %v1141 = vshrl.u32 %v1140, 7
      %v1142 = vsub.s32 0, %v1141
      %v1143 = vrot.slane %v1138, %v1142
      %v1145 = vadd.f32 %v1137, %v1143
      %v1146 = vmax.f32 %v1145, 0.0
      %v1149 = vunpack.c.l.s4 1983009808
      %v1150 = vunpack.c.0.s8 %v1149
      %v1151 = vlaneseq
      %v1152 = vshrl.u32 %v1151, 7
      %v1153 = vsub.s32 %v1150, %v1152
      %v1154 = vrot.slane %v1146, %v1153
      %v1155 = vcombine.high %v1154, %v1154
      %v1158 = vpack.c.bf16 %v1154, %v1154
      %v1159 = vpack.c.bf16 %v1155, %v1155
      %vm1160 = vcmask 516096
      %1161 = vst.msk [vmem:[%s168] sm:$0x1] %vm1160, %v1158
      %1162 = vst.msk [vmem:[%s168 + $0x1] sm:$0x1] %vm1160, %v1159
      %p1163 = scmp.lt.s32.totalorder %s14, 1
      %s1164 = scalar_select %p1163, %s14, 1
      %s1165 = smul.addr %s1164, 2
      %s1166 = scalar_lea.vmem %s3, %s1165
      // Predicated region
      $region33: #{st_dim_cnn_forward.7} parent=31 // pred_check
        %p1167 = pneg %p100
      $region34: #{st_dim_cnn_forward.7} parent=31 // pred_check_branch
        %1169 = sbr.rel (%p1167) target = $region36
      $region35: #{st_dim_cnn_forward.7} parent=31 // pred_region
        _
      $region36: #{st_dim_cnn_forward.7} parent=31 // pred_fallthru
        _
    $region32: #{st_dim_cnn_forward.7} parent=5 // pred_fallthru
      _
    %p1170 = scmp.le.s32.totalorder 2, %s9
    // Predicated region
    $region37: #{st_dim_cnn_forward.7} parent=5 // pred_check
      %p1171 = pneg %p1170
    $region38: #{st_dim_cnn_forward.7} parent=5 // pred_check_branch
      %1173 = sbr.rel (%p1171) target = $region40
    $region39: #{st_dim_cnn_forward.7} parent=5 // pred_region
      %s1174 = ssub.s32 %s9, 2
      // Predicated region
      $region41: #{st_dim_cnn_forward.7} parent=39 // pred_check
        %p1175 = pneg %p106
      $region42: #{st_dim_cnn_forward.7} parent=39 // pred_check_branch
        %1177 = sbr.rel (%p1175) target = $region44
      $region43: #{st_dim_cnn_forward.7} parent=39 // pred_region
        %p1178 = scmp.lt.s32.totalorder %s15, 1
        %s1179 = scalar_select %p1178, %s15, 1
        %s1180 = smul.addr %s1179, 2
        %s1181 = scalar_lea.vmem %s3, %s1180
      $region44: #{st_dim_cnn_forward.7} parent=39 // pred_fallthru
        _
    $region40: #{st_dim_cnn_forward.7} parent=5 // pred_fallthru
      _
  $region6: #{st_dim_cnn_forward.7} parent=0 // loop_footer
    %s13 = sadd.s32 1, %s9
  $region7: #{st_dim_cnn_forward.7} parent=0 // loop_footer_branch
    %8 = sbr.rel target = $region3
  $region8: #{st_dim_cnn_forward.7} parent=0 // loop_exit
    _

// kernel: st_dim_cnn_forward.8
$region0: #{st_dim_cnn_forward.8}
  #allocation0 [shape = 'u32[]', space=smem, size = 0x4, offset = 0x4, fixed_abs, tag = 'smem constant byte address 0x4 - core index']
  #allocation1 [shape = 'u32[144,128]{1,0:T(1,128)}', space=vmem, size = 0x12000, scoped, tag = 'internal scratch']
  %s0 = inlined_call_operand.vmem [shape: bf16[2,4,4,64], index: 0, kind: input, shape index: {}]
  %s1 = inlined_call_operand.vmem [shape: bf16[3,3,64,128], index: 1, kind: input, shape index: {}]
  %s2 = inlined_call_operand.vmem [shape: f32[1,128], index: 2, kind: input, shape index: {}]
  %s3 = inlined_call_operand.vmem [shape: bf16[2,2,2,128], index: 3, kind: output, shape index: {}]
  %s4 = sld [smem:[#allocation0]]
  $region45: #{st_dim_cnn_forward.8} parent=0
    _
  %s6 = ssub.s32 1, %s4
  %s7 = scalar_select 0, %s6, %s4
  loop: start=0, step=1, limit=4
  $region2: #{st_dim_cnn_forward.8} parent=0 // loop_pre_header
    _
  $region3: #{st_dim_cnn_forward.8} parent=0 // loop_header
    %s9 = sphi 0, %s13
    %p10 = scmp.ge.s32.totalorder %s9, 4
    %s19 = sphi 0, %s21
    %s22 = sphi 0, %s19
    %s23 = sphi 0, %s22
    %s39 = sphi 0, %s23
    %s43 = sphi 0, %s43
    %s45 = sphi 0, %s43
    %s46 = sphi 0, %s45
    %s60 = sphi 0, %s46
    %s64 = sphi 0, %s64
    %s66 = sphi 0, %s64
    %s67 = sphi 0, %s66
    %s81 = sphi 0, %s67
    %s87 = sphi 0, %s89
    %s90 = sphi 0, %s87
    %s91 = sphi 0, %s90
    %s107 = sphi 0, %s91
  $region4: #{st_dim_cnn_forward.8} parent=0 // loop_header_branch
    %12 = sbr.rel (%p10) target = $region8
  $region5: #{st_dim_cnn_forward.8} parent=0 // loop_body
    %s14 = ssub.s32 %s9, 1
    %s15 = ssub.s32 %s9, 2
    %s16 = sadd.s32 %s9, 1
    %s17 = ssub.s32 %s9, %s16
    %p18 = scmp.eq.s32.totalorder %s17, 0
    %s20 = sadd.s32 %s19, 1
    %s21 = scalar_select %p18, %s19, %s20
    %p24 = pneg %p18
    %p25 = scmp.eq.s32.totalorder %s9, 1
    %p26 = por %p24, %p25
    %p27 = scmp.ne.s32.totalorder %s19, %s22
    %p28 = scmp.eq.s32.totalorder %s9, 0
    %p29 = por %p27, %p28
    %p30 = scmp.ne.s32.totalorder %s19, %s22
    %p31 = scmp.eq.s32.totalorder %s14, 1
    %p32 = por %p30, %p31
    %p33 = scmp.ne.s32.totalorder %s22, %s23
    %p34 = scmp.eq.s32.totalorder %s14, 0
    %p35 = por %p33, %p34
    %p36 = scmp.ne.s32.totalorder %s22, %s23
    %p37 = scmp.eq.s32.totalorder %s15, 1
    %p38 = por %p36, %p37
    %p40 = scmp.ne.s32.totalorder %s23, %s39
    %p41 = scmp.eq.s32.totalorder %s15, 0
    %p42 = por %p40, %p41
    %s44 = sadd.s32 %s43, 1
    %p47 = scmp.eq.s32.totalorder %s9, 1
    %p48 = scmp.ne.s32.totalorder %s43, %s45
    %p49 = scmp.eq.s32.totalorder %s9, 0
    %p50 = por %p48, %p49
    %p51 = scmp.ne.s32.totalorder %s43, %s45
    %p52 = scmp.eq.s32.totalorder %s14, 1
    %p53 = por %p51, %p52
    %p54 = scmp.ne.s32.totalorder %s45, %s46
    %p55 = scmp.eq.s32.totalorder %s14, 0
    %p56 = por %p54, %p55
    %p57 = scmp.ne.s32.totalorder %s45, %s46
    %p58 = scmp.eq.s32.totalorder %s15, 1
    %p59 = por %p57, %p58
    %p61 = scmp.ne.s32.totalorder %s46, %s60
    %p62 = scmp.eq.s32.totalorder %s15, 0
    %p63 = por %p61, %p62
    %s65 = sadd.s32 %s64, 1
    %p68 = scmp.eq.s32.totalorder %s9, 1
    %p69 = scmp.ne.s32.totalorder %s64, %s66
    %p70 = scmp.eq.s32.totalorder %s9, 0
    %p71 = por %p69, %p70
    %p72 = scmp.ne.s32.totalorder %s64, %s66
    %p73 = scmp.eq.s32.totalorder %s14, 1
    %p74 = por %p72, %p73
    %p75 = scmp.ne.s32.totalorder %s66, %s67
    %p76 = scmp.eq.s32.totalorder %s14, 0
    %p77 = por %p75, %p76
    %p78 = scmp.ne.s32.totalorder %s66, %s67
    %p79 = scmp.eq.s32.totalorder %s15, 1
    %p80 = por %p78, %p79
    %p82 = scmp.ne.s32.totalorder %s67, %s81
    %p83 = scmp.eq.s32.totalorder %s15, 0
    %p84 = por %p82, %p83
    %s85 = ssub.s32 %s9, %s16
    %p86 = scmp.eq.s32.totalorder %s85, 0
    %s88 = sadd.s32 %s87, 1
    %s89 = scalar_select %p86, %s87, %s88
    %p92 = pneg %p86
    %p93 = scmp.eq.s32.totalorder %s9, 1
    %p94 = por %p92, %p93
    %p95 = scmp.ne.s32.totalorder %s87, %s90
    %p96 = scmp.eq.s32.totalorder %s9, 0
    %p97 = por %p95, %p96
    %p98 = scmp.ne.s32.totalorder %s87, %s90
    %p99 = scmp.eq.s32.totalorder %s14, 1
    %p100 = por %p98, %p99
    %p101 = scmp.ne.s32.totalorder %s90, %s91
    %p102 = scmp.eq.s32.totalorder %s14, 0
    %p103 = por %p101, %p102
    %p104 = scmp.ne.s32.totalorder %s90, %s91
    %p105 = scmp.eq.s32.totalorder %s15, 1
    %p106 = por %p104, %p105
    %p108 = scmp.ne.s32.totalorder %s91, %s107
    %p109 = scmp.eq.s32.totalorder %s15, 0
    %p110 = por %p108, %p109
    %p111 = scmp.le.s32.totalorder 1, %s9
    %p112 = scmp.lt.s32.totalorder %s9, 3
    %p113 = pnand %p111, %p112
    %p114 = pneg %p113
    // Predicated region
    $region9: #{st_dim_cnn_forward.8} parent=5 // pred_check
      _
    $region10: #{st_dim_cnn_forward.8} parent=5 // pred_check_branch
      %116 = sbr.rel (%p113) target = $region12
    $region11: #{st_dim_cnn_forward.8} parent=5 // pred_region
      %s117 = ssub.s32 %s9, 1
      // Predicated region
      $region13: #{st_dim_cnn_forward.8} parent=11 // pred_check
        %p118 = pneg %p56
      $region14: #{st_dim_cnn_forward.8} parent=11 // pred_check_branch
        %120 = sbr.rel (%p118) target = $region16
      $region15: #{st_dim_cnn_forward.8} parent=11 // pred_region
        _
      $region16: #{st_dim_cnn_forward.8} parent=11 // pred_fallthru
        _
      // Predicated region
      $region17: #{st_dim_cnn_forward.8} parent=11 // pred_check
        %p121 = pneg %p77
      $region18: #{st_dim_cnn_forward.8} parent=11 // pred_check_branch
        %123 = sbr.rel (%p121) target = $region20
      $region19: #{st_dim_cnn_forward.8} parent=11 // pred_region
        _
      $region20: #{st_dim_cnn_forward.8} parent=11 // pred_fallthru
        _
    $region12: #{st_dim_cnn_forward.8} parent=5 // pred_fallthru
      _
    %p124 = scmp.lt.s32.totalorder %s9, 2
    // Predicated region
    $region21: #{st_dim_cnn_forward.8} parent=5 // pred_check
      %p125 = pneg %p124
    $region22: #{st_dim_cnn_forward.8} parent=5 // pred_check_branch
      %127 = sbr.rel (%p125) target = $region24
    $region23: #{st_dim_cnn_forward.8} parent=5 // pred_region
      // Predicated region
      $region25: #{st_dim_cnn_forward.8} parent=23 // pred_check
        %p128 = pneg %p29
      $region26: #{st_dim_cnn_forward.8} parent=23 // pred_check_branch
        %130 = sbr.rel (%p128) target = $region28
      $region27: #{st_dim_cnn_forward.8} parent=23 // pred_region
        %p131 = scmp.lt.s32.totalorder %s9, 1
        %s132 = scalar_select %p131, %s9, 1
        %s133 = smul.addr %s132, 4
        %s134 = smul.addr %s133, 2
        %s135 = scalar_lea.vmem %s0, %s134
      $region28: #{st_dim_cnn_forward.8} parent=23 // pred_fallthru
        _
    $region24: #{st_dim_cnn_forward.8} parent=5 // pred_fallthru
      _
    %p136 = scmp.le.s32.totalorder 1, %s9
    %p137 = scmp.lt.s32.totalorder %s9, 3
    %p138 = pnand %p136, %p137
    %p139 = pneg %p138
    // Predicated region
    $region29: #{st_dim_cnn_forward.8} parent=5 // pred_check
      _
    $region30: #{st_dim_cnn_forward.8} parent=5 // pred_check_branch
      %141 = sbr.rel (%p138) target = $region32
    $region31: #{st_dim_cnn_forward.8} parent=5 // pred_region
      %s142 = ssub.s32 %s9, 1
      %p143 = scmp.lt.s32.totalorder %s14, 1
      %s144 = scalar_select %p143, %s14, 1
      %s145 = smul.addr %s144, 4
      %s146 = smul.addr %s145, 2
      %s147 = scalar_lea.vmem %s0, %s146
      %p148 = pneg %p35
      %p149 = pneg %p32
      %p150 = pneg %p56
      %p151 = pneg %p53
      %p152 = pneg %p77
      %p153 = pneg %p74
      %p154 = pneg %p103
      %p155 = pneg %p100
      %p156 = scmp.lt.s32.totalorder %s14, 1
      %s157 = scalar_select %p156, %s14, 1
      %s158 = smul.addr %s157, 2
      %s159 = scalar_lea.vmem %s3, %s158
      %p160 = scmp.lt.s32.totalorder %s14, 1
      %s161 = scalar_select %p160, %s14, 1
      %s162 = smul.addr %s161, 4
      %s163 = smul.addr %s162, 2
      %s164 = scalar_lea.vmem %s0, %s163
      %p165 = scmp.lt.s32.totalorder %s14, 1
      %s166 = scalar_select %p165, %s14, 1
      %s167 = smul.addr %s166, 2
      %s168 = scalar_lea.vmem %s3, %s167
      %v170 = vld [vmem:[%s164] sm:$0x1]
      %v171 = vld [vmem:[%s164 + $0x2] sm:$0x1]
      %v172 = vld [vmem:[%s1] sm:$0xf]
      %v173 = vld [vmem:[%s1 + $0x4] sm:$0xf]
      %v174 = vld [vmem:[%s1 + $0x8] sm:$0xf]
      %v175 = vld [vmem:[%s1 + $0xc] sm:$0xf]
      %v176 = vld [vmem:[%s1 + $0x10] sm:$0xf]
      %v177 = vld [vmem:[%s1 + $0x14] sm:$0xf]
      %v178 = vld [vmem:[%s1 + $0x18] sm:$0xf]
      %v179 = vld [vmem:[%s1 + $0x1c] sm:$0xf]
      %v180 = vld [vmem:[%s164] sm:$0x3]
      %v181 = vld [vmem:[%s164 + $0x2] sm:$0x3]
      %v185 = vunpack.c.l.s4 1966171168
      %v186 = vunpack.c.0.s8 %v185
      %v187 = vlaneseq
      %v188 = vshrl.u32 %v187, 7
      %v189 = vsub.s32 %v186, %v188
      %v190 = vrot.slane %v180, %v189
      %v191 = vcombine.high %v190, %v190
      %v193 = vunpack.c.l.s4 1966171168
      %v194 = vunpack.c.0.s8 %v193
      %v195 = vlaneseq
      %v196 = vshrl.u32 %v195, 7
      %v197 = vsub.s32 %v194, %v196
      %v198 = vrot.slane %v181, %v197
      %v199 = vcombine.high %v198, %v198
      %vm200 = vsmask.f32 256
      %vm201 = vsmask.f32 1284
      %vm202 = vmor %vm200, %vm201
      %vm203 = vsmask.f32 2312
      %vm204 = vmor %vm202, %vm203
      %vm205 = vsmask.f32 3340
      %vm206 = vmor %vm204, %vm205
      %vm207 = vsmask.f32 4368
      %vm208 = vmor %vm206, %vm207
      %vm209 = vsmask.f32 5396
      %vm210 = vmor %vm208, %vm209
      %vm211 = vsmask.f32 6424
      %vm212 = vmor %vm210, %vm211
      %vm213 = vsmask.f32 7452
      %vm214 = vmor %vm212, %vm213
      %v216 = vshrl.u32 %v190, 16
      %v218 = vrot.slane %v216, 7
      %v219 = vrot.slane %v218, 1
      %v221 = vshll.u32 %v191, 16
      %v223 = vsel %vm214, %v219, %v221
      %v225 = vshrl.u32 %v198, 16
      %v227 = vrot.slane %v225, 7
      %v228 = vrot.slane %v227, 1
      %v230 = vshll.u32 %v199, 16
      %v232 = vsel %vm214, %v228, %v230
      %s233 = scalar_lea.vmem %s1, 32
      %v234 = vld [vmem:[%s233] sm:$0xf]
      %v235 = vld [vmem:[%s233 + $0x4] sm:$0xf]
      %v236 = vld [vmem:[%s233 + $0x8] sm:$0xf]
      %v237 = vld [vmem:[%s233 + $0xc] sm:$0xf]
      %v238 = vld [vmem:[%s233 + $0x10] sm:$0xf]
      %v239 = vld [vmem:[%s233 + $0x14] sm:$0xf]
      %v240 = vld [vmem:[%s233 + $0x18] sm:$0xf]
      %v241 = vld [vmem:[%s233 + $0x1c] sm:$0xf]
      %v242 = vcombine.low %v223, %v232
      %v244 = vunpack.c.l.s4 1966171168
      %v245 = vunpack.c.0.s8 %v244
      %v246 = vlaneseq
      %v247 = vshrl.u32 %v246, 7
      %v248 = vsub.s32 %v245, %v247
      %v249 = vrot.slane %v242, %v248
      %v251 = vunpack.c.l.s4 1966171168
      %v252 = vunpack.c.0.s8 %v251
      %v253 = vlaneseq
      %v254 = vshrl.u32 %v253, 7
      %v255 = vsub.s32 %v252, %v254
      %v256 = vrot.slane %v249, %v255
      %v265 = vunpack.c.l.b16 %v234
      %v266 = vunpack.c.l.b16 %v235
      %v267 = vunpack.c.l.b16 %v236
      %v268 = vunpack.c.l.b16 %v237
      %v269 = vunpack.c.l.b16 %v238
      %v270 = vunpack.c.l.b16 %v239
      %v271 = vunpack.c.l.b16 %v240
      %v272 = vunpack.c.l.b16 %v241
      %v273 = vpack.c.b16 %v266, %v265
      %v274 = vpack.c.b16 %v268, %v267
      %v275 = vpack.c.b16 %v270, %v269
      %v276 = vpack.c.b16 %v272, %v271
      %vm281 = vcmask 523264
      %v283 = vsel %vm281, %v256, 0
      %285 = vmatprep.subr.bf16.mxu0 0
      %286 = vmatpush1.bf16.msra.mxu0 %v273
      %287 = vmatprep.subr.bf16.mxu0 0
      %288 = vmatpush1.bf16.msra.mxu0 %v274
      %289 = vmatprep.subr.bf16.mxu0 0
      %290 = vmatpush1.bf16.msra.mxu0 %v275
      %291 = vmatprep.subr.bf16.mxu0 0
      %292 = vmatpush1.bf16.msra.mxu0 %v276
      %293 = vmatprep.subr.bf16.mxu0 0
      %294 = vmatpush1.bf16.msra.mxu0 0
      %295 = vmatprep.subr.bf16.mxu0 0
      %296 = vmatpush1.bf16.msra.mxu0 0
      %297 = vmatprep.subr.bf16.mxu0 0
      %298 = vmatpush1.bf16.msra.mxu0 0
      %299 = vmatprep.subr.bf16.mxu0 0
      %300 = vmatpush1.bf16.msra.mxu0 0
      %301 = vmatprep.subr.bf16.mxu0 0
      %302 = vmatpush1.bf16.msra.mxu0 0
      %303 = vmatprep.subr.bf16.mxu0 0
      %304 = vmatpush1.bf16.msra.mxu0 0
      %305 = vmatprep.subr.bf16.mxu0 0
      %306 = vmatpush1.bf16.msra.mxu0 0
      %307 = vmatprep.subr.bf16.mxu0 0
      %308 = vmatpush1.bf16.msra.mxu0 0
      %309 = vmatprep.subr.bf16.mxu0 0
      %310 = vmatpush1.bf16.msra.mxu0 0
      %311 = vmatprep.subr.bf16.mxu0 0
      %312 = vmatpush1.bf16.msra.mxu0 0
      %313 = vmatprep.subr.bf16.mxu0 0
      %314 = vmatpush1.bf16.msra.mxu0 0
      %315 = vmatprep.subr.bf16.mxu0 0
      %316 = vmatpush1.bf16.msra.mxu0 0
      %317 = vmatprep.mubr.bf16.mxu0 0
      %318 = vmatmul.mubr.bf16.gmra.mrb[0].mxu0 %v283
      %v319 = vpop.f32.mrb[0].mxu0
      %v320 = vadd.f32 0.0, %v319
      %v321 = vpop.f32.mrb[0].mxu0
      %v322 = vpop.f32.mrb[0].mxu0
      %v323 = vpop.f32.mrb[0].mxu0
      %324 = vdwg.mxu0
      %v327 = vcombine.low %v170, %v171
      %v329 = vunpack.c.l.s4 1966171168
      %v330 = vunpack.c.0.s8 %v329
      %v331 = vlaneseq
      %v332 = vshrl.u32 %v331, 7
      %v333 = vsub.s32 %v330, %v332
      %v334 = vrot.slane %v327, %v333
      %v336 = vunpack.c.l.s4 1966171168
      %v337 = vunpack.c.0.s8 %v336
      %v338 = vlaneseq
      %v339 = vshrl.u32 %v338, 7
      %v340 = vsub.s32 %v337, %v339
      %v341 = vrot.slane %v334, %v340
      %v350 = vunpack.c.l.b16 %v172
      %v351 = vunpack.c.l.b16 %v173
      %v352 = vunpack.c.l.b16 %v174
      %v353 = vunpack.c.l.b16 %v175
      %v354 = vunpack.c.l.b16 %v176
      %v355 = vunpack.c.l.b16 %v177
      %v356 = vunpack.c.l.b16 %v178
      %v357 = vunpack.c.l.b16 %v179
      %v358 = vpack.c.b16 %v351, %v350
      %v359 = vpack.c.b16 %v353, %v352
      %v360 = vpack.c.b16 %v355, %v354
      %v361 = vpack.c.b16 %v357, %v356
      %v367 = vsel %vm281, %v341, 0
      %369 = vmatprep.subr.bf16.mxu0 0
      %370 = vmatpush1.bf16.msra.mxu0 %v358
      %371 = vmatprep.subr.bf16.mxu0 0
      %372 = vmatpush1.bf16.msra.mxu0 %v359
      %373 = vmatprep.subr.bf16.mxu0 0
      %374 = vmatpush1.bf16.msra.mxu0 %v360
      %375 = vmatprep.subr.bf16.mxu0 0
      %376 = vmatpush1.bf16.msra.mxu0 %v361
      %377 = vmatprep.subr.bf16.mxu0 0
      %378 = vmatpush1.bf16.msra.mxu0 0
      %379 = vmatprep.subr.bf16.mxu0 0
      %380 = vmatpush1.bf16.msra.mxu0 0
      %381 = vmatprep.subr.bf16.mxu0 0
      %382 = vmatpush1.bf16.msra.mxu0 0
      %383 = vmatprep.subr.bf16.mxu0 0
      %384 = vmatpush1.bf16.msra.mxu0 0
      %385 = vmatprep.subr.bf16.mxu0 0
      %386 = vmatpush1.bf16.msra.mxu0 0
      %387 = vmatprep.subr.bf16.mxu0 0
      %388 = vmatpush1.bf16.msra.mxu0 0
      %389 = vmatprep.subr.bf16.mxu0 0
      %390 = vmatpush1.bf16.msra.mxu0 0
      %391 = vmatprep.subr.bf16.mxu0 0
      %392 = vmatpush1.bf16.msra.mxu0 0
      %393 = vmatprep.subr.bf16.mxu0 0
      %394 = vmatpush1.bf16.msra.mxu0 0
      %395 = vmatprep.subr.bf16.mxu0 0
      %396 = vmatpush1.bf16.msra.mxu0 0
      %397 = vmatprep.subr.bf16.mxu0 0
      %398 = vmatpush1.bf16.msra.mxu0 0
      %399 = vmatprep.subr.bf16.mxu0 0
      %400 = vmatpush1.bf16.msra.mxu0 0
      %401 = vmatprep.mubr.bf16.mxu0 0
      %402 = vmatmul.mubr.bf16.gmra.mrb[0].mxu0 %v367
      %v403 = vpop.f32.mrb[0].mxu0
      %v404 = vadd.f32 %v320, %v403
      %v405 = vpop.f32.mrb[0].mxu0
      %v406 = vpop.f32.mrb[0].mxu0
      %v407 = vpop.f32.mrb[0].mxu0
      %408 = vdwg.mxu0
      %v409 = vld [vmem:[%s164] sm:$0x2]
      %v410 = vld [vmem:[%s164 + $0x2] sm:$0x2]
      %v414 = vunpack.c.l.s4 1966171168
      %v415 = vunpack.c.0.s8 %v414
      %v416 = vlaneseq
      %v417 = vshrl.u32 %v416, 7
      %v418 = vsub.s32 %v415, %v417
      %v419 = vrot.slane %v409, %v418
      %v420 = vcombine.high %v419, %v419
      %v422 = vunpack.c.l.s4 1966171168
      %v423 = vunpack.c.0.s8 %v422
      %v424 = vlaneseq
      %v425 = vshrl.u32 %v424, 7
      %v426 = vsub.s32 %v423, %v425
      %v427 = vrot.slane %v410, %v426
      %v428 = vcombine.high %v427, %v427
      %s429 = scalar_lea.vmem %s1, 64
      %v430 = vld [vmem:[%s429] sm:$0xf]
      %v431 = vld [vmem:[%s429 + $0x4] sm:$0xf]
      %v432 = vld [vmem:[%s429 + $0x8] sm:$0xf]
      %v433 = vld [vmem:[%s429 + $0xc] sm:$0xf]
      %v434 = vld [vmem:[%s429 + $0x10] sm:$0xf]
      %v435 = vld [vmem:[%s429 + $0x14] sm:$0xf]
      %v436 = vld [vmem:[%s429 + $0x18] sm:$0xf]
      %v437 = vld [vmem:[%s429 + $0x1c] sm:$0xf]
      %v438 = vcombine.low %v420, %v428
      %v440 = vunpack.c.l.s4 1966171168
      %v441 = vunpack.c.0.s8 %v440
      %v442 = vlaneseq
      %v443 = vshrl.u32 %v442, 7
      %v444 = vsub.s32 %v441, %v443
      %v445 = vrot.slane %v438, %v444
      %v447 = vunpack.c.l.s4 1966171168
      %v448 = vunpack.c.0.s8 %v447
      %v449 = vlaneseq
      %v450 = vshrl.u32 %v449, 7
      %v451 = vsub.s32 %v448, %v450
      %v452 = vrot.slane %v445, %v451
      %v461 = vunpack.c.l.b16 %v430
      %v462 = vunpack.c.l.b16 %v431
      %v463 = vunpack.c.l.b16 %v432
      %v464 = vunpack.c.l.b16 %v433
      %v465 = vunpack.c.l.b16 %v434
      %v466 = vunpack.c.l.b16 %v435
      %v467 = vunpack.c.l.b16 %v436
      %v468 = vunpack.c.l.b16 %v437
      %v469 = vpack.c.b16 %v462, %v461
      %v470 = vpack.c.b16 %v464, %v463
      %v471 = vpack.c.b16 %v466, %v465
      %v472 = vpack.c.b16 %v468, %v467
      %v478 = vsel %vm281, %v452, 0
      %480 = vmatprep.subr.bf16.mxu0 0
      %481 = vmatpush1.bf16.msra.mxu0 %v469
      %482 = vmatprep.subr.bf16.mxu0 0
      %483 = vmatpush1.bf16.msra.mxu0 %v470
      %484 = vmatprep.subr.bf16.mxu0 0
      %485 = vmatpush1.bf16.msra.mxu0 %v471
      %486 = vmatprep.subr.bf16.mxu0 0
      %487 = vmatpush1.bf16.msra.mxu0 %v472
      %488 = vmatprep.subr.bf16.mxu0 0
      %489 = vmatpush1.bf16.msra.mxu0 0
      %490 = vmatprep.subr.bf16.mxu0 0
      %491 = vmatpush1.bf16.msra.mxu0 0
      %492 = vmatprep.subr.bf16.mxu0 0
      %493 = vmatpush1.bf16.msra.mxu0 0
      %494 = vmatprep.subr.bf16.mxu0 0
      %495 = vmatpush1.bf16.msra.mxu0 0
      %496 = vmatprep.subr.bf16.mxu0 0
      %497 = vmatpush1.bf16.msra.mxu0 0
      %498 = vmatprep.subr.bf16.mxu0 0
      %499 = vmatpush1.bf16.msra.mxu0 0
      %500 = vmatprep.subr.bf16.mxu0 0
      %501 = vmatpush1.bf16.msra.mxu0 0
      %502 = vmatprep.subr.bf16.mxu0 0
      %503 = vmatpush1.bf16.msra.mxu0 0
      %504 = vmatprep.subr.bf16.mxu0 0
      %505 = vmatpush1.bf16.msra.mxu0 0
      %506 = vmatprep.subr.bf16.mxu0 0
      %507 = vmatpush1.bf16.msra.mxu0 0
      %508 = vmatprep.subr.bf16.mxu0 0
      %509 = vmatpush1.bf16.msra.mxu0 0
      %510 = vmatprep.subr.bf16.mxu0 0
      %511 = vmatpush1.bf16.msra.mxu0 0
      %512 = vmatprep.mubr.bf16.mxu0 0
      %513 = vmatmul.mubr.bf16.gmra.mrb[0].mxu0 %v478
      %v514 = vpop.f32.mrb[0].mxu0
      %v515 = vadd.f32 0.0, %v514
      %v516 = vpop.f32.mrb[0].mxu0
      %v517 = vpop.f32.mrb[0].mxu0
      %v518 = vpop.f32.mrb[0].mxu0
      %519 = vdwg.mxu0
      %v520 = vadd.f32 %v404, %v515
      %s521 = scalar_lea.vmem %s164, 2
      %v522 = vld [vmem:[%s521] sm:$0x1]
      %v523 = vld [vmem:[%s521 + $0x2] sm:$0x1]
      %s524 = scalar_lea.vmem %s1, 96
      %v525 = vld [vmem:[%s524] sm:$0xf]
      %v526 = vld [vmem:[%s524 + $0x4] sm:$0xf]
      %v527 = vld [vmem:[%s524 + $0x8] sm:$0xf]
      %v528 = vld [vmem:[%s524 + $0xc] sm:$0xf]
      %v529 = vld [vmem:[%s524 + $0x10] sm:$0xf]
      %v530 = vld [vmem:[%s524 + $0x14] sm:$0xf]
      %v531 = vld [vmem:[%s524 + $0x18] sm:$0xf]
      %v532 = vld [vmem:[%s524 + $0x1c] sm:$0xf]
      %v535 = vcombine.low %v522, %v523
      %v537 = vunpack.c.l.s4 1966171168
      %v538 = vunpack.c.0.s8 %v537
      %v539 = vlaneseq
      %v540 = vshrl.u32 %v539, 7
      %v541 = vsub.s32 %v538, %v540
      %v542 = vrot.slane %v535, %v541
      %v544 = vunpack.c.l.s4 1966171168
      %v545 = vunpack.c.0.s8 %v544
      %v546 = vlaneseq
      %v547 = vshrl.u32 %v546, 7
      %v548 = vsub.s32 %v545, %v547
      %v549 = vrot.slane %v542, %v548
      %v558 = vunpack.c.l.b16 %v525
      %v559 = vunpack.c.l.b16 %v526
      %v560 = vunpack.c.l.b16 %v527
      %v561 = vunpack.c.l.b16 %v528
      %v562 = vunpack.c.l.b16 %v529
      %v563 = vunpack.c.l.b16 %v530
      %v564 = vunpack.c.l.b16 %v531
      %v565 = vunpack.c.l.b16 %v532
      %v566 = vpack.c.b16 %v559, %v558
      %v567 = vpack.c.b16 %v561, %v560
      %v568 = vpack.c.b16 %v563, %v562
      %v569 = vpack.c.b16 %v565, %v564
      %v575 = vsel %vm281, %v549, 0
      %577 = vmatprep.subr.bf16.mxu0 0
      %578 = vmatpush1.bf16.msra.mxu0 %v566
      %579 = vmatprep.subr.bf16.mxu0 0
      %580 = vmatpush1.bf16.msra.mxu0 %v567
      %581 = vmatprep.subr.bf16.mxu0 0
      %582 = vmatpush1.bf16.msra.mxu0 %v568
      %583 = vmatprep.subr.bf16.mxu0 0
      %584 = vmatpush1.bf16.msra.mxu0 %v569
      %585 = vmatprep.subr.bf16.mxu0 0
      %586 = vmatpush1.bf16.msra.mxu0 0
      %587 = vmatprep.subr.bf16.mxu0 0
      %588 = vmatpush1.bf16.msra.mxu0 0
      %589 = vmatprep.subr.bf16.mxu0 0
      %590 = vmatpush1.bf16.msra.mxu0 0
      %591 = vmatprep.subr.bf16.mxu0 0
      %592 = vmatpush1.bf16.msra.mxu0 0
      %593 = vmatprep.subr.bf16.mxu0 0
      %594 = vmatpush1.bf16.msra.mxu0 0
      %595 = vmatprep.subr.bf16.mxu0 0
      %596 = vmatpush1.bf16.msra.mxu0 0
      %597 = vmatprep.subr.bf16.mxu0 0
      %598 = vmatpush1.bf16.msra.mxu0 0
      %599 = vmatprep.subr.bf16.mxu0 0
      %600 = vmatpush1.bf16.msra.mxu0 0
      %601 = vmatprep.subr.bf16.mxu0 0
      %602 = vmatpush1.bf16.msra.mxu0 0
      %603 = vmatprep.subr.bf16.mxu0 0
      %604 = vmatpush1.bf16.msra.mxu0 0
      %605 = vmatprep.subr.bf16.mxu0 0
      %606 = vmatpush1.bf16.msra.mxu0 0
      %607 = vmatprep.subr.bf16.mxu0 0
      %608 = vmatpush1.bf16.msra.mxu0 0
      %609 = vmatprep.mubr.bf16.mxu0 0
      %610 = vmatmul.mubr.bf16.gmra.mrb[0].mxu0 %v575
      %v611 = vpop.f32.mrb[0].mxu0
      %v612 = vadd.f32 0.0, %v611
      %v613 = vpop.f32.mrb[0].mxu0
      %v614 = vpop.f32.mrb[0].mxu0
      %v615 = vpop.f32.mrb[0].mxu0
      %616 = vdwg.mxu0
      %v617 = vadd.f32 %v520, %v612
      %v618 = vld [vmem:[%s521] sm:$0x3]
      %v619 = vld [vmem:[%s521 + $0x2] sm:$0x3]
      %v623 = vunpack.c.l.s4 1966171168
      %v624 = vunpack.c.0.s8 %v623
      %v625 = vlaneseq
      %v626 = vshrl.u32 %v625, 7
      %v627 = vsub.s32 %v624, %v626
      %v628 = vrot.slane %v618, %v627
      %v629 = vcombine.high %v628, %v628
      %v631 = vunpack.c.l.s4 1966171168
      %v632 = vunpack.c.0.s8 %v631
      %v633 = vlaneseq
      %v634 = vshrl.u32 %v633, 7
      %v635 = vsub.s32 %v632, %v634
      %v636 = vrot.slane %v619, %v635
      %v637 = vcombine.high %v636, %v636
      %v639 = vshrl.u32 %v628, 16
      %v641 = vrot.slane %v639, 7
      %v642 = vrot.slane %v641, 1
      %v644 = vshll.u32 %v629, 16
      %v646 = vsel %vm214, %v642, %v644
      %v648 = vshrl.u32 %v636, 16
      %v650 = vrot.slane %v648, 7
      %v651 = vrot.slane %v650, 1
      %v653 = vshll.u32 %v637, 16
      %v655 = vsel %vm214, %v651, %v653
      %s656 = scalar_lea.vmem %s1, 128
      %v657 = vld [vmem:[%s656] sm:$0xf]
      %v658 = vld [vmem:[%s656 + $0x4] sm:$0xf]
      %v659 = vld [vmem:[%s656 + $0x8] sm:$0xf]
      %v660 = vld [vmem:[%s656 + $0xc] sm:$0xf]
      %v661 = vld [vmem:[%s656 + $0x10] sm:$0xf]
      %v662 = vld [vmem:[%s656 + $0x14] sm:$0xf]
      %v663 = vld [vmem:[%s656 + $0x18] sm:$0xf]
      %v664 = vld [vmem:[%s656 + $0x1c] sm:$0xf]
      %v665 = vcombine.low %v646, %v655
      %v667 = vunpack.c.l.s4 1966171168
      %v668 = vunpack.c.0.s8 %v667
      %v669 = vlaneseq
      %v670 = vshrl.u32 %v669, 7
      %v671 = vsub.s32 %v668, %v670
      %v672 = vrot.slane %v665, %v671
      %v674 = vunpack.c.l.s4 1966171168
      %v675 = vunpack.c.0.s8 %v674
      %v676 = vlaneseq
      %v677 = vshrl.u32 %v676, 7
      %v678 = vsub.s32 %v675, %v677
      %v679 = vrot.slane %v672, %v678
      %v688 = vunpack.c.l.b16 %v657
      %v689 = vunpack.c.l.b16 %v658
      %v690 = vunpack.c.l.b16 %v659
      %v691 = vunpack.c.l.b16 %v660
      %v692 = vunpack.c.l.b16 %v661
      %v693 = vunpack.c.l.b16 %v662
      %v694 = vunpack.c.l.b16 %v663
      %v695 = vunpack.c.l.b16 %v664
      %v696 = vpack.c.b16 %v689, %v688
      %v697 = vpack.c.b16 %v691, %v690
      %v698 = vpack.c.b16 %v693, %v692
      %v699 = vpack.c.b16 %v695, %v694
      %v705 = vsel %vm281, %v679, 0
      %707 = vmatprep.subr.bf16.mxu0 0
      %708 = vmatpush1.bf16.msra.mxu0 %v696
      %709 = vmatprep.subr.bf16.mxu0 0
      %710 = vmatpush1.bf16.msra.mxu0 %v697
      %711 = vmatprep.subr.bf16.mxu0 0
      %712 = vmatpush1.bf16.msra.mxu0 %v698
      %713 = vmatprep.subr.bf16.mxu0 0
      %714 = vmatpush1.bf16.msra.mxu0 %v699
      %715 = vmatprep.subr.bf16.mxu0 0
      %716 = vmatpush1.bf16.msra.mxu0 0
      %717 = vmatprep.subr.bf16.mxu0 0
      %718 = vmatpush1.bf16.msra.mxu0 0
      %719 = vmatprep.subr.bf16.mxu0 0
      %720 = vmatpush1.bf16.msra.mxu0 0
      %721 = vmatprep.subr.bf16.mxu0 0
      %722 = vmatpush1.bf16.msra.mxu0 0
      %723 = vmatprep.subr.bf16.mxu0 0
      %724 = vmatpush1.bf16.msra.mxu0 0
      %725 = vmatprep.subr.bf16.mxu0 0
      %726 = vmatpush1.bf16.msra.mxu0 0
      %727 = vmatprep.subr.bf16.mxu0 0
      %728 = vmatpush1.bf16.msra.mxu0 0
      %729 = vmatprep.subr.bf16.mxu0 0
      %730 = vmatpush1.bf16.msra.mxu0 0
      %731 = vmatprep.subr.bf16.mxu0 0
      %732 = vmatpush1.bf16.msra.mxu0 0
      %733 = vmatprep.subr.bf16.mxu0 0
      %734 = vmatpush1.bf16.msra.mxu0 0
      %735 = vmatprep.subr.bf16.mxu0 0
      %736 = vmatpush1.bf16.msra.mxu0 0
      %737 = vmatprep.subr.bf16.mxu0 0
      %738 = vmatpush1.bf16.msra.mxu0 0
      %739 = vmatprep.mubr.bf16.mxu0 0
      %740 = vmatmul.mubr.bf16.gmra.mrb[0].mxu0 %v705
      %v741 = vpop.f32.mrb[0].mxu0
      %v742 = vadd.f32 0.0, %v741
      %v743 = vpop.f32.mrb[0].mxu0
      %v744 = vpop.f32.mrb[0].mxu0
      %v745 = vpop.f32.mrb[0].mxu0
      %746 = vdwg.mxu0
      %v747 = vadd.f32 %v617, %v742
      %v748 = vld [vmem:[%s521] sm:$0x2]
      %v749 = vld [vmem:[%s521 + $0x2] sm:$0x2]
      %v753 = vunpack.c.l.s4 1966171168
      %v754 = vunpack.c.0.s8 %v753
      %v755 = vlaneseq
      %v756 = vshrl.u32 %v755, 7
      %v757 = vsub.s32 %v754, %v756
      %v758 = vrot.slane %v748, %v757
      %v759 = vcombine.high %v758, %v758
      %v761 = vunpack.c.l.s4 1966171168
      %v762 = vunpack.c.0.s8 %v761
      %v763 = vlaneseq
      %v764 = vshrl.u32 %v763, 7
      %v765 = vsub.s32 %v762, %v764
      %v766 = vrot.slane %v749, %v765
      %v767 = vcombine.high %v766, %v766
      %s768 = scalar_lea.vmem %s1, 160
      %v769 = vld [vmem:[%s768] sm:$0xf]
      %v770 = vld [vmem:[%s768 + $0x4] sm:$0xf]
      %v771 = vld [vmem:[%s768 + $0x8] sm:$0xf]
      %v772 = vld [vmem:[%s768 + $0xc] sm:$0xf]
      %v773 = vld [vmem:[%s768 + $0x10] sm:$0xf]
      %v774 = vld [vmem:[%s768 + $0x14] sm:$0xf]
      %v775 = vld [vmem:[%s768 + $0x18] sm:$0xf]
      %v776 = vld [vmem:[%s768 + $0x1c] sm:$0xf]
      %v777 = vcombine.low %v759, %v767
      %v779 = vunpack.c.l.s4 1966171168
      %v780 = vunpack.c.0.s8 %v779
      %v781 = vlaneseq
      %v782 = vshrl.u32 %v781, 7
      %v783 = vsub.s32 %v780, %v782
      %v784 = vrot.slane %v777, %v783
      %v786 = vunpack.c.l.s4 1966171168
      %v787 = vunpack.c.0.s8 %v786
      %v788 = vlaneseq
      %v789 = vshrl.u32 %v788, 7
      %v790 = vsub.s32 %v787, %v789
      %v791 = vrot.slane %v784, %v790
      %v800 = vunpack.c.l.b16 %v769
      %v801 = vunpack.c.l.b16 %v770
      %v802 = vunpack.c.l.b16 %v771
      %v803 = vunpack.c.l.b16 %v772
      %v804 = vunpack.c.l.b16 %v773
      %v805 = vunpack.c.l.b16 %v774
      %v806 = vunpack.c.l.b16 %v775
      %v807 = vunpack.c.l.b16 %v776
      %v808 = vpack.c.b16 %v801, %v800
      %v809 = vpack.c.b16 %v803, %v802
      %v810 = vpack.c.b16 %v805, %v804
      %v811 = vpack.c.b16 %v807, %v806
      %v817 = vsel %vm281, %v791, 0
      %819 = vmatprep.subr.bf16.mxu0 0
      %820 = vmatpush1.bf16.msra.mxu0 %v808
      %821 = vmatprep.subr.bf16.mxu0 0
      %822 = vmatpush1.bf16.msra.mxu0 %v809
      %823 = vmatprep.subr.bf16.mxu0 0
      %824 = vmatpush1.bf16.msra.mxu0 %v810
      %825 = vmatprep.subr.bf16.mxu0 0
      %826 = vmatpush1.bf16.msra.mxu0 %v811
      %827 = vmatprep.subr.bf16.mxu0 0
      %828 = vmatpush1.bf16.msra.mxu0 0
      %829 = vmatprep.subr.bf16.mxu0 0
      %830 = vmatpush1.bf16.msra.mxu0 0
      %831 = vmatprep.subr.bf16.mxu0 0
      %832 = vmatpush1.bf16.msra.mxu0 0
      %833 = vmatprep.subr.bf16.mxu0 0
      %834 = vmatpush1.bf16.msra.mxu0 0
      %835 = vmatprep.subr.bf16.mxu0 0
      %836 = vmatpush1.bf16.msra.mxu0 0
      %837 = vmatprep.subr.bf16.mxu0 0
      %838 = vmatpush1.bf16.msra.mxu0 0
      %839 = vmatprep.subr.bf16.mxu0 0
      %840 = vmatpush1.bf16.msra.mxu0 0
      %841 = vmatprep.subr.bf16.mxu0 0
      %842 = vmatpush1.bf16.msra.mxu0 0
      %843 = vmatprep.subr.bf16.mxu0 0
      %844 = vmatpush1.bf16.msra.mxu0 0
      %845 = vmatprep.subr.bf16.mxu0 0
      %846 = vmatpush1.bf16.msra.mxu0 0
      %847 = vmatprep.subr.bf16.mxu0 0
      %848 = vmatpush1.bf16.msra.mxu0 0
      %849 = vmatprep.subr.bf16.mxu0 0
      %850 = vmatpush1.bf16.msra.mxu0 0
      %851 = vmatprep.mubr.bf16.mxu0 0
      %852 = vmatmul.mubr.bf16.gmra.mrb[0].mxu0 %v817
      %v853 = vpop.f32.mrb[0].mxu0
      %v854 = vadd.f32 0.0, %v853
      %v855 = vpop.f32.mrb[0].mxu0
      %v856 = vpop.f32.mrb[0].mxu0
      %v857 = vpop.f32.mrb[0].mxu0
      %858 = vdwg.mxu0
      %v859 = vadd.f32 %v747, %v854
      %s860 = scalar_lea.vmem %s164, 4
      %v861 = vld [vmem:[%s860] sm:$0x1]
      %v862 = vld [vmem:[%s860 + $0x2] sm:$0x1]
      %s863 = scalar_lea.vmem %s1, 192
      %v864 = vld [vmem:[%s863] sm:$0xf]
      %v865 = vld [vmem:[%s863 + $0x4] sm:$0xf]
      %v866 = vld [vmem:[%s863 + $0x8] sm:$0xf]
      %v867 = vld [vmem:[%s863 + $0xc] sm:$0xf]
      %v868 = vld [vmem:[%s863 + $0x10] sm:$0xf]
      %v869 = vld [vmem:[%s863 + $0x14] sm:$0xf]
      %v870 = vld [vmem:[%s863 + $0x18] sm:$0xf]
      %v871 = vld [vmem:[%s863 + $0x1c] sm:$0xf]
      %v874 = vcombine.low %v861, %v862
      %v876 = vunpack.c.l.s4 1966171168
      %v877 = vunpack.c.0.s8 %v876
      %v878 = vlaneseq
      %v879 = vshrl.u32 %v878, 7
      %v880 = vsub.s32 %v877, %v879
      %v881 = vrot.slane %v874, %v880
      %v883 = vunpack.c.l.s4 1966171168
      %v884 = vunpack.c.0.s8 %v883
      %v885 = vlaneseq
      %v886 = vshrl.u32 %v885, 7
      %v887 = vsub.s32 %v884, %v886
      %v888 = vrot.slane %v881, %v887
      %v897 = vunpack.c.l.b16 %v864
      %v898 = vunpack.c.l.b16 %v865
      %v899 = vunpack.c.l.b16 %v866
      %v900 = vunpack.c.l.b16 %v867
      %v901 = vunpack.c.l.b16 %v868
      %v902 = vunpack.c.l.b16 %v869
      %v903 = vunpack.c.l.b16 %v870
      %v904 = vunpack.c.l.b16 %v871
      %v905 = vpack.c.b16 %v898, %v897
      %v906 = vpack.c.b16 %v900, %v899
      %v907 = vpack.c.b16 %v902, %v901
      %v908 = vpack.c.b16 %v904, %v903
      %v914 = vsel %vm281, %v888, 0
      %916 = vmatprep.subr.bf16.mxu0 0
      %917 = vmatpush1.bf16.msra.mxu0 %v905
      %918 = vmatprep.subr.bf16.mxu0 0
      %919 = vmatpush1.bf16.msra.mxu0 %v906
      %920 = vmatprep.subr.bf16.mxu0 0
      %921 = vmatpush1.bf16.msra.mxu0 %v907
      %922 = vmatprep.subr.bf16.mxu0 0
      %923 = vmatpush1.bf16.msra.mxu0 %v908
      %924 = vmatprep.subr.bf16.mxu0 0
      %925 = vmatpush1.bf16.msra.mxu0 0
      %926 = vmatprep.subr.bf16.mxu0 0
      %927 = vmatpush1.bf16.msra.mxu0 0
      %928 = vmatprep.subr.bf16.mxu0 0
      %929 = vmatpush1.bf16.msra.mxu0 0
      %930 = vmatprep.subr.bf16.mxu0 0
      %931 = vmatpush1.bf16.msra.mxu0 0
      %932 = vmatprep.subr.bf16.mxu0 0
      %933 = vmatpush1.bf16.msra.mxu0 0
      %934 = vmatprep.subr.bf16.mxu0 0
      %935 = vmatpush1.bf16.msra.mxu0 0
      %936 = vmatprep.subr.bf16.mxu0 0
      %937 = vmatpush1.bf16.msra.mxu0 0
      %938 = vmatprep.subr.bf16.mxu0 0
      %939 = vmatpush1.bf16.msra.mxu0 0
      %940 = vmatprep.subr.bf16.mxu0 0
      %941 = vmatpush1.bf16.msra.mxu0 0
      %942 = vmatprep.subr.bf16.mxu0 0
      %943 = vmatpush1.bf16.msra.mxu0 0
      %944 = vmatprep.subr.bf16.mxu0 0
      %945 = vmatpush1.bf16.msra.mxu0 0
      %946 = vmatprep.subr.bf16.mxu0 0
      %947 = vmatpush1.bf16.msra.mxu0 0
      %948 = vmatprep.mubr.bf16.mxu0 0
      %949 = vmatmul.mubr.bf16.gmra.mrb[0].mxu0 %v914
      %v950 = vpop.f32.mrb[0].mxu0
      %v951 = vadd.f32 0.0, %v950
      %v952 = vpop.f32.mrb[0].mxu0
      %v953 = vpop.f32.mrb[0].mxu0
      %v954 = vpop.f32.mrb[0].mxu0
      %955 = vdwg.mxu0
      %v956 = vadd.f32 %v859, %v951
      %v957 = vld [vmem:[%s860] sm:$0x3]
      %v958 = vld [vmem:[%s860 + $0x2] sm:$0x3]
      %v962 = vunpack.c.l.s4 1966171168
      %v963 = vunpack.c.0.s8 %v962
      %v964 = vlaneseq
      %v965 = vshrl.u32 %v964, 7
      %v966 = vsub.s32 %v963, %v965
      %v967 = vrot.slane %v957, %v966
      %v968 = vcombine.high %v967, %v967
      %v970 = vunpack.c.l.s4 1966171168
      %v971 = vunpack.c.0.s8 %v970
      %v972 = vlaneseq
      %v973 = vshrl.u32 %v972, 7
      %v974 = vsub.s32 %v971, %v973
      %v975 = vrot.slane %v958, %v974
      %v976 = vcombine.high %v975, %v975
      %v978 = vshrl.u32 %v967, 16
      %v980 = vrot.slane %v978, 7
      %v981 = vrot.slane %v980, 1
      %v983 = vshll.u32 %v968, 16
      %v985 = vsel %vm214, %v981, %v983
      %v987 = vshrl.u32 %v975, 16
      %v989 = vrot.slane %v987, 7
      %v990 = vrot.slane %v989, 1
      %v992 = vshll.u32 %v976, 16
      %v994 = vsel %vm214, %v990, %v992
      %s995 = scalar_lea.vmem %s1, 224
      %v996 = vld [vmem:[%s995] sm:$0xf]
      %v997 = vld [vmem:[%s995 + $0x4] sm:$0xf]
      %v998 = vld [vmem:[%s995 + $0x8] sm:$0xf]
      %v999 = vld [vmem:[%s995 + $0xc] sm:$0xf]
      %v1000 = vld [vmem:[%s995 + $0x10] sm:$0xf]
      %v1001 = vld [vmem:[%s995 + $0x14] sm:$0xf]
      %v1002 = vld [vmem:[%s995 + $0x18] sm:$0xf]
      %v1003 = vld [vmem:[%s995 + $0x1c] sm:$0xf]
      %v1004 = vcombine.low %v985, %v994
      %v1006 = vunpack.c.l.s4 1966171168
      %v1007 = vunpack.c.0.s8 %v1006
      %v1008 = vlaneseq
      %v1009 = vshrl.u32 %v1008, 7
      %v1010 = vsub.s32 %v1007, %v1009
      %v1011 = vrot.slane %v1004, %v1010
      %v1013 = vunpack.c.l.s4 1966171168
      %v1014 = vunpack.c.0.s8 %v1013
      %v1015 = vlaneseq
      %v1016 = vshrl.u32 %v1015, 7
      %v1017 = vsub.s32 %v1014, %v1016
      %v1018 = vrot.slane %v1011, %v1017
      %v1027 = vunpack.c.l.b16 %v996
      %v1028 = vunpack.c.l.b16 %v997
      %v1029 = vunpack.c.l.b16 %v998
      %v1030 = vunpack.c.l.b16 %v999
      %v1031 = vunpack.c.l.b16 %v1000
      %v1032 = vunpack.c.l.b16 %v1001
      %v1033 = vunpack.c.l.b16 %v1002
      %v1034 = vunpack.c.l.b16 %v1003
      %v1035 = vpack.c.b16 %v1028, %v1027
      %v1036 = vpack.c.b16 %v1030, %v1029
      %v1037 = vpack.c.b16 %v1032, %v1031
      %v1038 = vpack.c.b16 %v1034, %v1033
      %v1044 = vsel %vm281, %v1018, 0
      %1046 = vmatprep.subr.bf16.mxu0 0
      %1047 = vmatpush1.bf16.msra.mxu0 %v1035
      %1048 = vmatprep.subr.bf16.mxu0 0
      %1049 = vmatpush1.bf16.msra.mxu0 %v1036
      %1050 = vmatprep.subr.bf16.mxu0 0
      %1051 = vmatpush1.bf16.msra.mxu0 %v1037
      %1052 = vmatprep.subr.bf16.mxu0 0
      %1053 = vmatpush1.bf16.msra.mxu0 %v1038
      %1054 = vmatprep.subr.bf16.mxu0 0
      %1055 = vmatpush1.bf16.msra.mxu0 0
      %1056 = vmatprep.subr.bf16.mxu0 0
      %1057 = vmatpush1.bf16.msra.mxu0 0
      %1058 = vmatprep.subr.bf16.mxu0 0
      %1059 = vmatpush1.bf16.msra.mxu0 0
      %1060 = vmatprep.subr.bf16.mxu0 0
      %1061 = vmatpush1.bf16.msra.mxu0 0
      %1062 = vmatprep.subr.bf16.mxu0 0
      %1063 = vmatpush1.bf16.msra.mxu0 0
      %1064 = vmatprep.subr.bf16.mxu0 0
      %1065 = vmatpush1.bf16.msra.mxu0 0
      %1066 = vmatprep.subr.bf16.mxu0 0
      %1067 = vmatpush1.bf16.msra.mxu0 0
      %1068 = vmatprep.subr.bf16.mxu0 0
      %1069 = vmatpush1.bf16.msra.mxu0 0
      %1070 = vmatprep.subr.bf16.mxu0 0
      %1071 = vmatpush1.bf16.msra.mxu0 0
      %1072 = vmatprep.subr.bf16.mxu0 0
      %1073 = vmatpush1.bf16.msra.mxu0 0
      %1074 = vmatprep.subr.bf16.mxu0 0
      %1075 = vmatpush1.bf16.msra.mxu0 0
      %1076 = vmatprep.subr.bf16.mxu0 0
      %1077 = vmatpush1.bf16.msra.mxu0 0
      %1078 = vmatprep.mubr.bf16.mxu0 0
      %1079 = vmatmul.mubr.bf16.gmra.mrb[0].mxu0 %v1044
      %v1080 = vpop.f32.mrb[0].mxu0
      %v1081 = vadd.f32 0.0, %v1080
      %v1082 = vpop.f32.mrb[0].mxu0
      %v1083 = vpop.f32.mrb[0].mxu0
      %v1084 = vpop.f32.mrb[0].mxu0
      %1085 = vdwg.mxu0
      %v1086 = vadd.f32 %v956, %v1081
      %v1087 = vld [vmem:[%s860] sm:$0x2]
      %v1088 = vld [vmem:[%s860 + $0x2] sm:$0x2]
      %v1092 = vunpack.c.l.s4 1966171168
      %v1093 = vunpack.c.0.s8 %v1092
      %v1094 = vlaneseq
      %v1095 = vshrl.u32 %v1094, 7
      %v1096 = vsub.s32 %v1093, %v1095
      %v1097 = vrot.slane %v1087, %v1096
      %v1098 = vcombine.high %v1097, %v1097
      %v1100 = vunpack.c.l.s4 1966171168
      %v1101 = vunpack.c.0.s8 %v1100
      %v1102 = vlaneseq
      %v1103 = vshrl.u32 %v1102, 7
      %v1104 = vsub.s32 %v1101, %v1103
      %v1105 = vrot.slane %v1088, %v1104
      %v1106 = vcombine.high %v1105, %v1105
      %s1107 = scalar_lea.vmem %s1, 256
      %v1108 = vld [vmem:[%s1107] sm:$0xf]
      %v1109 = vld [vmem:[%s1107 + $0x4] sm:$0xf]
      %v1110 = vld [vmem:[%s1107 + $0x8] sm:$0xf]
      %v1111 = vld [vmem:[%s1107 + $0xc] sm:$0xf]
      %v1112 = vld [vmem:[%s1107 + $0x10] sm:$0xf]
      %v1113 = vld [vmem:[%s1107 + $0x14] sm:$0xf]
      %v1114 = vld [vmem:[%s1107 + $0x18] sm:$0xf]
      %v1115 = vld [vmem:[%s1107 + $0x1c] sm:$0xf]
      %v1116 = vcombine.low %v1098, %v1106
      %v1118 = vunpack.c.l.s4 1966171168
      %v1119 = vunpack.c.0.s8 %v1118
      %v1120 = vlaneseq
      %v1121 = vshrl.u32 %v1120, 7
      %v1122 = vsub.s32 %v1119, %v1121
      %v1123 = vrot.slane %v1116, %v1122
      %v1125 = vunpack.c.l.s4 1966171168
      %v1126 = vunpack.c.0.s8 %v1125
      %v1127 = vlaneseq
      %v1128 = vshrl.u32 %v1127, 7
      %v1129 = vsub.s32 %v1126, %v1128
      %v1130 = vrot.slane %v1123, %v1129
      %v1139 = vunpack.c.l.b16 %v1108
      %v1140 = vunpack.c.l.b16 %v1109
      %v1141 = vunpack.c.l.b16 %v1110
      %v1142 = vunpack.c.l.b16 %v1111
      %v1143 = vunpack.c.l.b16 %v1112
      %v1144 = vunpack.c.l.b16 %v1113
      %v1145 = vunpack.c.l.b16 %v1114
      %v1146 = vunpack.c.l.b16 %v1115
      %v1147 = vpack.c.b16 %v1140, %v1139
      %v1148 = vpack.c.b16 %v1142, %v1141
      %v1149 = vpack.c.b16 %v1144, %v1143
      %v1150 = vpack.c.b16 %v1146, %v1145
      %v1156 = vsel %vm281, %v1130, 0
      %1158 = vmatprep.subr.bf16.mxu0 0
      %1159 = vmatpush1.bf16.msra.mxu0 %v1147
      %1160 = vmatprep.subr.bf16.mxu0 0
      %1161 = vmatpush1.bf16.msra.mxu0 %v1148
      %1162 = vmatprep.subr.bf16.mxu0 0
      %1163 = vmatpush1.bf16.msra.mxu0 %v1149
      %1164 = vmatprep.subr.bf16.mxu0 0
      %1165 = vmatpush1.bf16.msra.mxu0 %v1150
      %1166 = vmatprep.subr.bf16.mxu0 0
      %1167 = vmatpush1.bf16.msra.mxu0 0
      %1168 = vmatprep.subr.bf16.mxu0 0
      %1169 = vmatpush1.bf16.msra.mxu0 0
      %1170 = vmatprep.subr.bf16.mxu0 0
      %1171 = vmatpush1.bf16.msra.mxu0 0
      %1172 = vmatprep.subr.bf16.mxu0 0
      %1173 = vmatpush1.bf16.msra.mxu0 0
      %1174 = vmatprep.subr.bf16.mxu0 0
      %1175 = vmatpush1.bf16.msra.mxu0 0
      %1176 = vmatprep.subr.bf16.mxu0 0
      %1177 = vmatpush1.bf16.msra.mxu0 0
      %1178 = vmatprep.subr.bf16.mxu0 0
      %1179 = vmatpush1.bf16.msra.mxu0 0
      %1180 = vmatprep.subr.bf16.mxu0 0
      %1181 = vmatpush1.bf16.msra.mxu0 0
      %1182 = vmatprep.subr.bf16.mxu0 0
      %1183 = vmatpush1.bf16.msra.mxu0 0
      %1184 = vmatprep.subr.bf16.mxu0 0
      %1185 = vmatpush1.bf16.msra.mxu0 0
      %1186 = vmatprep.subr.bf16.mxu0 0
      %1187 = vmatpush1.bf16.msra.mxu0 0
      %1188 = vmatprep.subr.bf16.mxu0 0
      %1189 = vmatpush1.bf16.msra.mxu0 0
      %1190 = vmatprep.mubr.bf16.mxu0 0
      %1191 = vmatmul.mubr.bf16.gmra.mrb[0].mxu0 %v1156
      %v1192 = vpop.f32.mrb[0].mxu0
      %v1193 = vadd.f32 0.0, %v1192
      %v1194 = vpop.f32.mrb[0].mxu0
      %v1195 = vpop.f32.mrb[0].mxu0
      %v1196 = vpop.f32.mrb[0].mxu0
      %1197 = vdwg.mxu0
      %v1198 = vadd.f32 %v1086, %v1193
      %v1199 = vld [vmem:[%s2] sm:$0x1]
      %v1201 = vlaneseq
      %v1202 = vshrl.u32 %v1201, 7
      %v1203 = vsub.s32 0, %v1202
      %v1204 = vrot.slane %v1199, %v1203
      %v1206 = vadd.f32 %v1198, %v1204
      %v1207 = vmax.f32 %v1206, 0.0
      %v1210 = vunpack.c.l.s4 1983009808
      %v1211 = vunpack.c.0.s8 %v1210
      %v1212 = vlaneseq
      %v1213 = vshrl.u32 %v1212, 7
      %v1214 = vsub.s32 %v1211, %v1213
      %v1215 = vrot.slane %v1207, %v1214
      %v1216 = vcombine.high %v1215, %v1215
      %v1219 = vpack.c.bf16 %v1215, %v1215
      %v1220 = vpack.c.bf16 %v1216, %v1216
      %1221 = vst [vmem:[%s168] sm:$0x1] %v1219
      %1222 = vst [vmem:[%s168 + $0x1] sm:$0x1] %v1220
      %p1223 = scmp.lt.s32.totalorder %s14, 1
      %s1224 = scalar_select %p1223, %s14, 1
      %s1225 = smul.addr %s1224, 2
      %s1226 = scalar_lea.vmem %s3, %s1225
      // Predicated region
      $region33: #{st_dim_cnn_forward.8} parent=31 // pred_check
        %p1227 = pneg %p100
      $region34: #{st_dim_cnn_forward.8} parent=31 // pred_check_branch
        %1229 = sbr.rel (%p1227) target = $region36
      $region35: #{st_dim_cnn_forward.8} parent=31 // pred_region
        _
      $region36: #{st_dim_cnn_forward.8} parent=31 // pred_fallthru
        _
    $region32: #{st_dim_cnn_forward.8} parent=5 // pred_fallthru
      _
    %p1230 = scmp.le.s32.totalorder 2, %s9
    // Predicated region
    $region37: #{st_dim_cnn_forward.8} parent=5 // pred_check
      %p1231 = pneg %p1230
    $region38: #{st_dim_cnn_forward.8} parent=5 // pred_check_branch
      %1233 = sbr.rel (%p1231) target = $region40
    $region39: #{st_dim_cnn_forward.8} parent=5 // pred_region
      %s1234 = ssub.s32 %s9, 2
      // Predicated region
      $region41: #{st_dim_cnn_forward.8} parent=39 // pred_check
        %p1235 = pneg %p106
      $region42: #{st_dim_cnn_forward.8} parent=39 // pred_check_branch
        %1237 = sbr.rel (%p1235) target = $region44
      $region43: #{st_dim_cnn_forward.8} parent=39 // pred_region
        %p1238 = scmp.lt.s32.totalorder %s15, 1
        %s1239 = scalar_select %p1238, %s15, 1
        %s1240 = smul.addr %s1239, 2
        %s1241 = scalar_lea.vmem %s3, %s1240
      $region44: #{st_dim_cnn_forward.8} parent=39 // pred_fallthru
        _
    $region40: #{st_dim_cnn_forward.8} parent=5 // pred_fallthru
      _
  $region6: #{st_dim_cnn_forward.8} parent=0 // loop_footer
    %s13 = sadd.s32 1, %s9
  $region7: #{st_dim_cnn_forward.8} parent=0 // loop_footer_branch
    %8 = sbr.rel target = $region3
  $region8: #{st_dim_cnn_forward.8} parent=0 // loop_exit
    _

// kernel: st_dim_cnn_forward.9
$region0: #{st_dim_cnn_forward.9}
  #allocation0 [shape = 'u32[]', space=smem, size = 0x4, offset = 0x4, fixed_abs, tag = 'smem constant byte address 0x4 - core index']
  #allocation1 [shape = 'u32[144,128]{1,0:T(1,128)}', space=vmem, size = 0x12000, scoped, tag = 'internal scratch']
  #allocation2 [shape = 'f32[2,32]{1,0:T(2,128)}', space=vmem, size = 0x400, scoped, tag = 'scratch operand']
  %s0 = inlined_call_operand.vmem [shape: bf16[2,512], index: 0, kind: input, shape index: {}]
  %s1 = inlined_call_operand.vmem [shape: bf16[512,32], index: 1, kind: input, shape index: {}]
  %s2 = inlined_call_operand.vmem [shape: f32[1,32], index: 2, kind: input, shape index: {}]
  %s3 = inlined_call_operand.hbm [shape: f32[2,32], index: 3, kind: output, shape index: {}]
  %s4 = sld [smem:[#allocation0]]
  $region30: #{st_dim_cnn_forward.9} parent=0
    _
  %s6 = ssub.s32 1, %s4
  %s7 = scalar_select 0, %s6, %s4
  $region1: #{st_dim_cnn_forward.9} parent=0
    #allocation3 [shape = 'u8[1024]{0}', space=vmem, size = 0x400, scoped, tag = 'output window, operand 0, single buffered']
    #allocation4 [shape = 's32[1]{0}', space=sflag, size = 0x4, scoped, tag = 'scoped memory for st_dim_cnn_forward.9']
    %8 = vsyncpa [#allocation4], 0
    // Predicated region
    $region2: #{st_dim_cnn_forward.9} parent=1 // pred_check
      _
    $region3: #{st_dim_cnn_forward.9} parent=1 // pred_check_branch
      %10 = sbr.rel (0) target = $region5
    $region4: #{st_dim_cnn_forward.9} parent=1 // pred_region
      _
    $region5: #{st_dim_cnn_forward.9} parent=1 // pred_fallthru
      _
    // Predicated region
    $region6: #{st_dim_cnn_forward.9} parent=1 // pred_check
      _
    $region7: #{st_dim_cnn_forward.9} parent=1 // pred_check_branch
      %12 = sbr.rel (0) target = $region9
    $region8: #{st_dim_cnn_forward.9} parent=1 // pred_region
      _
    $region9: #{st_dim_cnn_forward.9} parent=1 // pred_fallthru
      _
    // Predicated region
    $region10: #{st_dim_cnn_forward.9} parent=1 // pred_check
      _
    $region11: #{st_dim_cnn_forward.9} parent=1 // pred_check_branch
      %14 = sbr.rel (0) target = $region13
    $region12: #{st_dim_cnn_forward.9} parent=1 // pred_region
      _
    $region13: #{st_dim_cnn_forward.9} parent=1 // pred_fallthru
      _
    %p16 = scmp.eq.s32.totalorder 0, 0
    // Predicated region
    $region14: #{st_dim_cnn_forward.9} parent=1 // pred_check
      %p17 = pneg %p16
    $region15: #{st_dim_cnn_forward.9} parent=1 // pred_check_branch
      %19 = sbr.rel (%p17) target = $region17
    $region16: #{st_dim_cnn_forward.9} parent=1 // pred_region
      %vm20 = vcmask 254976
      %21 = vst.msk [vmem:[#allocation2] sm:$0x3] %vm20, 0.0
    $region17: #{st_dim_cnn_forward.9} parent=1 // pred_fallthru
      _
    %v22 = vld [vmem:[#allocation2] sm:$0x3]
    %v23 = vld [vmem:[%s0] sm:$0xf]
    %v24 = vld [vmem:[%s1] sm:$0xf]
    %v25 = vld [vmem:[%s1 + $0x4] sm:$0xf]
    %v26 = vld [vmem:[%s1 + $0x8] sm:$0xf]
    %v27 = vld [vmem:[%s1 + $0xc] sm:$0xf]
    %v28 = vld [vmem:[%s1 + $0x10] sm:$0xf]
    %v29 = vld [vmem:[%s1 + $0x14] sm:$0xf]
    %v30 = vld [vmem:[%s1 + $0x18] sm:$0xf]
    %v31 = vld [vmem:[%s1 + $0x1c] sm:$0xf]
    %v32 = vld [vmem:[%s1 + $0x20] sm:$0xf]
    %v33 = vld [vmem:[%s1 + $0x24] sm:$0xf]
    %v34 = vld [vmem:[%s1 + $0x28] sm:$0xf]
    %v35 = vld [vmem:[%s1 + $0x2c] sm:$0xf]
    %v36 = vld [vmem:[%s1 + $0x30] sm:$0xf]
    %v37 = vld [vmem:[%s1 + $0x34] sm:$0xf]
    %v38 = vld [vmem:[%s1 + $0x38] sm:$0xf]
    %v39 = vld [vmem:[%s1 + $0x3c] sm:$0xf]
    %v40 = vld [vmem:[%s1 + $0x40] sm:$0xf]
    %v41 = vld [vmem:[%s1 + $0x44] sm:$0xf]
    %v42 = vld [vmem:[%s1 + $0x48] sm:$0xf]
    %v43 = vld [vmem:[%s1 + $0x4c] sm:$0xf]
    %v44 = vld [vmem:[%s1 + $0x50] sm:$0xf]
    %v45 = vld [vmem:[%s1 + $0x54] sm:$0xf]
    %v46 = vld [vmem:[%s1 + $0x58] sm:$0xf]
    %v47 = vld [vmem:[%s1 + $0x5c] sm:$0xf]
    %v48 = vld [vmem:[%s1 + $0x60] sm:$0xf]
    %v49 = vld [vmem:[%s1 + $0x64] sm:$0xf]
    %v50 = vld [vmem:[%s1 + $0x68] sm:$0xf]
    %v51 = vld [vmem:[%s1 + $0x6c] sm:$0xf]
    %v52 = vld [vmem:[%s1 + $0x70] sm:$0xf]
    %v53 = vld [vmem:[%s1 + $0x74] sm:$0xf]
    %v54 = vld [vmem:[%s1 + $0x78] sm:$0xf]
    %v55 = vld [vmem:[%s1 + $0x7c] sm:$0xf]
    %v56 = vld [vmem:[%s1 + $0x80] sm:$0xf]
    %v57 = vld [vmem:[%s1 + $0x84] sm:$0xf]
    %v58 = vld [vmem:[%s1 + $0x88] sm:$0xf]
    %v59 = vld [vmem:[%s1 + $0x8c] sm:$0xf]
    %v60 = vld [vmem:[%s1 + $0x90] sm:$0xf]
    %v61 = vld [vmem:[%s1 + $0x94] sm:$0xf]
    %v62 = vld [vmem:[%s1 + $0x98] sm:$0xf]
    %v63 = vld [vmem:[%s1 + $0x9c] sm:$0xf]
    %v64 = vld [vmem:[%s1 + $0xa0] sm:$0xf]
    %v65 = vld [vmem:[%s1 + $0xa4] sm:$0xf]
    %v66 = vld [vmem:[%s1 + $0xa8] sm:$0xf]
    %v67 = vld [vmem:[%s1 + $0xac] sm:$0xf]
    %v68 = vld [vmem:[%s1 + $0xb0] sm:$0xf]
    %v69 = vld [vmem:[%s1 + $0xb4] sm:$0xf]
    %v70 = vld [vmem:[%s1 + $0xb8] sm:$0xf]
    %v71 = vld [vmem:[%s1 + $0xbc] sm:$0xf]
    %v72 = vld [vmem:[%s1 + $0xc0] sm:$0xf]
    %v73 = vld [vmem:[%s1 + $0xc4] sm:$0xf]
    %v74 = vld [vmem:[%s1 + $0xc8] sm:$0xf]
    %v75 = vld [vmem:[%s1 + $0xcc] sm:$0xf]
    %v76 = vld [vmem:[%s1 + $0xd0] sm:$0xf]
    %v77 = vld [vmem:[%s1 + $0xd4] sm:$0xf]
    %v78 = vld [vmem:[%s1 + $0xd8] sm:$0xf]
    %v79 = vld [vmem:[%s1 + $0xdc] sm:$0xf]
    %v80 = vld [vmem:[%s1 + $0xe0] sm:$0xf]
    %v81 = vld [vmem:[%s1 + $0xe4] sm:$0xf]
    %v82 = vld [vmem:[%s1 + $0xe8] sm:$0xf]
    %v83 = vld [vmem:[%s1 + $0xec] sm:$0xf]
    %v84 = vld [vmem:[%s1 + $0xf0] sm:$0xf]
    %v85 = vld [vmem:[%s1 + $0xf4] sm:$0xf]
    %v86 = vld [vmem:[%s1 + $0xf8] sm:$0xf]
    %v87 = vld [vmem:[%s1 + $0xfc] sm:$0xf]
    %v90 = vunpack.c.l.s4 1966171168
    %v91 = vunpack.c.0.s8 %v90
    %v92 = vlaneseq
    %v93 = vshrl.u32 %v92, 7
    %v94 = vsub.s32 %v91, %v93
    %v95 = vrot.slane %v23, %v94
    %v96 = vcombine.high %v95, %v95
    %v98 = vunpack.c.l.s4 1966171168
    %v99 = vunpack.c.0.s8 %v98
    %v100 = vlaneseq
    %v101 = vshrl.u32 %v100, 7
    %v102 = vsub.s32 %v99, %v101
    %v103 = vrot.slane %v95, %v102
    %v105 = vunpack.c.l.s4 1966171168
    %v106 = vunpack.c.0.s8 %v105
    %v107 = vlaneseq
    %v108 = vshrl.u32 %v107, 7
    %v109 = vsub.s32 %v106, %v108
    %v110 = vrot.slane %v96, %v109
    %v111 = vcombine.high %v103, %v103
    %v112 = vcombine.high %v110, %v110
    %v181 = vunpack.c.l.b16 %v24
    %v182 = vunpack.c.l.b16 %v25
    %v183 = vunpack.c.l.b16 %v26
    %v184 = vunpack.c.l.b16 %v27
    %v185 = vunpack.c.l.b16 %v28
    %v186 = vunpack.c.l.b16 %v29
    %v187 = vunpack.c.l.b16 %v30
    %v188 = vunpack.c.l.b16 %v31
    %v189 = vunpack.c.l.b16 %v32
    %v190 = vunpack.c.l.b16 %v33
    %v191 = vunpack.c.l.b16 %v34
    %v192 = vunpack.c.l.b16 %v35
    %v193 = vunpack.c.l.b16 %v36
    %v194 = vunpack.c.l.b16 %v37
    %v195 = vunpack.c.l.b16 %v38
    %v196 = vunpack.c.l.b16 %v39
    %v197 = vunpack.c.l.b16 %v40
    %v198 = vunpack.c.l.b16 %v41
    %v199 = vunpack.c.l.b16 %v42
    %v200 = vunpack.c.l.b16 %v43
    %v201 = vunpack.c.l.b16 %v44
    %v202 = vunpack.c.l.b16 %v45
    %v203 = vunpack.c.l.b16 %v46
    %v204 = vunpack.c.l.b16 %v47
    %v205 = vunpack.c.l.b16 %v48
    %v206 = vunpack.c.l.b16 %v49
    %v207 = vunpack.c.l.b16 %v50
    %v208 = vunpack.c.l.b16 %v51
    %v209 = vunpack.c.l.b16 %v52
    %v210 = vunpack.c.l.b16 %v53
    %v211 = vunpack.c.l.b16 %v54
    %v212 = vunpack.c.l.b16 %v55
    %v213 = vunpack.c.l.b16 %v56
    %v214 = vunpack.c.l.b16 %v57
    %v215 = vunpack.c.l.b16 %v58
    %v216 = vunpack.c.l.b16 %v59
    %v217 = vunpack.c.l.b16 %v60
    %v218 = vunpack.c.l.b16 %v61
    %v219 = vunpack.c.l.b16 %v62
    %v220 = vunpack.c.l.b16 %v63
    %v221 = vunpack.c.l.b16 %v64
    %v222 = vunpack.c.l.b16 %v65
    %v223 = vunpack.c.l.b16 %v66
    %v224 = vunpack.c.l.b16 %v67
    %v225 = vunpack.c.l.b16 %v68
    %v226 = vunpack.c.l.b16 %v69
    %v227 = vunpack.c.l.b16 %v70
    %v228 = vunpack.c.l.b16 %v71
    %v229 = vunpack.c.l.b16 %v72
    %v230 = vunpack.c.l.b16 %v73
    %v231 = vunpack.c.l.b16 %v74
    %v232 = vunpack.c.l.b16 %v75
    %v233 = vunpack.c.l.b16 %v76
    %v234 = vunpack.c.l.b16 %v77
    %v235 = vunpack.c.l.b16 %v78
    %v236 = vunpack.c.l.b16 %v79
    %v237 = vunpack.c.l.b16 %v80
    %v238 = vunpack.c.l.b16 %v81
    %v239 = vunpack.c.l.b16 %v82
    %v240 = vunpack.c.l.b16 %v83
    %v241 = vunpack.c.l.b16 %v84
    %v242 = vunpack.c.l.b16 %v85
    %v243 = vunpack.c.l.b16 %v86
    %v244 = vunpack.c.l.b16 %v87
    %v245 = vpack.c.b16 %v182, %v181
    %v246 = vpack.c.b16 %v184, %v183
    %v247 = vpack.c.b16 %v186, %v185
    %v248 = vpack.c.b16 %v188, %v187
    %v249 = vpack.c.b16 %v190, %v189
    %v250 = vpack.c.b16 %v192, %v191
    %v251 = vpack.c.b16 %v194, %v193
    %v252 = vpack.c.b16 %v196, %v195
    %v253 = vpack.c.b16 %v198, %v197
    %v254 = vpack.c.b16 %v200, %v199
    %v255 = vpack.c.b16 %v202, %v201
    %v256 = vpack.c.b16 %v204, %v203
    %v257 = vpack.c.b16 %v206, %v205
    %v258 = vpack.c.b16 %v208, %v207
    %v259 = vpack.c.b16 %v210, %v209
    %v260 = vpack.c.b16 %v212, %v211
    %v261 = vpack.c.b16 %v214, %v213
    %v262 = vpack.c.b16 %v216, %v215
    %v263 = vpack.c.b16 %v218, %v217
    %v264 = vpack.c.b16 %v220, %v219
    %v265 = vpack.c.b16 %v222, %v221
    %v266 = vpack.c.b16 %v224, %v223
    %v267 = vpack.c.b16 %v226, %v225
    %v268 = vpack.c.b16 %v228, %v227
    %v269 = vpack.c.b16 %v230, %v229
    %v270 = vpack.c.b16 %v232, %v231
    %v271 = vpack.c.b16 %v234, %v233
    %v272 = vpack.c.b16 %v236, %v235
    %v273 = vpack.c.b16 %v238, %v237
    %v274 = vpack.c.b16 %v240, %v239
    %v275 = vpack.c.b16 %v242, %v241
    %v276 = vpack.c.b16 %v244, %v243
    %309 = vmatprep.subr.bf16.mxu0 0
    %310 = vmatpush1.bf16.msra.mxu0 %v245
    %311 = vmatprep.subr.bf16.mxu0 0
    %312 = vmatpush1.bf16.msra.mxu0 %v246
    %313 = vmatprep.subr.bf16.mxu0 0
    %314 = vmatpush1.bf16.msra.mxu0 %v247
    %315 = vmatprep.subr.bf16.mxu0 0
    %316 = vmatpush1.bf16.msra.mxu0 %v248
    %317 = vmatprep.subr.bf16.mxu0 0
    %318 = vmatpush1.bf16.msra.mxu0 %v249
    %319 = vmatprep.subr.bf16.mxu0 0
    %320 = vmatpush1.bf16.msra.mxu0 %v250
    %321 = vmatprep.subr.bf16.mxu0 0
    %322 = vmatpush1.bf16.msra.mxu0 %v251
    %323 = vmatprep.subr.bf16.mxu0 0
    %324 = vmatpush1.bf16.msra.mxu0 %v252
    %325 = vmatprep.subr.bf16.mxu0 0
    %326 = vmatpush1.bf16.msra.mxu0 %v253
    %327 = vmatprep.subr.bf16.mxu0 0
    %328 = vmatpush1.bf16.msra.mxu0 %v254
    %329 = vmatprep.subr.bf16.mxu0 0
    %330 = vmatpush1.bf16.msra.mxu0 %v255
    %331 = vmatprep.subr.bf16.mxu0 0
    %332 = vmatpush1.bf16.msra.mxu0 %v256
    %333 = vmatprep.subr.bf16.mxu0 0
    %334 = vmatpush1.bf16.msra.mxu0 %v257
    %335 = vmatprep.subr.bf16.mxu0 0
    %336 = vmatpush1.bf16.msra.mxu0 %v258
    %337 = vmatprep.subr.bf16.mxu0 0
    %338 = vmatpush1.bf16.msra.mxu0 %v259
    %339 = vmatprep.subr.bf16.mxu0 0
    %340 = vmatpush1.bf16.msra.mxu0 %v260
    %341 = vmatprep.mubr.bf16.mxu0 %v110
    %342 = vmatmul.mubr.bf16.gmra.mrb[0].mxu0 %v103
    %v343 = vpop.f32.mrb[0].mxu0
    %v344 = vadd.f32 0.0, %v343
    %v345 = vpop.f32.mrb[0].mxu0
    %v346 = vpop.f32.mrb[0].mxu0
    %v347 = vpop.f32.mrb[0].mxu0
    %348 = vdwg.mxu0
    %349 = vmatprep.subr.bf16.mxu0 0
    %350 = vmatpush1.bf16.msra.mxu0 %v261
    %351 = vmatprep.subr.bf16.mxu0 0
    %352 = vmatpush1.bf16.msra.mxu0 %v262
    %353 = vmatprep.subr.bf16.mxu0 0
    %354 = vmatpush1.bf16.msra.mxu0 %v263
    %355 = vmatprep.subr.bf16.mxu0 0
    %356 = vmatpush1.bf16.msra.mxu0 %v264
    %357 = vmatprep.subr.bf16.mxu0 0
    %358 = vmatpush1.bf16.msra.mxu0 %v265
    %359 = vmatprep.subr.bf16.mxu0 0
    %360 = vmatpush1.bf16.msra.mxu0 %v266
    %361 = vmatprep.subr.bf16.mxu0 0
    %362 = vmatpush1.bf16.msra.mxu0 %v267
    %363 = vmatprep.subr.bf16.mxu0 0
    %364 = vmatpush1.bf16.msra.mxu0 %v268
    %365 = vmatprep.subr.bf16.mxu0 0
    %366 = vmatpush1.bf16.msra.mxu0 %v269
    %367 = vmatprep.subr.bf16.mxu0 0
    %368 = vmatpush1.bf16.msra.mxu0 %v270
    %369 = vmatprep.subr.bf16.mxu0 0
    %370 = vmatpush1.bf16.msra.mxu0 %v271
    %371 = vmatprep.subr.bf16.mxu0 0
    %372 = vmatpush1.bf16.msra.mxu0 %v272
    %373 = vmatprep.subr.bf16.mxu0 0
    %374 = vmatpush1.bf16.msra.mxu0 %v273
    %375 = vmatprep.subr.bf16.mxu0 0
    %376 = vmatpush1.bf16.msra.mxu0 %v274
    %377 = vmatprep.subr.bf16.mxu0 0
    %378 = vmatpush1.bf16.msra.mxu0 %v275
    %379 = vmatprep.subr.bf16.mxu0 0
    %380 = vmatpush1.bf16.msra.mxu0 %v276
    %381 = vmatprep.mubr.bf16.mxu0 %v112
    %382 = vmatmul.mubr.bf16.gmra.mrb[0].mxu0 %v111
    %v383 = vpop.f32.mrb[0].mxu0
    %v384 = vadd.f32 %v344, %v383
    %v385 = vpop.f32.mrb[0].mxu0
    %v386 = vpop.f32.mrb[0].mxu0
    %v387 = vpop.f32.mrb[0].mxu0
    %388 = vdwg.mxu0
    %v389 = vadd.f32 %v22, %v384
    %vm390 = vcmask 254976
    %391 = vst.msk [vmem:[#allocation2] sm:$0x3] %vm390, %v389
    // Predicated region
    $region18: #{st_dim_cnn_forward.9} parent=1 // pred_check
      %p392 = pneg %p16
    $region19: #{st_dim_cnn_forward.9} parent=1 // pred_check_branch
      %394 = sbr.rel (%p392) target = $region21
    $region20: #{st_dim_cnn_forward.9} parent=1 // pred_region
      %v395 = vld [vmem:[#allocation2] sm:$0x3]
      %v396 = vld [vmem:[%s2] sm:$0x1]
      %v398 = vlaneseq
      %v399 = vshrl.u32 %v398, 7
      %v400 = vsub.s32 0, %v399
      %v401 = vrot.slane %v396, %v400
      %v403 = vadd.f32 %v395, %v401
      %404 = vst.msk [vmem:[#allocation3] sm:$0x3] %vm390, %v403
    $region21: #{st_dim_cnn_forward.9} parent=1 // pred_fallthru
      _
    // Predicated region
    $region22: #{st_dim_cnn_forward.9} parent=1 // pred_check
      _
    $region23: #{st_dim_cnn_forward.9} parent=1 // pred_check_branch
      %406 = sbr.rel (0) target = $region25
    $region24: #{st_dim_cnn_forward.9} parent=1 // pred_region
      %s408 = ssub.s32 32, 32
      %409 = vsyncadd [#allocation4], %s408
      %s411 = sshll.u32 [#allocation3], 4
      %s412 = int_to_ptr.vmem [resolvable:$true] %s411
      %414 = dma.vmem_to_hbm [thread:$0]  %s412, 32, %s3, [#allocation4]
    $region25: #{st_dim_cnn_forward.9} parent=1 // pred_fallthru
      _
    // Predicated region
    $region26: #{st_dim_cnn_forward.9} parent=1 // pred_check
      _
    $region27: #{st_dim_cnn_forward.9} parent=1 // pred_check_branch
      %416 = sbr.rel (0) target = $region29
    $region28: #{st_dim_cnn_forward.9} parent=1 // pred_region
      %417 = dma.done [#allocation4], 32
    $region29: #{st_dim_cnn_forward.9} parent=1 // pred_fallthru
      _
    %418 = vsyncpa [#allocation4], 1

</llo_original>
